<compile_context>
chip_gen: v5e
topology: v5e:2x2
jax: 0.10.0
libtpu: 0.0.40
codegen_flags: <defaults>
</compile_context>

<pallas_src>
import functools
import math

import jax
import jax.numpy as jnp
from jax.experimental import pallas as pl
from jax.experimental.pallas import tpu as pltpu


# ----------------------------------------------------------------------------
# Fused forward kernel.
# ----------------------------------------------------------------------------
def vae_fused_kernel(x_ref, wih0_ref, wih_ref, whh_ref, b_ref,
                     efc1_w, efc1_b, efc2_w, efc2_b, ehead_w, ehead_b,
                     dfc1_w, dfc1_b, dfc2_w, dfc2_b, dout_w, dout_b,
                     dfin_w, dfin_b, eps_ref, u_ref, sel_ref,
                     recon_ref, heads_ref, seq_sc, gx_sc):
    T, B, DIN = x_ref.shape
    L, HP, _ = whh_ref.shape
    LAT = eps_ref.shape[1]
    f32 = jnp.float32
    bf16 = jnp.bfloat16

    def dense(x, w, b):
        return jnp.dot(x.astype(bf16), w[...], preferred_element_type=f32) + b[...]

    def run_layer(x_flat_bf16, wih, whh, bias):
        # Hoisted input projection + bias for all T timesteps (one MXU call).
        gx = jnp.dot(x_flat_bf16, wih, preferred_element_type=f32) + bias
        gx_sc[...] = gx.reshape(T, B, 4 * HP)
        h = jnp.zeros((B, HP), f32)
        c = jnp.zeros((B, HP), f32)
        for t in range(T):  # short, static recurrence -> unrolled
            gates = gx_sc[t] + jnp.dot(h.astype(bf16), whh,
                                       preferred_element_type=f32)
            # gate layout (lane aligned, HP = 128 per gate): [ i | f | o | g ]
            sig = jax.nn.sigmoid(gates[:, :3 * HP])       # one EUP block for i,f,o
            g_g = jnp.tanh(gates[:, 3 * HP:])
            c = sig[:, HP:2 * HP] * c + sig[:, :HP] * g_g
            h = sig[:, 2 * HP:3 * HP] * jnp.tanh(c)
            seq_sc[t] = h

    # ---- LSTM layer 0 (raw input sequence) ----
    x_flat = x_ref[...].reshape(T * B, DIN).astype(bf16)
    run_layer(x_flat, wih0_ref[...], whh_ref[0], b_ref[0])

    # ---- LSTM layers 1 .. L-1 (inter-layer dropout = identity in eval) ----
    def layer_body(layer, carry):
        seq_flat = seq_sc[...].reshape(T * B, HP).astype(bf16)
        run_layer(seq_flat, wih_ref[layer - 1], whh_ref[layer], b_ref[layer])
        return carry

    jax.lax.fori_loop(1, L, layer_body, 0)

    # ---- Encoder head: fc1 -> relu -> fc2 -> relu -> fused 4-way projection ----
    h_last = seq_sc[T - 1]                                   # (B, HP); cols [H:] zero
    h1 = jnp.maximum(dense(h_last, efc1_w, efc1_b), 0.0)
    h2 = jnp.maximum(dense(h1, efc2_w, efc2_b), 0.0)         # dropout = identity
    heads = dense(h2, ehead_w, ehead_b)                      # (B, 4*LAT): mean|logvar|scale|shape
    lane = jax.lax.broadcasted_iota(jnp.int32, heads.shape, 1)
    is_scale = (lane >= 2 * LAT) & (lane < 3 * LAT)
    heads = jnp.where(is_scale, jnp.exp(heads), heads)       # scale head = exp(linear)
    heads_ref[...] = heads

    # ---- Mixture reparameterization ----
    z_mean = heads[:, :LAT]
    z_logvar = heads[:, LAT:2 * LAT]
    z_scale = heads[:, 2 * LAT:3 * LAT]
    z_shape = heads[:, 3 * LAT:]
    z_gauss = z_mean + eps_ref[...] * jnp.exp(0.5 * z_logvar)
    z_gpd = z_scale / z_shape * (
        jnp.exp(-z_shape * jnp.log(1.0 - u_ref[...])) - 1.0)
    z = jnp.where(sel_ref[...] > 0.5, z_gauss, z_gpd)

    # ---- Decoder: fc1 -> relu -> fc2 -> relu -> out -> final_fcn ----
    d1 = jnp.maximum(dense(z, dfc1_w, dfc1_b), 0.0)
    d2 = jnp.maximum(dense(d1, dfc2_w, dfc2_b), 0.0)         # dropout = identity
    o = dense(d2, dout_w, dout_b)
    recon_ref[...] = dense(o, dfin_w, dfin_b)


# ----------------------------------------------------------------------------
# Wrapper (glue in plain JAX, all compute in the fused kernel).
# ----------------------------------------------------------------------------
def vae_forward(params, x_btd, rng_key):
    B, T, _ = x_btd.shape
    BP = ((B + 7) // 8) * 8                     # pad batch to full sublane groups
    L, HP, _ = params["whh"].shape
    LAT = params["enc_head_w"].shape[1] // 4
    FUT = params["dec_out_w"].shape[1]

    x_tbd = jnp.transpose(x_btd, (1, 0, 2))     # (B,T,D) -> (T,B,D) time-major
    if BP != B:
        x_tbd = jnp.pad(x_tbd, ((0, 0), (0, BP - B), (0, 0)))

    k_choice, k_eps, k_u = jax.random.split(rng_key, 3)
    choice = jax.random.uniform(k_choice, (BP,), dtype=jnp.float32)
    eps = jax.random.normal(k_eps, (BP, LAT), dtype=jnp.float32)
    u = jax.random.uniform(k_u, (BP, LAT), dtype=jnp.float32)
    p_gauss = jax.nn.softmax(params["pi"])[0]
    sel = jnp.broadcast_to((choice < p_gauss)[:, None], (BP, LAT)).astype(jnp.float32)

    vmem = pl.BlockSpec(memory_space=pltpu.MemorySpace.VMEM)
    recon_p, heads_p = pl.pallas_call(
        vae_fused_kernel,
        out_shape=(jax.ShapeDtypeStruct((BP, FUT), jnp.float32),
                   jax.ShapeDtypeStruct((BP, 4 * LAT), jnp.float32)),
        in_specs=[vmem] * 22,
        out_specs=(vmem, vmem),
        scratch_shapes=[
            pltpu.VMEM((T, BP, HP), jnp.float32),       # hidden-state sequence buffer
            pltpu.VMEM((T, BP, 4 * HP), jnp.float32),   # hoisted input-gate projections
        ],
    )(x_tbd,
      params["wih0"], params["wih_rest"], params["whh"], params["b_lstm"],
      params["enc_fc1_w"], params["enc_fc1_b"],
      params["enc_fc2_w"], params["enc_fc2_b"],
      params["enc_head_w"], params["enc_head_b"],
      params["dec_fc1_w"], params["dec_fc1_b"],
      params["dec_fc2_w"], params["dec_fc2_b"],
      params["dec_out_w"], params["dec_out_b"],
      params["dec_final_w"], params["dec_final_b"],
      eps, u, sel)

    recon = recon_p[:B]
    heads = heads_p[:B]
    z_mean = heads[:, :LAT]
    z_logvar = heads[:, LAT:2 * LAT]
    z_scale = heads[:, 2 * LAT:3 * LAT]
    z_shape = heads[:, 3 * LAT:]
    return recon, z_mean, z_logvar, z_scale, z_shape


# ----------------------------------------------------------------------------
# Deterministic parameter construction + packing (PyTorch-style uniform init).
# Packed layout: gate order (i, f, o, g), each gate padded to HP = 128 lanes,
# weights transposed to (in_features, 4*HP) and cast to bf16; biases stay f32.
# ----------------------------------------------------------------------------
_GATE_PERM = (0, 1, 3, 2)   # PyTorch (i, f, g, o) -> packed (i, f, o, g)


def _uniform(key, shape, lim):
    return jax.random.uniform(key, shape, minval=-lim, maxval=lim, dtype=jnp.float32)


def _pack_lstm_weight(w4, in_dim, in_pad, H, HP):
    """w4: (4, H, in_dim) per-gate PyTorch-layout weights -> (in_pad, 4*HP)."""
    out = jnp.zeros((in_pad, 4 * HP), dtype=jnp.float32)
    for dst, src in enumerate(_GATE_PERM):
        out = out.at[:in_dim, dst * HP:dst * HP + H].set(w4[src].T)
    return out


def _pack_lstm_bias(b4, H, HP):
    out = jnp.zeros((1, 4 * HP), dtype=jnp.float32)
    for dst, src in enumerate(_GATE_PERM):
        out = out.at[0, dst * HP:dst * HP + H].set(b4[src])
    return out


def _init_linear(key, fan_in, fan_out):
    kw, kb = jax.random.split(key)
    lim = 1.0 / math.sqrt(fan_in)
    return _uniform(kw, (fan_in, fan_out), lim), _uniform(kb, (1, fan_out), lim)


def make_params(key, input_dim, lstm_hidden, num_layers, latent_dim, future_steps):
    H, L = lstm_hidden, num_layers
    HP = ((H + 127) // 128) * 128          # lane-aligned per-gate block
    keys = jax.random.split(key, 4 * L + 10)
    lim = 1.0 / math.sqrt(H)
    p = {}

    wih_rest, whh_all, b_all = [], [], []
    ki = 0
    for l in range(L):
        in_dim = input_dim if l == 0 else H
        w_ih = _uniform(keys[ki], (4, H, in_dim), lim); ki += 1
        w_hh = _uniform(keys[ki], (4, H, H), lim); ki += 1
        b_ih = _uniform(keys[ki], (4, H), lim); ki += 1
        b_hh = _uniform(keys[ki], (4, H), lim); ki += 1
        if l == 0:
            p["wih0"] = _pack_lstm_weight(w_ih, in_dim, in_dim, H, HP).astype(jnp.bfloat16)
        else:
            wih_rest.append(_pack_lstm_weight(w_ih, in_dim, HP, H, HP))
        whh_all.append(_pack_lstm_weight(w_hh, H, HP, H, HP))
        b_all.append(_pack_lstm_bias(b_ih + b_hh, H, HP))   # faithful b_ih + b_hh sum
    p["wih_rest"] = jnp.stack(wih_rest).astype(jnp.bfloat16)   # (L-1, HP, 4*HP)
    p["whh"] = jnp.stack(whh_all).astype(jnp.bfloat16)         # (L, HP, 4*HP)
    p["b_lstm"] = jnp.stack(b_all)                              # (L, 1, 4*HP) f32

    kbase = 4 * L
    # NOTE: the reference module requires lstm_output_dim == 64 for the heads
    # (declared Linear(lstm_output_dim, latent) but fed the 64-d fc2 output).
    w, b = _init_linear(keys[kbase + 0], H, 128)
    p["enc_fc1_w"] = jnp.zeros((HP, 128), jnp.float32).at[:H].set(w).astype(jnp.bfloat16)
    p["enc_fc1_b"] = b
    w, b = _init_linear(keys[kbase + 1], 128, 64)
    p["enc_fc2_w"] = w.astype(jnp.bfloat16)
    p["enc_fc2_b"] = b
    head_ws, head_bs = [], []
    for j in range(4):                       # [mean | logvar | scale | shape]
        w, b = _init_linear(keys[kbase + 2 + j], 64, latent_dim)
        head_ws.append(w); head_bs.append(b)
    head_bs[3] = head_bs[3] + 0.3            # keep GPD shape away from 0 in the demo
    p["enc_head_w"] = jnp.concatenate(head_ws, axis=1).astype(jnp.bfloat16)  # (64, 4*LAT)
    p["enc_head_b"] = jnp.concatenate(head_bs, axis=1)                        # (1, 4*LAT)

    HID2 = 512                                # pad decoder 500-wide hidden to 512 lanes
    w, b = _init_linear(keys[kbase + 6], latent_dim, 128)
    p["dec_fc1_w"] = w.astype(jnp.bfloat16); p["dec_fc1_b"] = b
    w, b = _init_linear(keys[kbase + 7], 128, 500)
    p["dec_fc2_w"] = jnp.zeros((128, HID2), jnp.float32).at[:, :500].set(w).astype(jnp.bfloat16)
    p["dec_fc2_b"] = jnp.zeros((1, HID2), jnp.float32).at[:, :500].set(b)
    w, b = _init_linear(keys[kbase + 8], 500, future_steps)
    p["dec_out_w"] = jnp.zeros((HID2, future_steps), jnp.float32).at[:500].set(w).astype(jnp.bfloat16)
    p["dec_out_b"] = b
    w, b = _init_linear(keys[kbase + 9], future_steps, future_steps)
    p["dec_final_w"] = w.astype(jnp.bfloat16); p["dec_final_b"] = b

    p["pi"] = jnp.array([3.0, 0.01], dtype=jnp.float32)
    return p


if __name__ == "__main__":
    B, T = 4, 8
    INPUT_DIM, LSTM_HIDDEN, NUM_LAYERS = 8, 64, 10
    LATENT_DIM, FUTURE_STEPS = 16, 8

    root = jax.random.PRNGKey(0)
    k_params, k_x, k_rng = jax.random.split(root, 3)
    params = make_params(k_params, INPUT_DIM, LSTM_HIDDEN, NUM_LAYERS,
                         LATENT_DIM, FUTURE_STEPS)
    x = jax.random.normal(k_x, (B, T, INPUT_DIM), dtype=jnp.float32)

    fwd = jax.jit(functools.partial(vae_forward, params))
    recon, z_mean, z_logvar, z_scale, z_shape = fwd(x, k_rng)
    jax.block_until_ready((recon, z_mean, z_logvar, z_scale, z_shape))

    assert recon.shape == (B, FUTURE_STEPS)
    assert z_mean.shape == (B, LATENT_DIM)
    assert z_logvar.shape == (B, LATENT_DIM)
    assert z_scale.shape == (B, LATENT_DIM)
    assert z_shape.shape == (B, LATENT_DIM)
    assert bool(jnp.all(jnp.isfinite(recon)))
    print("KERNEL_OK")
</pallas_src>

<mosaic_0001>
module attributes {stable_mosaic.version = 11 : i64} {
  func.func @vae_fused_kernel(%arg0: memref<8x8x8xf32, #tpu.memory_space<vmem>>, %arg1: memref<8x512xbf16, #tpu.memory_space<vmem>>, %arg2: memref<9x128x512xbf16, #tpu.memory_space<vmem>>, %arg3: memref<10x128x512xbf16, #tpu.memory_space<vmem>>, %arg4: memref<10x1x512xf32, #tpu.memory_space<vmem>>, %arg5: memref<128x128xbf16, #tpu.memory_space<vmem>>, %arg6: memref<1x128xf32, #tpu.memory_space<vmem>>, %arg7: memref<128x64xbf16, #tpu.memory_space<vmem>>, %arg8: memref<1x64xf32, #tpu.memory_space<vmem>>, %arg9: memref<64x64xbf16, #tpu.memory_space<vmem>>, %arg10: memref<1x64xf32, #tpu.memory_space<vmem>>, %arg11: memref<16x128xbf16, #tpu.memory_space<vmem>>, %arg12: memref<1x128xf32, #tpu.memory_space<vmem>>, %arg13: memref<128x512xbf16, #tpu.memory_space<vmem>>, %arg14: memref<1x512xf32, #tpu.memory_space<vmem>>, %arg15: memref<512x8xbf16, #tpu.memory_space<vmem>>, %arg16: memref<1x8xf32, #tpu.memory_space<vmem>>, %arg17: memref<8x8xbf16, #tpu.memory_space<vmem>>, %arg18: memref<1x8xf32, #tpu.memory_space<vmem>>, %arg19: memref<8x16xf32, #tpu.memory_space<vmem>>, %arg20: memref<8x16xf32, #tpu.memory_space<vmem>>, %arg21: memref<8x16xf32, #tpu.memory_space<vmem>>, %arg22: memref<8x8xf32, #tpu.memory_space<vmem>>, %arg23: memref<8x64xf32, #tpu.memory_space<vmem>>, %arg24: memref<8x8x128xf32, #tpu.memory_space<vmem>>, %arg25: memref<8x8x512xf32, #tpu.memory_space<vmem>>) attributes {dimension_semantics = [], scalar_prefetch = 0 : i64, scratch_operands = 2 : i64, tpu.core_type = #tpu.core_type<tc>} {
    %c0 = arith.constant 0 : index
    %c0_0 = arith.constant 0 : index
    %c0_1 = arith.constant 0 : index
    %0 = vector.load %arg0[%c0, %c0_0, %c0_1] : memref<8x8x8xf32, #tpu.memory_space<vmem>>, vector<8x8x8xf32>
    %1 = vector.shape_cast %0 : vector<8x8x8xf32> to vector<64x8xf32>
    %2 = arith.truncf %1 : vector<64x8xf32> to vector<64x8xbf16>
    %c0_2 = arith.constant 0 : index
    %c0_3 = arith.constant 0 : index
    %3 = vector.load %arg1[%c0_2, %c0_3] : memref<8x512xbf16, #tpu.memory_space<vmem>>, vector<8x512xbf16>
    %c0_4 = arith.constant 0 : index
    %c0_5 = arith.constant 0 : index
    %c0_6 = arith.constant 0 : index
    %4 = vector.load %arg3[%c0_4, %c0_5, %c0_6] : memref<10x128x512xbf16, #tpu.memory_space<vmem>>, vector<1x128x512xbf16>
    %5 = vector.shape_cast %4 : vector<1x128x512xbf16> to vector<128x512xbf16>
    %c0_7 = arith.constant 0 : index
    %c0_8 = arith.constant 0 : index
    %c0_9 = arith.constant 0 : index
    %6 = vector.load %arg4[%c0_7, %c0_8, %c0_9] : memref<10x1x512xf32, #tpu.memory_space<vmem>>, vector<1x1x512xf32>
    %7 = vector.shape_cast %6 : vector<1x1x512xf32> to vector<1x512xf32>
    %cst = arith.constant dense<0.000000e+00> : vector<64x512xf32>
    %8 = tpu.matmul %2, %3, %cst {dimension_numbers = #tpu.dot_dimension_numbers<[1], [0], [0], [1], [0, 0, 1, 1], [], []>} : vector<64x8xbf16>, vector<8x512xbf16>, vector<64x512xf32> -> vector<64x512xf32>
    %9 = vector.broadcast %7 : vector<1x512xf32> to vector<64x512xf32>
    %10 = arith.addf %8, %9 : vector<64x512xf32>
    %11 = vector.shape_cast %10 : vector<64x512xf32> to vector<8x8x512xf32>
    %c0_10 = arith.constant 0 : index
    %c0_11 = arith.constant 0 : index
    %c0_12 = arith.constant 0 : index
    %12 = vector.load %arg25[%c0_10, %c0_11, %c0_12] : memref<8x8x512xf32, #tpu.memory_space<vmem>>, vector<8x8x512xf32>
    tpu.vector_store %arg25[%c0_10, %c0_11, %c0_12], %11 {strides = array<i32>} : memref<8x8x512xf32, #tpu.memory_space<vmem>>, vector<8x8x512xf32>,
    %cst_13 = arith.constant 0.000000e+00 : f32
    %13 = vector.broadcast %cst_13 : f32 to vector<8x128xf32>
    %cst_14 = arith.constant 0.000000e+00 : f32
    %14 = vector.broadcast %cst_14 : f32 to vector<8x128xf32>
    %c0_15 = arith.constant 0 : index
    %c0_16 = arith.constant 0 : index
    %c0_17 = arith.constant 0 : index
    %15 = vector.load %arg25[%c0_15, %c0_16, %c0_17] : memref<8x8x512xf32, #tpu.memory_space<vmem>>, vector<1x8x512xf32>
    %16 = vector.shape_cast %15 : vector<1x8x512xf32> to vector<8x512xf32>
    %17 = arith.truncf %13 : vector<8x128xf32> to vector<8x128xbf16>
    %cst_18 = arith.constant dense<0.000000e+00> : vector<8x512xf32>
    %18 = tpu.matmul %17, %5, %cst_18 {dimension_numbers = #tpu.dot_dimension_numbers<[1], [0], [0], [1], [0, 0, 1, 1], [], []>} : vector<8x128xbf16>, vector<128x512xbf16>, vector<8x512xf32> -> vector<8x512xf32>
    %19 = arith.addf %16, %18 : vector<8x512xf32>
    %20 = vector.extract_strided_slice %19 {offsets = [0, 0], sizes = [8, 384], strides = [1, 1]} : vector<8x512xf32> to vector<8x384xf32>
    %21 = arith.negf %20 : vector<8x384xf32>
    %22 = math.exp %21 : vector<8x384xf32>
    %cst_19 = arith.constant 1.000000e+00 : f32
    %23 = vector.broadcast %cst_19 : f32 to vector<8x384xf32>
    %24 = arith.addf %23, %22 : vector<8x384xf32>
    %25 = arith.divf %23, %24 : vector<8x384xf32>
    %26 = vector.extract_strided_slice %19 {offsets = [0, 384], sizes = [8, 128], strides = [1, 1]} : vector<8x512xf32> to vector<8x128xf32>
    %27 = math.tanh %26 : vector<8x128xf32>
    %28 = vector.extract_strided_slice %25 {offsets = [0, 128], sizes = [8, 128], strides = [1, 1]} : vector<8x384xf32> to vector<8x128xf32>
    %29 = arith.mulf %28, %14 : vector<8x128xf32>
    %30 = vector.extract_strided_slice %25 {offsets = [0, 0], sizes = [8, 128], strides = [1, 1]} : vector<8x384xf32> to vector<8x128xf32>
    %31 = arith.mulf %30, %27 : vector<8x128xf32>
    %32 = arith.addf %29, %31 : vector<8x128xf32>
    %33 = vector.extract_strided_slice %25 {offsets = [0, 256], sizes = [8, 128], strides = [1, 1]} : vector<8x384xf32> to vector<8x128xf32>
    %34 = math.tanh %32 : vector<8x128xf32>
    %35 = arith.mulf %33, %34 : vector<8x128xf32>
    %c0_20 = arith.constant 0 : index
    %c0_21 = arith.constant 0 : index
    %c0_22 = arith.constant 0 : index
    %36 = vector.load %arg24[%c0_20, %c0_21, %c0_22] : memref<8x8x128xf32, #tpu.memory_space<vmem>>, vector<1x8x128xf32>
    %37 = vector.shape_cast %36 : vector<1x8x128xf32> to vector<8x128xf32>
    %38 = vector.shape_cast %35 : vector<8x128xf32> to vector<1x8x128xf32>
    tpu.vector_store %arg24[%c0_20, %c0_21, %c0_22], %38 {strides = array<i32>} : memref<8x8x128xf32, #tpu.memory_space<vmem>>, vector<1x8x128xf32>,
    %c1 = arith.constant 1 : index
    %c0_23 = arith.constant 0 : index
    %c0_24 = arith.constant 0 : index
    %39 = vector.load %arg25[%c1, %c0_23, %c0_24] : memref<8x8x512xf32, #tpu.memory_space<vmem>>, vector<1x8x512xf32>
    %40 = vector.shape_cast %39 : vector<1x8x512xf32> to vector<8x512xf32>
    %41 = arith.truncf %35 : vector<8x128xf32> to vector<8x128xbf16>
    %cst_25 = arith.constant dense<0.000000e+00> : vector<8x512xf32>
    %42 = tpu.matmul %41, %5, %cst_25 {dimension_numbers = #tpu.dot_dimension_numbers<[1], [0], [0], [1], [0, 0, 1, 1], [], []>} : vector<8x128xbf16>, vector<128x512xbf16>, vector<8x512xf32> -> vector<8x512xf32>
    %43 = arith.addf %40, %42 : vector<8x512xf32>
    %44 = vector.extract_strided_slice %43 {offsets = [0, 0], sizes = [8, 384], strides = [1, 1]} : vector<8x512xf32> to vector<8x384xf32>
    %45 = arith.negf %44 : vector<8x384xf32>
    %46 = math.exp %45 : vector<8x384xf32>
    %cst_26 = arith.constant 1.000000e+00 : f32
    %47 = vector.broadcast %cst_26 : f32 to vector<8x384xf32>
    %48 = arith.addf %47, %46 : vector<8x384xf32>
    %49 = arith.divf %47, %48 : vector<8x384xf32>
    %50 = vector.extract_strided_slice %43 {offsets = [0, 384], sizes = [8, 128], strides = [1, 1]} : vector<8x512xf32> to vector<8x128xf32>
    %51 = math.tanh %50 : vector<8x128xf32>
    %52 = vector.extract_strided_slice %49 {offsets = [0, 128], sizes = [8, 128], strides = [1, 1]} : vector<8x384xf32> to vector<8x128xf32>
    %53 = arith.mulf %52, %32 : vector<8x128xf32>
    %54 = vector.extract_strided_slice %49 {offsets = [0, 0], sizes = [8, 128], strides = [1, 1]} : vector<8x384xf32> to vector<8x128xf32>
    %55 = arith.mulf %54, %51 : vector<8x128xf32>
    %56 = arith.addf %53, %55 : vector<8x128xf32>
    %57 = vector.extract_strided_slice %49 {offsets = [0, 256], sizes = [8, 128], strides = [1, 1]} : vector<8x384xf32> to vector<8x128xf32>
    %58 = math.tanh %56 : vector<8x128xf32>
    %59 = arith.mulf %57, %58 : vector<8x128xf32>
    %c1_27 = arith.constant 1 : index
    %c0_28 = arith.constant 0 : index
    %c0_29 = arith.constant 0 : index
    %60 = vector.load %arg24[%c1_27, %c0_28, %c0_29] : memref<8x8x128xf32, #tpu.memory_space<vmem>>, vector<1x8x128xf32>
    %61 = vector.shape_cast %60 : vector<1x8x128xf32> to vector<8x128xf32>
    %62 = vector.shape_cast %59 : vector<8x128xf32> to vector<1x8x128xf32>
    tpu.vector_store %arg24[%c1_27, %c0_28, %c0_29], %62 {strides = array<i32>} : memref<8x8x128xf32, #tpu.memory_space<vmem>>, vector<1x8x128xf32>,
    %c2 = arith.constant 2 : index
    %c0_30 = arith.constant 0 : index
    %c0_31 = arith.constant 0 : index
    %63 = vector.load %arg25[%c2, %c0_30, %c0_31] : memref<8x8x512xf32, #tpu.memory_space<vmem>>, vector<1x8x512xf32>
    %64 = vector.shape_cast %63 : vector<1x8x512xf32> to vector<8x512xf32>
    %65 = arith.truncf %59 : vector<8x128xf32> to vector<8x128xbf16>
    %cst_32 = arith.constant dense<0.000000e+00> : vector<8x512xf32>
    %66 = tpu.matmul %65, %5, %cst_32 {dimension_numbers = #tpu.dot_dimension_numbers<[1], [0], [0], [1], [0, 0, 1, 1], [], []>} : vector<8x128xbf16>, vector<128x512xbf16>, vector<8x512xf32> -> vector<8x512xf32>
    %67 = arith.addf %64, %66 : vector<8x512xf32>
    %68 = vector.extract_strided_slice %67 {offsets = [0, 0], sizes = [8, 384], strides = [1, 1]} : vector<8x512xf32> to vector<8x384xf32>
    %69 = arith.negf %68 : vector<8x384xf32>
    %70 = math.exp %69 : vector<8x384xf32>
    %cst_33 = arith.constant 1.000000e+00 : f32
    %71 = vector.broadcast %cst_33 : f32 to vector<8x384xf32>
    %72 = arith.addf %71, %70 : vector<8x384xf32>
    %73 = arith.divf %71, %72 : vector<8x384xf32>
    %74 = vector.extract_strided_slice %67 {offsets = [0, 384], sizes = [8, 128], strides = [1, 1]} : vector<8x512xf32> to vector<8x128xf32>
    %75 = math.tanh %74 : vector<8x128xf32>
    %76 = vector.extract_strided_slice %73 {offsets = [0, 128], sizes = [8, 128], strides = [1, 1]} : vector<8x384xf32> to vector<8x128xf32>
    %77 = arith.mulf %76, %56 : vector<8x128xf32>
    %78 = vector.extract_strided_slice %73 {offsets = [0, 0], sizes = [8, 128], strides = [1, 1]} : vector<8x384xf32> to vector<8x128xf32>
    %79 = arith.mulf %78, %75 : vector<8x128xf32>
    %80 = arith.addf %77, %79 : vector<8x128xf32>
    %81 = vector.extract_strided_slice %73 {offsets = [0, 256], sizes = [8, 128], strides = [1, 1]} : vector<8x384xf32> to vector<8x128xf32>
    %82 = math.tanh %80 : vector<8x128xf32>
    %83 = arith.mulf %81, %82 : vector<8x128xf32>
    %c2_34 = arith.constant 2 : index
    %c0_35 = arith.constant 0 : index
    %c0_36 = arith.constant 0 : index
    %84 = vector.load %arg24[%c2_34, %c0_35, %c0_36] : memref<8x8x128xf32, #tpu.memory_space<vmem>>, vector<1x8x128xf32>
    %85 = vector.shape_cast %84 : vector<1x8x128xf32> to vector<8x128xf32>
    %86 = vector.shape_cast %83 : vector<8x128xf32> to vector<1x8x128xf32>
    tpu.vector_store %arg24[%c2_34, %c0_35, %c0_36], %86 {strides = array<i32>} : memref<8x8x128xf32, #tpu.memory_space<vmem>>, vector<1x8x128xf32>,
    %c3 = arith.constant 3 : index
    %c0_37 = arith.constant 0 : index
    %c0_38 = arith.constant 0 : index
    %87 = vector.load %arg25[%c3, %c0_37, %c0_38] : memref<8x8x512xf32, #tpu.memory_space<vmem>>, vector<1x8x512xf32>
    %88 = vector.shape_cast %87 : vector<1x8x512xf32> to vector<8x512xf32>
    %89 = arith.truncf %83 : vector<8x128xf32> to vector<8x128xbf16>
    %cst_39 = arith.constant dense<0.000000e+00> : vector<8x512xf32>
    %90 = tpu.matmul %89, %5, %cst_39 {dimension_numbers = #tpu.dot_dimension_numbers<[1], [0], [0], [1], [0, 0, 1, 1], [], []>} : vector<8x128xbf16>, vector<128x512xbf16>, vector<8x512xf32> -> vector<8x512xf32>
    %91 = arith.addf %88, %90 : vector<8x512xf32>
    %92 = vector.extract_strided_slice %91 {offsets = [0, 0], sizes = [8, 384], strides = [1, 1]} : vector<8x512xf32> to vector<8x384xf32>
    %93 = arith.negf %92 : vector<8x384xf32>
    %94 = math.exp %93 : vector<8x384xf32>
    %cst_40 = arith.constant 1.000000e+00 : f32
    %95 = vector.broadcast %cst_40 : f32 to vector<8x384xf32>
    %96 = arith.addf %95, %94 : vector<8x384xf32>
    %97 = arith.divf %95, %96 : vector<8x384xf32>
    %98 = vector.extract_strided_slice %91 {offsets = [0, 384], sizes = [8, 128], strides = [1, 1]} : vector<8x512xf32> to vector<8x128xf32>
    %99 = math.tanh %98 : vector<8x128xf32>
    %100 = vector.extract_strided_slice %97 {offsets = [0, 128], sizes = [8, 128], strides = [1, 1]} : vector<8x384xf32> to vector<8x128xf32>
    %101 = arith.mulf %100, %80 : vector<8x128xf32>
    %102 = vector.extract_strided_slice %97 {offsets = [0, 0], sizes = [8, 128], strides = [1, 1]} : vector<8x384xf32> to vector<8x128xf32>
    %103 = arith.mulf %102, %99 : vector<8x128xf32>
    %104 = arith.addf %101, %103 : vector<8x128xf32>
    %105 = vector.extract_strided_slice %97 {offsets = [0, 256], sizes = [8, 128], strides = [1, 1]} : vector<8x384xf32> to vector<8x128xf32>
    %106 = math.tanh %104 : vector<8x128xf32>
    %107 = arith.mulf %105, %106 : vector<8x128xf32>
    %c3_41 = arith.constant 3 : index
    %c0_42 = arith.constant 0 : index
    %c0_43 = arith.constant 0 : index
    %108 = vector.load %arg24[%c3_41, %c0_42, %c0_43] : memref<8x8x128xf32, #tpu.memory_space<vmem>>, vector<1x8x128xf32>
    %109 = vector.shape_cast %108 : vector<1x8x128xf32> to vector<8x128xf32>
    %110 = vector.shape_cast %107 : vector<8x128xf32> to vector<1x8x128xf32>
    tpu.vector_store %arg24[%c3_41, %c0_42, %c0_43], %110 {strides = array<i32>} : memref<8x8x128xf32, #tpu.memory_space<vmem>>, vector<1x8x128xf32>,
    %c4 = arith.constant 4 : index
    %c0_44 = arith.constant 0 : index
    %c0_45 = arith.constant 0 : index
    %111 = vector.load %arg25[%c4, %c0_44, %c0_45] : memref<8x8x512xf32, #tpu.memory_space<vmem>>, vector<1x8x512xf32>
    %112 = vector.shape_cast %111 : vector<1x8x512xf32> to vector<8x512xf32>
    %113 = arith.truncf %107 : vector<8x128xf32> to vector<8x128xbf16>
    %cst_46 = arith.constant dense<0.000000e+00> : vector<8x512xf32>
    %114 = tpu.matmul %113, %5, %cst_46 {dimension_numbers = #tpu.dot_dimension_numbers<[1], [0], [0], [1], [0, 0, 1, 1], [], []>} : vector<8x128xbf16>, vector<128x512xbf16>, vector<8x512xf32> -> vector<8x512xf32>
    %115 = arith.addf %112, %114 : vector<8x512xf32>
    %116 = vector.extract_strided_slice %115 {offsets = [0, 0], sizes = [8, 384], strides = [1, 1]} : vector<8x512xf32> to vector<8x384xf32>
    %117 = arith.negf %116 : vector<8x384xf32>
    %118 = math.exp %117 : vector<8x384xf32>
    %cst_47 = arith.constant 1.000000e+00 : f32
    %119 = vector.broadcast %cst_47 : f32 to vector<8x384xf32>
    %120 = arith.addf %119, %118 : vector<8x384xf32>
    %121 = arith.divf %119, %120 : vector<8x384xf32>
    %122 = vector.extract_strided_slice %115 {offsets = [0, 384], sizes = [8, 128], strides = [1, 1]} : vector<8x512xf32> to vector<8x128xf32>
    %123 = math.tanh %122 : vector<8x128xf32>
    %124 = vector.extract_strided_slice %121 {offsets = [0, 128], sizes = [8, 128], strides = [1, 1]} : vector<8x384xf32> to vector<8x128xf32>
    %125 = arith.mulf %124, %104 : vector<8x128xf32>
    %126 = vector.extract_strided_slice %121 {offsets = [0, 0], sizes = [8, 128], strides = [1, 1]} : vector<8x384xf32> to vector<8x128xf32>
    %127 = arith.mulf %126, %123 : vector<8x128xf32>
    %128 = arith.addf %125, %127 : vector<8x128xf32>
    %129 = vector.extract_strided_slice %121 {offsets = [0, 256], sizes = [8, 128], strides = [1, 1]} : vector<8x384xf32> to vector<8x128xf32>
    %130 = math.tanh %128 : vector<8x128xf32>
    %131 = arith.mulf %129, %130 : vector<8x128xf32>
    %c4_48 = arith.constant 4 : index
    %c0_49 = arith.constant 0 : index
    %c0_50 = arith.constant 0 : index
    %132 = vector.load %arg24[%c4_48, %c0_49, %c0_50] : memref<8x8x128xf32, #tpu.memory_space<vmem>>, vector<1x8x128xf32>
    %133 = vector.shape_cast %132 : vector<1x8x128xf32> to vector<8x128xf32>
    %134 = vector.shape_cast %131 : vector<8x128xf32> to vector<1x8x128xf32>
    tpu.vector_store %arg24[%c4_48, %c0_49, %c0_50], %134 {strides = array<i32>} : memref<8x8x128xf32, #tpu.memory_space<vmem>>, vector<1x8x128xf32>,
    %c5 = arith.constant 5 : index
    %c0_51 = arith.constant 0 : index
    %c0_52 = arith.constant 0 : index
    %135 = vector.load %arg25[%c5, %c0_51, %c0_52] : memref<8x8x512xf32, #tpu.memory_space<vmem>>, vector<1x8x512xf32>
    %136 = vector.shape_cast %135 : vector<1x8x512xf32> to vector<8x512xf32>
    %137 = arith.truncf %131 : vector<8x128xf32> to vector<8x128xbf16>
    %cst_53 = arith.constant dense<0.000000e+00> : vector<8x512xf32>
    %138 = tpu.matmul %137, %5, %cst_53 {dimension_numbers = #tpu.dot_dimension_numbers<[1], [0], [0], [1], [0, 0, 1, 1], [], []>} : vector<8x128xbf16>, vector<128x512xbf16>, vector<8x512xf32> -> vector<8x512xf32>
    %139 = arith.addf %136, %138 : vector<8x512xf32>
    %140 = vector.extract_strided_slice %139 {offsets = [0, 0], sizes = [8, 384], strides = [1, 1]} : vector<8x512xf32> to vector<8x384xf32>
    %141 = arith.negf %140 : vector<8x384xf32>
    %142 = math.exp %141 : vector<8x384xf32>
    %cst_54 = arith.constant 1.000000e+00 : f32
    %143 = vector.broadcast %cst_54 : f32 to vector<8x384xf32>
    %144 = arith.addf %143, %142 : vector<8x384xf32>
    %145 = arith.divf %143, %144 : vector<8x384xf32>
    %146 = vector.extract_strided_slice %139 {offsets = [0, 384], sizes = [8, 128], strides = [1, 1]} : vector<8x512xf32> to vector<8x128xf32>
    %147 = math.tanh %146 : vector<8x128xf32>
    %148 = vector.extract_strided_slice %145 {offsets = [0, 128], sizes = [8, 128], strides = [1, 1]} : vector<8x384xf32> to vector<8x128xf32>
    %149 = arith.mulf %148, %128 : vector<8x128xf32>
    %150 = vector.extract_strided_slice %145 {offsets = [0, 0], sizes = [8, 128], strides = [1, 1]} : vector<8x384xf32> to vector<8x128xf32>
    %151 = arith.mulf %150, %147 : vector<8x128xf32>
    %152 = arith.addf %149, %151 : vector<8x128xf32>
    %153 = vector.extract_strided_slice %145 {offsets = [0, 256], sizes = [8, 128], strides = [1, 1]} : vector<8x384xf32> to vector<8x128xf32>
    %154 = math.tanh %152 : vector<8x128xf32>
    %155 = arith.mulf %153, %154 : vector<8x128xf32>
    %c5_55 = arith.constant 5 : index
    %c0_56 = arith.constant 0 : index
    %c0_57 = arith.constant 0 : index
    %156 = vector.load %arg24[%c5_55, %c0_56, %c0_57] : memref<8x8x128xf32, #tpu.memory_space<vmem>>, vector<1x8x128xf32>
    %157 = vector.shape_cast %156 : vector<1x8x128xf32> to vector<8x128xf32>
    %158 = vector.shape_cast %155 : vector<8x128xf32> to vector<1x8x128xf32>
    tpu.vector_store %arg24[%c5_55, %c0_56, %c0_57], %158 {strides = array<i32>} : memref<8x8x128xf32, #tpu.memory_space<vmem>>, vector<1x8x128xf32>,
    %c6 = arith.constant 6 : index
    %c0_58 = arith.constant 0 : index
    %c0_59 = arith.constant 0 : index
    %159 = vector.load %arg25[%c6, %c0_58, %c0_59] : memref<8x8x512xf32, #tpu.memory_space<vmem>>, vector<1x8x512xf32>
    %160 = vector.shape_cast %159 : vector<1x8x512xf32> to vector<8x512xf32>
    %161 = arith.truncf %155 : vector<8x128xf32> to vector<8x128xbf16>
    %cst_60 = arith.constant dense<0.000000e+00> : vector<8x512xf32>
    %162 = tpu.matmul %161, %5, %cst_60 {dimension_numbers = #tpu.dot_dimension_numbers<[1], [0], [0], [1], [0, 0, 1, 1], [], []>} : vector<8x128xbf16>, vector<128x512xbf16>, vector<8x512xf32> -> vector<8x512xf32>
    %163 = arith.addf %160, %162 : vector<8x512xf32>
    %164 = vector.extract_strided_slice %163 {offsets = [0, 0], sizes = [8, 384], strides = [1, 1]} : vector<8x512xf32> to vector<8x384xf32>
    %165 = arith.negf %164 : vector<8x384xf32>
    %166 = math.exp %165 : vector<8x384xf32>
    %cst_61 = arith.constant 1.000000e+00 : f32
    %167 = vector.broadcast %cst_61 : f32 to vector<8x384xf32>
    %168 = arith.addf %167, %166 : vector<8x384xf32>
    %169 = arith.divf %167, %168 : vector<8x384xf32>
    %170 = vector.extract_strided_slice %163 {offsets = [0, 384], sizes = [8, 128], strides = [1, 1]} : vector<8x512xf32> to vector<8x128xf32>
    %171 = math.tanh %170 : vector<8x128xf32>
    %172 = vector.extract_strided_slice %169 {offsets = [0, 128], sizes = [8, 128], strides = [1, 1]} : vector<8x384xf32> to vector<8x128xf32>
    %173 = arith.mulf %172, %152 : vector<8x128xf32>
    %174 = vector.extract_strided_slice %169 {offsets = [0, 0], sizes = [8, 128], strides = [1, 1]} : vector<8x384xf32> to vector<8x128xf32>
    %175 = arith.mulf %174, %171 : vector<8x128xf32>
    %176 = arith.addf %173, %175 : vector<8x128xf32>
    %177 = vector.extract_strided_slice %169 {offsets = [0, 256], sizes = [8, 128], strides = [1, 1]} : vector<8x384xf32> to vector<8x128xf32>
    %178 = math.tanh %176 : vector<8x128xf32>
    %179 = arith.mulf %177, %178 : vector<8x128xf32>
    %c6_62 = arith.constant 6 : index
    %c0_63 = arith.constant 0 : index
    %c0_64 = arith.constant 0 : index
    %180 = vector.load %arg24[%c6_62, %c0_63, %c0_64] : memref<8x8x128xf32, #tpu.memory_space<vmem>>, vector<1x8x128xf32>
    %181 = vector.shape_cast %180 : vector<1x8x128xf32> to vector<8x128xf32>
    %182 = vector.shape_cast %179 : vector<8x128xf32> to vector<1x8x128xf32>
    tpu.vector_store %arg24[%c6_62, %c0_63, %c0_64], %182 {strides = array<i32>} : memref<8x8x128xf32, #tpu.memory_space<vmem>>, vector<1x8x128xf32>,
    %c7 = arith.constant 7 : index
    %c0_65 = arith.constant 0 : index
    %c0_66 = arith.constant 0 : index
    %183 = vector.load %arg25[%c7, %c0_65, %c0_66] : memref<8x8x512xf32, #tpu.memory_space<vmem>>, vector<1x8x512xf32>
    %184 = vector.shape_cast %183 : vector<1x8x512xf32> to vector<8x512xf32>
    %185 = arith.truncf %179 : vector<8x128xf32> to vector<8x128xbf16>
    %cst_67 = arith.constant dense<0.000000e+00> : vector<8x512xf32>
    %186 = tpu.matmul %185, %5, %cst_67 {dimension_numbers = #tpu.dot_dimension_numbers<[1], [0], [0], [1], [0, 0, 1, 1], [], []>} : vector<8x128xbf16>, vector<128x512xbf16>, vector<8x512xf32> -> vector<8x512xf32>
    %187 = arith.addf %184, %186 : vector<8x512xf32>
    %188 = vector.extract_strided_slice %187 {offsets = [0, 0], sizes = [8, 384], strides = [1, 1]} : vector<8x512xf32> to vector<8x384xf32>
    %189 = arith.negf %188 : vector<8x384xf32>
    %190 = math.exp %189 : vector<8x384xf32>
    %cst_68 = arith.constant 1.000000e+00 : f32
    %191 = vector.broadcast %cst_68 : f32 to vector<8x384xf32>
    %192 = arith.addf %191, %190 : vector<8x384xf32>
    %193 = arith.divf %191, %192 : vector<8x384xf32>
    %194 = vector.extract_strided_slice %187 {offsets = [0, 384], sizes = [8, 128], strides = [1, 1]} : vector<8x512xf32> to vector<8x128xf32>
    %195 = math.tanh %194 : vector<8x128xf32>
    %196 = vector.extract_strided_slice %193 {offsets = [0, 128], sizes = [8, 128], strides = [1, 1]} : vector<8x384xf32> to vector<8x128xf32>
    %197 = arith.mulf %196, %176 : vector<8x128xf32>
    %198 = vector.extract_strided_slice %193 {offsets = [0, 0], sizes = [8, 128], strides = [1, 1]} : vector<8x384xf32> to vector<8x128xf32>
    %199 = arith.mulf %198, %195 : vector<8x128xf32>
    %200 = arith.addf %197, %199 : vector<8x128xf32>
    %201 = vector.extract_strided_slice %193 {offsets = [0, 256], sizes = [8, 128], strides = [1, 1]} : vector<8x384xf32> to vector<8x128xf32>
    %202 = math.tanh %200 : vector<8x128xf32>
    %203 = arith.mulf %201, %202 : vector<8x128xf32>
    %c7_69 = arith.constant 7 : index
    %c0_70 = arith.constant 0 : index
    %c0_71 = arith.constant 0 : index
    %204 = vector.load %arg24[%c7_69, %c0_70, %c0_71] : memref<8x8x128xf32, #tpu.memory_space<vmem>>, vector<1x8x128xf32>
    %205 = vector.shape_cast %204 : vector<1x8x128xf32> to vector<8x128xf32>
    %206 = vector.shape_cast %203 : vector<8x128xf32> to vector<1x8x128xf32>
    tpu.vector_store %arg24[%c7_69, %c0_70, %c0_71], %206 {strides = array<i32>} : memref<8x8x128xf32, #tpu.memory_space<vmem>>, vector<1x8x128xf32>,
    %c1_i32 = arith.constant 1 : i32
    %c9_i32 = arith.constant 9 : i32
    %207 = arith.addi %c1_i32, %c9_i32 : i32
    %c1_i32_72 = arith.constant 1 : i32
    scf.for %arg26 = %c1_i32 to %207 step %c1_i32_72  : i32 {
      %c0_131 = arith.constant 0 : index
      %c0_132 = arith.constant 0 : index
      %c0_133 = arith.constant 0 : index
      %296 = vector.load %arg24[%c0_131, %c0_132, %c0_133] : memref<8x8x128xf32, #tpu.memory_space<vmem>>, vector<8x8x128xf32>
      %297 = vector.shape_cast %296 : vector<8x8x128xf32> to vector<64x128xf32>
      %298 = arith.truncf %297 : vector<64x128xf32> to vector<64x128xbf16>
      %c1_i32_134 = arith.constant 1 : i32
      %299 = arith.subi %arg26, %c1_i32_134 : i32
      %300 = arith.index_cast %299 : i32 to index
      %c0_135 = arith.constant 0 : index
      %c0_136 = arith.constant 0 : index
      %301 = vector.load %arg2[%300, %c0_135, %c0_136] : memref<9x128x512xbf16, #tpu.memory_space<vmem>>, vector<1x128x512xbf16>
      %302 = vector.shape_cast %301 : vector<1x128x512xbf16> to vector<128x512xbf16>
      %303 = arith.index_cast %arg26 : i32 to index
      %c0_137 = arith.constant 0 : index
      %c0_138 = arith.constant 0 : index
      %304 = vector.load %arg3[%303, %c0_137, %c0_138] : memref<10x128x512xbf16, #tpu.memory_space<vmem>>, vector<1x128x512xbf16>
      %305 = vector.shape_cast %304 : vector<1x128x512xbf16> to vector<128x512xbf16>
      %306 = arith.index_cast %arg26 : i32 to index
      %c0_139 = arith.constant 0 : index
      %c0_140 = arith.constant 0 : index
      %307 = vector.load %arg4[%306, %c0_139, %c0_140] : memref<10x1x512xf32, #tpu.memory_space<vmem>>, vector<1x1x512xf32>
      %308 = vector.shape_cast %307 : vector<1x1x512xf32> to vector<1x512xf32>
      %cst_141 = arith.constant dense<0.000000e+00> : vector<64x512xf32>
      %309 = tpu.matmul %298, %302, %cst_141 {dimension_numbers = #tpu.dot_dimension_numbers<[1], [0], [0], [1], [0, 0, 1, 1], [], []>} : vector<64x128xbf16>, vector<128x512xbf16>, vector<64x512xf32> -> vector<64x512xf32>
      %310 = vector.broadcast %308 : vector<1x512xf32> to vector<64x512xf32>
      %311 = arith.addf %309, %310 : vector<64x512xf32>
      %312 = vector.shape_cast %311 : vector<64x512xf32> to vector<8x8x512xf32>
      %c0_142 = arith.constant 0 : index
      %c0_143 = arith.constant 0 : index
      %c0_144 = arith.constant 0 : index
      %313 = vector.load %arg25[%c0_142, %c0_143, %c0_144] : memref<8x8x512xf32, #tpu.memory_space<vmem>>, vector<8x8x512xf32>
      tpu.vector_store %arg25[%c0_142, %c0_143, %c0_144], %312 {strides = array<i32>} : memref<8x8x512xf32, #tpu.memory_space<vmem>>, vector<8x8x512xf32>,
      %cst_145 = arith.constant 0.000000e+00 : f32
      %314 = vector.broadcast %cst_145 : f32 to vector<8x128xf32>
      %cst_146 = arith.constant 0.000000e+00 : f32
      %315 = vector.broadcast %cst_146 : f32 to vector<8x128xf32>
      %c0_147 = arith.constant 0 : index
      %c0_148 = arith.constant 0 : index
      %c0_149 = arith.constant 0 : index
      %316 = vector.load %arg25[%c0_147, %c0_148, %c0_149] : memref<8x8x512xf32, #tpu.memory_space<vmem>>, vector<1x8x512xf32>
      %317 = vector.shape_cast %316 : vector<1x8x512xf32> to vector<8x512xf32>
      %318 = arith.truncf %314 : vector<8x128xf32> to vector<8x128xbf16>
      %cst_150 = arith.constant dense<0.000000e+00> : vector<8x512xf32>
      %319 = tpu.matmul %318, %305, %cst_150 {dimension_numbers = #tpu.dot_dimension_numbers<[1], [0], [0], [1], [0, 0, 1, 1], [], []>} : vector<8x128xbf16>, vector<128x512xbf16>, vector<8x512xf32> -> vector<8x512xf32>
      %320 = arith.addf %317, %319 : vector<8x512xf32>
      %321 = vector.extract_strided_slice %320 {offsets = [0, 0], sizes = [8, 384], strides = [1, 1]} : vector<8x512xf32> to vector<8x384xf32>
      %322 = arith.negf %321 : vector<8x384xf32>
      %323 = math.exp %322 : vector<8x384xf32>
      %cst_151 = arith.constant 1.000000e+00 : f32
      %324 = vector.broadcast %cst_151 : f32 to vector<8x384xf32>
      %325 = arith.addf %324, %323 : vector<8x384xf32>
      %326 = arith.divf %324, %325 : vector<8x384xf32>
      %327 = vector.extract_strided_slice %320 {offsets = [0, 384], sizes = [8, 128], strides = [1, 1]} : vector<8x512xf32> to vector<8x128xf32>
      %328 = math.tanh %327 : vector<8x128xf32>
      %329 = vector.extract_strided_slice %326 {offsets = [0, 128], sizes = [8, 128], strides = [1, 1]} : vector<8x384xf32> to vector<8x128xf32>
      %330 = arith.mulf %329, %315 : vector<8x128xf32>
      %331 = vector.extract_strided_slice %326 {offsets = [0, 0], sizes = [8, 128], strides = [1, 1]} : vector<8x384xf32> to vector<8x128xf32>
      %332 = arith.mulf %331, %328 : vector<8x128xf32>
      %333 = arith.addf %330, %332 : vector<8x128xf32>
      %334 = vector.extract_strided_slice %326 {offsets = [0, 256], sizes = [8, 128], strides = [1, 1]} : vector<8x384xf32> to vector<8x128xf32>
      %335 = math.tanh %333 : vector<8x128xf32>
      %336 = arith.mulf %334, %335 : vector<8x128xf32>
      %c0_152 = arith.constant 0 : index
      %c0_153 = arith.constant 0 : index
      %c0_154 = arith.constant 0 : index
      %337 = vector.load %arg24[%c0_152, %c0_153, %c0_154] : memref<8x8x128xf32, #tpu.memory_space<vmem>>, vector<1x8x128xf32>
      %338 = vector.shape_cast %337 : vector<1x8x128xf32> to vector<8x128xf32>
      %339 = vector.shape_cast %336 : vector<8x128xf32> to vector<1x8x128xf32>
      tpu.vector_store %arg24[%c0_152, %c0_153, %c0_154], %339 {strides = array<i32>} : memref<8x8x128xf32, #tpu.memory_space<vmem>>, vector<1x8x128xf32>,
      %c1_155 = arith.constant 1 : index
      %c0_156 = arith.constant 0 : index
      %c0_157 = arith.constant 0 : index
      %340 = vector.load %arg25[%c1_155, %c0_156, %c0_157] : memref<8x8x512xf32, #tpu.memory_space<vmem>>, vector<1x8x512xf32>
      %341 = vector.shape_cast %340 : vector<1x8x512xf32> to vector<8x512xf32>
      %342 = arith.truncf %336 : vector<8x128xf32> to vector<8x128xbf16>
      %cst_158 = arith.constant dense<0.000000e+00> : vector<8x512xf32>
      %343 = tpu.matmul %342, %305, %cst_158 {dimension_numbers = #tpu.dot_dimension_numbers<[1], [0], [0], [1], [0, 0, 1, 1], [], []>} : vector<8x128xbf16>, vector<128x512xbf16>, vector<8x512xf32> -> vector<8x512xf32>
      %344 = arith.addf %341, %343 : vector<8x512xf32>
      %345 = vector.extract_strided_slice %344 {offsets = [0, 0], sizes = [8, 384], strides = [1, 1]} : vector<8x512xf32> to vector<8x384xf32>
      %346 = arith.negf %345 : vector<8x384xf32>
      %347 = math.exp %346 : vector<8x384xf32>
      %cst_159 = arith.constant 1.000000e+00 : f32
      %348 = vector.broadcast %cst_159 : f32 to vector<8x384xf32>
      %349 = arith.addf %348, %347 : vector<8x384xf32>
      %350 = arith.divf %348, %349 : vector<8x384xf32>
      %351 = vector.extract_strided_slice %344 {offsets = [0, 384], sizes = [8, 128], strides = [1, 1]} : vector<8x512xf32> to vector<8x128xf32>
      %352 = math.tanh %351 : vector<8x128xf32>
      %353 = vector.extract_strided_slice %350 {offsets = [0, 128], sizes = [8, 128], strides = [1, 1]} : vector<8x384xf32> to vector<8x128xf32>
      %354 = arith.mulf %353, %333 : vector<8x128xf32>
      %355 = vector.extract_strided_slice %350 {offsets = [0, 0], sizes = [8, 128], strides = [1, 1]} : vector<8x384xf32> to vector<8x128xf32>
      %356 = arith.mulf %355, %352 : vector<8x128xf32>
      %357 = arith.addf %354, %356 : vector<8x128xf32>
      %358 = vector.extract_strided_slice %350 {offsets = [0, 256], sizes = [8, 128], strides = [1, 1]} : vector<8x384xf32> to vector<8x128xf32>
      %359 = math.tanh %357 : vector<8x128xf32>
      %360 = arith.mulf %358, %359 : vector<8x128xf32>
      %c1_160 = arith.constant 1 : index
      %c0_161 = arith.constant 0 : index
      %c0_162 = arith.constant 0 : index
      %361 = vector.load %arg24[%c1_160, %c0_161, %c0_162] : memref<8x8x128xf32, #tpu.memory_space<vmem>>, vector<1x8x128xf32>
      %362 = vector.shape_cast %361 : vector<1x8x128xf32> to vector<8x128xf32>
      %363 = vector.shape_cast %360 : vector<8x128xf32> to vector<1x8x128xf32>
      tpu.vector_store %arg24[%c1_160, %c0_161, %c0_162], %363 {strides = array<i32>} : memref<8x8x128xf32, #tpu.memory_space<vmem>>, vector<1x8x128xf32>,
      %c2_163 = arith.constant 2 : index
      %c0_164 = arith.constant 0 : index
      %c0_165 = arith.constant 0 : index
      %364 = vector.load %arg25[%c2_163, %c0_164, %c0_165] : memref<8x8x512xf32, #tpu.memory_space<vmem>>, vector<1x8x512xf32>
      %365 = vector.shape_cast %364 : vector<1x8x512xf32> to vector<8x512xf32>
      %366 = arith.truncf %360 : vector<8x128xf32> to vector<8x128xbf16>
      %cst_166 = arith.constant dense<0.000000e+00> : vector<8x512xf32>
      %367 = tpu.matmul %366, %305, %cst_166 {dimension_numbers = #tpu.dot_dimension_numbers<[1], [0], [0], [1], [0, 0, 1, 1], [], []>} : vector<8x128xbf16>, vector<128x512xbf16>, vector<8x512xf32> -> vector<8x512xf32>
      %368 = arith.addf %365, %367 : vector<8x512xf32>
      %369 = vector.extract_strided_slice %368 {offsets = [0, 0], sizes = [8, 384], strides = [1, 1]} : vector<8x512xf32> to vector<8x384xf32>
      %370 = arith.negf %369 : vector<8x384xf32>
      %371 = math.exp %370 : vector<8x384xf32>
      %cst_167 = arith.constant 1.000000e+00 : f32
      %372 = vector.broadcast %cst_167 : f32 to vector<8x384xf32>
      %373 = arith.addf %372, %371 : vector<8x384xf32>
      %374 = arith.divf %372, %373 : vector<8x384xf32>
      %375 = vector.extract_strided_slice %368 {offsets = [0, 384], sizes = [8, 128], strides = [1, 1]} : vector<8x512xf32> to vector<8x128xf32>
      %376 = math.tanh %375 : vector<8x128xf32>
      %377 = vector.extract_strided_slice %374 {offsets = [0, 128], sizes = [8, 128], strides = [1, 1]} : vector<8x384xf32> to vector<8x128xf32>
      %378 = arith.mulf %377, %357 : vector<8x128xf32>
      %379 = vector.extract_strided_slice %374 {offsets = [0, 0], sizes = [8, 128], strides = [1, 1]} : vector<8x384xf32> to vector<8x128xf32>
      %380 = arith.mulf %379, %376 : vector<8x128xf32>
      %381 = arith.addf %378, %380 : vector<8x128xf32>
      %382 = vector.extract_strided_slice %374 {offsets = [0, 256], sizes = [8, 128], strides = [1, 1]} : vector<8x384xf32> to vector<8x128xf32>
      %383 = math.tanh %381 : vector<8x128xf32>
      %384 = arith.mulf %382, %383 : vector<8x128xf32>
      %c2_168 = arith.constant 2 : index
      %c0_169 = arith.constant 0 : index
      %c0_170 = arith.constant 0 : index
      %385 = vector.load %arg24[%c2_168, %c0_169, %c0_170] : memref<8x8x128xf32, #tpu.memory_space<vmem>>, vector<1x8x128xf32>
      %386 = vector.shape_cast %385 : vector<1x8x128xf32> to vector<8x128xf32>
      %387 = vector.shape_cast %384 : vector<8x128xf32> to vector<1x8x128xf32>
      tpu.vector_store %arg24[%c2_168, %c0_169, %c0_170], %387 {strides = array<i32>} : memref<8x8x128xf32, #tpu.memory_space<vmem>>, vector<1x8x128xf32>,
      %c3_171 = arith.constant 3 : index
      %c0_172 = arith.constant 0 : index
      %c0_173 = arith.constant 0 : index
      %388 = vector.load %arg25[%c3_171, %c0_172, %c0_173] : memref<8x8x512xf32, #tpu.memory_space<vmem>>, vector<1x8x512xf32>
      %389 = vector.shape_cast %388 : vector<1x8x512xf32> to vector<8x512xf32>
      %390 = arith.truncf %384 : vector<8x128xf32> to vector<8x128xbf16>
      %cst_174 = arith.constant dense<0.000000e+00> : vector<8x512xf32>
      %391 = tpu.matmul %390, %305, %cst_174 {dimension_numbers = #tpu.dot_dimension_numbers<[1], [0], [0], [1], [0, 0, 1, 1], [], []>} : vector<8x128xbf16>, vector<128x512xbf16>, vector<8x512xf32> -> vector<8x512xf32>
      %392 = arith.addf %389, %391 : vector<8x512xf32>
      %393 = vector.extract_strided_slice %392 {offsets = [0, 0], sizes = [8, 384], strides = [1, 1]} : vector<8x512xf32> to vector<8x384xf32>
      %394 = arith.negf %393 : vector<8x384xf32>
      %395 = math.exp %394 : vector<8x384xf32>
      %cst_175 = arith.constant 1.000000e+00 : f32
      %396 = vector.broadcast %cst_175 : f32 to vector<8x384xf32>
      %397 = arith.addf %396, %395 : vector<8x384xf32>
      %398 = arith.divf %396, %397 : vector<8x384xf32>
      %399 = vector.extract_strided_slice %392 {offsets = [0, 384], sizes = [8, 128], strides = [1, 1]} : vector<8x512xf32> to vector<8x128xf32>
      %400 = math.tanh %399 : vector<8x128xf32>
      %401 = vector.extract_strided_slice %398 {offsets = [0, 128], sizes = [8, 128], strides = [1, 1]} : vector<8x384xf32> to vector<8x128xf32>
      %402 = arith.mulf %401, %381 : vector<8x128xf32>
      %403 = vector.extract_strided_slice %398 {offsets = [0, 0], sizes = [8, 128], strides = [1, 1]} : vector<8x384xf32> to vector<8x128xf32>
      %404 = arith.mulf %403, %400 : vector<8x128xf32>
      %405 = arith.addf %402, %404 : vector<8x128xf32>
      %406 = vector.extract_strided_slice %398 {offsets = [0, 256], sizes = [8, 128], strides = [1, 1]} : vector<8x384xf32> to vector<8x128xf32>
      %407 = math.tanh %405 : vector<8x128xf32>
      %408 = arith.mulf %406, %407 : vector<8x128xf32>
      %c3_176 = arith.constant 3 : index
      %c0_177 = arith.constant 0 : index
      %c0_178 = arith.constant 0 : index
      %409 = vector.load %arg24[%c3_176, %c0_177, %c0_178] : memref<8x8x128xf32, #tpu.memory_space<vmem>>, vector<1x8x128xf32>
      %410 = vector.shape_cast %409 : vector<1x8x128xf32> to vector<8x128xf32>
      %411 = vector.shape_cast %408 : vector<8x128xf32> to vector<1x8x128xf32>
      tpu.vector_store %arg24[%c3_176, %c0_177, %c0_178], %411 {strides = array<i32>} : memref<8x8x128xf32, #tpu.memory_space<vmem>>, vector<1x8x128xf32>,
      %c4_179 = arith.constant 4 : index
      %c0_180 = arith.constant 0 : index
      %c0_181 = arith.constant 0 : index
      %412 = vector.load %arg25[%c4_179, %c0_180, %c0_181] : memref<8x8x512xf32, #tpu.memory_space<vmem>>, vector<1x8x512xf32>
      %413 = vector.shape_cast %412 : vector<1x8x512xf32> to vector<8x512xf32>
      %414 = arith.truncf %408 : vector<8x128xf32> to vector<8x128xbf16>
      %cst_182 = arith.constant dense<0.000000e+00> : vector<8x512xf32>
      %415 = tpu.matmul %414, %305, %cst_182 {dimension_numbers = #tpu.dot_dimension_numbers<[1], [0], [0], [1], [0, 0, 1, 1], [], []>} : vector<8x128xbf16>, vector<128x512xbf16>, vector<8x512xf32> -> vector<8x512xf32>
      %416 = arith.addf %413, %415 : vector<8x512xf32>
      %417 = vector.extract_strided_slice %416 {offsets = [0, 0], sizes = [8, 384], strides = [1, 1]} : vector<8x512xf32> to vector<8x384xf32>
      %418 = arith.negf %417 : vector<8x384xf32>
      %419 = math.exp %418 : vector<8x384xf32>
      %cst_183 = arith.constant 1.000000e+00 : f32
      %420 = vector.broadcast %cst_183 : f32 to vector<8x384xf32>
      %421 = arith.addf %420, %419 : vector<8x384xf32>
      %422 = arith.divf %420, %421 : vector<8x384xf32>
      %423 = vector.extract_strided_slice %416 {offsets = [0, 384], sizes = [8, 128], strides = [1, 1]} : vector<8x512xf32> to vector<8x128xf32>
      %424 = math.tanh %423 : vector<8x128xf32>
      %425 = vector.extract_strided_slice %422 {offsets = [0, 128], sizes = [8, 128], strides = [1, 1]} : vector<8x384xf32> to vector<8x128xf32>
      %426 = arith.mulf %425, %405 : vector<8x128xf32>
      %427 = vector.extract_strided_slice %422 {offsets = [0, 0], sizes = [8, 128], strides = [1, 1]} : vector<8x384xf32> to vector<8x128xf32>
      %428 = arith.mulf %427, %424 : vector<8x128xf32>
      %429 = arith.addf %426, %428 : vector<8x128xf32>
      %430 = vector.extract_strided_slice %422 {offsets = [0, 256], sizes = [8, 128], strides = [1, 1]} : vector<8x384xf32> to vector<8x128xf32>
      %431 = math.tanh %429 : vector<8x128xf32>
      %432 = arith.mulf %430, %431 : vector<8x128xf32>
      %c4_184 = arith.constant 4 : index
      %c0_185 = arith.constant 0 : index
      %c0_186 = arith.constant 0 : index
      %433 = vector.load %arg24[%c4_184, %c0_185, %c0_186] : memref<8x8x128xf32, #tpu.memory_space<vmem>>, vector<1x8x128xf32>
      %434 = vector.shape_cast %433 : vector<1x8x128xf32> to vector<8x128xf32>
      %435 = vector.shape_cast %432 : vector<8x128xf32> to vector<1x8x128xf32>
      tpu.vector_store %arg24[%c4_184, %c0_185, %c0_186], %435 {strides = array<i32>} : memref<8x8x128xf32, #tpu.memory_space<vmem>>, vector<1x8x128xf32>,
      %c5_187 = arith.constant 5 : index
      %c0_188 = arith.constant 0 : index
      %c0_189 = arith.constant 0 : index
      %436 = vector.load %arg25[%c5_187, %c0_188, %c0_189] : memref<8x8x512xf32, #tpu.memory_space<vmem>>, vector<1x8x512xf32>
      %437 = vector.shape_cast %436 : vector<1x8x512xf32> to vector<8x512xf32>
      %438 = arith.truncf %432 : vector<8x128xf32> to vector<8x128xbf16>
      %cst_190 = arith.constant dense<0.000000e+00> : vector<8x512xf32>
      %439 = tpu.matmul %438, %305, %cst_190 {dimension_numbers = #tpu.dot_dimension_numbers<[1], [0], [0], [1], [0, 0, 1, 1], [], []>} : vector<8x128xbf16>, vector<128x512xbf16>, vector<8x512xf32> -> vector<8x512xf32>
      %440 = arith.addf %437, %439 : vector<8x512xf32>
      %441 = vector.extract_strided_slice %440 {offsets = [0, 0], sizes = [8, 384], strides = [1, 1]} : vector<8x512xf32> to vector<8x384xf32>
      %442 = arith.negf %441 : vector<8x384xf32>
      %443 = math.exp %442 : vector<8x384xf32>
      %cst_191 = arith.constant 1.000000e+00 : f32
      %444 = vector.broadcast %cst_191 : f32 to vector<8x384xf32>
      %445 = arith.addf %444, %443 : vector<8x384xf32>
      %446 = arith.divf %444, %445 : vector<8x384xf32>
      %447 = vector.extract_strided_slice %440 {offsets = [0, 384], sizes = [8, 128], strides = [1, 1]} : vector<8x512xf32> to vector<8x128xf32>
      %448 = math.tanh %447 : vector<8x128xf32>
      %449 = vector.extract_strided_slice %446 {offsets = [0, 128], sizes = [8, 128], strides = [1, 1]} : vector<8x384xf32> to vector<8x128xf32>
      %450 = arith.mulf %449, %429 : vector<8x128xf32>
      %451 = vector.extract_strided_slice %446 {offsets = [0, 0], sizes = [8, 128], strides = [1, 1]} : vector<8x384xf32> to vector<8x128xf32>
      %452 = arith.mulf %451, %448 : vector<8x128xf32>
      %453 = arith.addf %450, %452 : vector<8x128xf32>
      %454 = vector.extract_strided_slice %446 {offsets = [0, 256], sizes = [8, 128], strides = [1, 1]} : vector<8x384xf32> to vector<8x128xf32>
      %455 = math.tanh %453 : vector<8x128xf32>
      %456 = arith.mulf %454, %455 : vector<8x128xf32>
      %c5_192 = arith.constant 5 : index
      %c0_193 = arith.constant 0 : index
      %c0_194 = arith.constant 0 : index
      %457 = vector.load %arg24[%c5_192, %c0_193, %c0_194] : memref<8x8x128xf32, #tpu.memory_space<vmem>>, vector<1x8x128xf32>
      %458 = vector.shape_cast %457 : vector<1x8x128xf32> to vector<8x128xf32>
      %459 = vector.shape_cast %456 : vector<8x128xf32> to vector<1x8x128xf32>
      tpu.vector_store %arg24[%c5_192, %c0_193, %c0_194], %459 {strides = array<i32>} : memref<8x8x128xf32, #tpu.memory_space<vmem>>, vector<1x8x128xf32>,
      %c6_195 = arith.constant 6 : index
      %c0_196 = arith.constant 0 : index
      %c0_197 = arith.constant 0 : index
      %460 = vector.load %arg25[%c6_195, %c0_196, %c0_197] : memref<8x8x512xf32, #tpu.memory_space<vmem>>, vector<1x8x512xf32>
      %461 = vector.shape_cast %460 : vector<1x8x512xf32> to vector<8x512xf32>
      %462 = arith.truncf %456 : vector<8x128xf32> to vector<8x128xbf16>
      %cst_198 = arith.constant dense<0.000000e+00> : vector<8x512xf32>
      %463 = tpu.matmul %462, %305, %cst_198 {dimension_numbers = #tpu.dot_dimension_numbers<[1], [0], [0], [1], [0, 0, 1, 1], [], []>} : vector<8x128xbf16>, vector<128x512xbf16>, vector<8x512xf32> -> vector<8x512xf32>
      %464 = arith.addf %461, %463 : vector<8x512xf32>
      %465 = vector.extract_strided_slice %464 {offsets = [0, 0], sizes = [8, 384], strides = [1, 1]} : vector<8x512xf32> to vector<8x384xf32>
      %466 = arith.negf %465 : vector<8x384xf32>
      %467 = math.exp %466 : vector<8x384xf32>
      %cst_199 = arith.constant 1.000000e+00 : f32
      %468 = vector.broadcast %cst_199 : f32 to vector<8x384xf32>
      %469 = arith.addf %468, %467 : vector<8x384xf32>
      %470 = arith.divf %468, %469 : vector<8x384xf32>
      %471 = vector.extract_strided_slice %464 {offsets = [0, 384], sizes = [8, 128], strides = [1, 1]} : vector<8x512xf32> to vector<8x128xf32>
      %472 = math.tanh %471 : vector<8x128xf32>
      %473 = vector.extract_strided_slice %470 {offsets = [0, 128], sizes = [8, 128], strides = [1, 1]} : vector<8x384xf32> to vector<8x128xf32>
      %474 = arith.mulf %473, %453 : vector<8x128xf32>
      %475 = vector.extract_strided_slice %470 {offsets = [0, 0], sizes = [8, 128], strides = [1, 1]} : vector<8x384xf32> to vector<8x128xf32>
      %476 = arith.mulf %475, %472 : vector<8x128xf32>
      %477 = arith.addf %474, %476 : vector<8x128xf32>
      %478 = vector.extract_strided_slice %470 {offsets = [0, 256], sizes = [8, 128], strides = [1, 1]} : vector<8x384xf32> to vector<8x128xf32>
      %479 = math.tanh %477 : vector<8x128xf32>
      %480 = arith.mulf %478, %479 : vector<8x128xf32>
      %c6_200 = arith.constant 6 : index
      %c0_201 = arith.constant 0 : index
      %c0_202 = arith.constant 0 : index
      %481 = vector.load %arg24[%c6_200, %c0_201, %c0_202] : memref<8x8x128xf32, #tpu.memory_space<vmem>>, vector<1x8x128xf32>
      %482 = vector.shape_cast %481 : vector<1x8x128xf32> to vector<8x128xf32>
      %483 = vector.shape_cast %480 : vector<8x128xf32> to vector<1x8x128xf32>
      tpu.vector_store %arg24[%c6_200, %c0_201, %c0_202], %483 {strides = array<i32>} : memref<8x8x128xf32, #tpu.memory_space<vmem>>, vector<1x8x128xf32>,
      %c7_203 = arith.constant 7 : index
      %c0_204 = arith.constant 0 : index
      %c0_205 = arith.constant 0 : index
      %484 = vector.load %arg25[%c7_203, %c0_204, %c0_205] : memref<8x8x512xf32, #tpu.memory_space<vmem>>, vector<1x8x512xf32>
      %485 = vector.shape_cast %484 : vector<1x8x512xf32> to vector<8x512xf32>
      %486 = arith.truncf %480 : vector<8x128xf32> to vector<8x128xbf16>
      %cst_206 = arith.constant dense<0.000000e+00> : vector<8x512xf32>
      %487 = tpu.matmul %486, %305, %cst_206 {dimension_numbers = #tpu.dot_dimension_numbers<[1], [0], [0], [1], [0, 0, 1, 1], [], []>} : vector<8x128xbf16>, vector<128x512xbf16>, vector<8x512xf32> -> vector<8x512xf32>
      %488 = arith.addf %485, %487 : vector<8x512xf32>
      %489 = vector.extract_strided_slice %488 {offsets = [0, 0], sizes = [8, 384], strides = [1, 1]} : vector<8x512xf32> to vector<8x384xf32>
      %490 = arith.negf %489 : vector<8x384xf32>
      %491 = math.exp %490 : vector<8x384xf32>
      %cst_207 = arith.constant 1.000000e+00 : f32
      %492 = vector.broadcast %cst_207 : f32 to vector<8x384xf32>
      %493 = arith.addf %492, %491 : vector<8x384xf32>
      %494 = arith.divf %492, %493 : vector<8x384xf32>
      %495 = vector.extract_strided_slice %488 {offsets = [0, 384], sizes = [8, 128], strides = [1, 1]} : vector<8x512xf32> to vector<8x128xf32>
      %496 = math.tanh %495 : vector<8x128xf32>
      %497 = vector.extract_strided_slice %494 {offsets = [0, 128], sizes = [8, 128], strides = [1, 1]} : vector<8x384xf32> to vector<8x128xf32>
      %498 = arith.mulf %497, %477 : vector<8x128xf32>
      %499 = vector.extract_strided_slice %494 {offsets = [0, 0], sizes = [8, 128], strides = [1, 1]} : vector<8x384xf32> to vector<8x128xf32>
      %500 = arith.mulf %499, %496 : vector<8x128xf32>
      %501 = arith.addf %498, %500 : vector<8x128xf32>
      %502 = vector.extract_strided_slice %494 {offsets = [0, 256], sizes = [8, 128], strides = [1, 1]} : vector<8x384xf32> to vector<8x128xf32>
      %503 = math.tanh %501 : vector<8x128xf32>
      %504 = arith.mulf %502, %503 : vector<8x128xf32>
      %c7_208 = arith.constant 7 : index
      %c0_209 = arith.constant 0 : index
      %c0_210 = arith.constant 0 : index
      %505 = vector.load %arg24[%c7_208, %c0_209, %c0_210] : memref<8x8x128xf32, #tpu.memory_space<vmem>>, vector<1x8x128xf32>
      %506 = vector.shape_cast %505 : vector<1x8x128xf32> to vector<8x128xf32>
      %507 = vector.shape_cast %504 : vector<8x128xf32> to vector<1x8x128xf32>
      tpu.vector_store %arg24[%c7_208, %c0_209, %c0_210], %507 {strides = array<i32>} : memref<8x8x128xf32, #tpu.memory_space<vmem>>, vector<1x8x128xf32>,
    }
    %c9_i32_73 = arith.constant 9 : i32
    %c7_74 = arith.constant 7 : index
    %c0_75 = arith.constant 0 : index
    %c0_76 = arith.constant 0 : index
    %208 = vector.load %arg24[%c7_74, %c0_75, %c0_76] : memref<8x8x128xf32, #tpu.memory_space<vmem>>, vector<1x8x128xf32>
    %209 = vector.shape_cast %208 : vector<1x8x128xf32> to vector<8x128xf32>
    %210 = arith.truncf %209 : vector<8x128xf32> to vector<8x128xbf16>
    %c0_77 = arith.constant 0 : index
    %c0_78 = arith.constant 0 : index
    %211 = vector.load %arg5[%c0_77, %c0_78] : memref<128x128xbf16, #tpu.memory_space<vmem>>, vector<128x128xbf16>
    %cst_79 = arith.constant dense<0.000000e+00> : vector<8x128xf32>
    %212 = tpu.matmul %210, %211, %cst_79 {dimension_numbers = #tpu.dot_dimension_numbers<[1], [0], [0], [1], [0, 0, 1, 1], [], []>} : vector<8x128xbf16>, vector<128x128xbf16>, vector<8x128xf32> -> vector<8x128xf32>
    %c0_80 = arith.constant 0 : index
    %c0_81 = arith.constant 0 : index
    %213 = vector.load %arg6[%c0_80, %c0_81] : memref<1x128xf32, #tpu.memory_space<vmem>>, vector<1x128xf32>
    %214 = vector.broadcast %213 : vector<1x128xf32> to vector<8x128xf32>
    %215 = arith.addf %212, %214 : vector<8x128xf32>
    %cst_82 = arith.constant 0.000000e+00 : f32
    %216 = vector.broadcast %cst_82 : f32 to vector<8x128xf32>
    %217 = arith.maximumf %215, %216 : vector<8x128xf32>
    %218 = arith.truncf %217 : vector<8x128xf32> to vector<8x128xbf16>
    %c0_83 = arith.constant 0 : index
    %c0_84 = arith.constant 0 : index
    %219 = vector.load %arg7[%c0_83, %c0_84] : memref<128x64xbf16, #tpu.memory_space<vmem>>, vector<128x64xbf16>
    %cst_85 = arith.constant dense<0.000000e+00> : vector<8x64xf32>
    %220 = tpu.matmul %218, %219, %cst_85 {dimension_numbers = #tpu.dot_dimension_numbers<[1], [0], [0], [1], [0, 0, 1, 1], [], []>} : vector<8x128xbf16>, vector<128x64xbf16>, vector<8x64xf32> -> vector<8x64xf32>
    %c0_86 = arith.constant 0 : index
    %c0_87 = arith.constant 0 : index
    %221 = vector.load %arg8[%c0_86, %c0_87] : memref<1x64xf32, #tpu.memory_space<vmem>>, vector<1x64xf32>
    %222 = vector.broadcast %221 : vector<1x64xf32> to vector<8x64xf32>
    %223 = arith.addf %220, %222 : vector<8x64xf32>
    %cst_88 = arith.constant 0.000000e+00 : f32
    %224 = vector.broadcast %cst_88 : f32 to vector<8x64xf32>
    %225 = arith.maximumf %223, %224 : vector<8x64xf32>
    %226 = arith.truncf %225 : vector<8x64xf32> to vector<8x64xbf16>
    %c0_89 = arith.constant 0 : index
    %c0_90 = arith.constant 0 : index
    %227 = vector.load %arg9[%c0_89, %c0_90] : memref<64x64xbf16, #tpu.memory_space<vmem>>, vector<64x64xbf16>
    %cst_91 = arith.constant dense<0.000000e+00> : vector<8x64xf32>
    %228 = tpu.matmul %226, %227, %cst_91 {dimension_numbers = #tpu.dot_dimension_numbers<[1], [0], [0], [1], [0, 0, 1, 1], [], []>} : vector<8x64xbf16>, vector<64x64xbf16>, vector<8x64xf32> -> vector<8x64xf32>
    %c0_92 = arith.constant 0 : index
    %c0_93 = arith.constant 0 : index
    %229 = vector.load %arg10[%c0_92, %c0_93] : memref<1x64xf32, #tpu.memory_space<vmem>>, vector<1x64xf32>
    %230 = vector.broadcast %229 : vector<1x64xf32> to vector<8x64xf32>
    %231 = arith.addf %228, %230 : vector<8x64xf32>
    %232 = tpu.iota {dimensions = array<i32: 1>} : vector<8x64xi32>
    %c32_i32 = arith.constant 32 : i32
    %233 = vector.broadcast %c32_i32 : i32 to vector<8x64xi32>
    %234 = arith.cmpi sge, %232, %233 : vector<8x64xi32>
    %c48_i32 = arith.constant 48 : i32
    %235 = vector.broadcast %c48_i32 : i32 to vector<8x64xi32>
    %236 = arith.cmpi slt, %232, %235 : vector<8x64xi32>
    %237 = arith.andi %234, %236 : vector<8x64xi1>
    %238 = math.exp %231 : vector<8x64xf32>
    %239 = arith.select %237, %238, %231 : vector<8x64xi1>, vector<8x64xf32>
    %c0_94 = arith.constant 0 : index
    %c0_95 = arith.constant 0 : index
    %240 = vector.load %arg23[%c0_94, %c0_95] : memref<8x64xf32, #tpu.memory_space<vmem>>, vector<8x64xf32>
    tpu.vector_store %arg23[%c0_94, %c0_95], %239 {strides = array<i32>} : memref<8x64xf32, #tpu.memory_space<vmem>>, vector<8x64xf32>,
    %241 = vector.extract_strided_slice %239 {offsets = [0, 0], sizes = [8, 16], strides = [1, 1]} : vector<8x64xf32> to vector<8x16xf32>
    %242 = vector.extract_strided_slice %239 {offsets = [0, 16], sizes = [8, 16], strides = [1, 1]} : vector<8x64xf32> to vector<8x16xf32>
    %243 = vector.extract_strided_slice %239 {offsets = [0, 32], sizes = [8, 16], strides = [1, 1]} : vector<8x64xf32> to vector<8x16xf32>
    %244 = vector.extract_strided_slice %239 {offsets = [0, 48], sizes = [8, 16], strides = [1, 1]} : vector<8x64xf32> to vector<8x16xf32>
    %c0_96 = arith.constant 0 : index
    %c0_97 = arith.constant 0 : index
    %245 = vector.load %arg19[%c0_96, %c0_97] : memref<8x16xf32, #tpu.memory_space<vmem>>, vector<8x16xf32>
    %cst_98 = arith.constant 5.000000e-01 : f32
    %246 = vector.broadcast %cst_98 : f32 to vector<8x16xf32>
    %247 = arith.mulf %246, %242 : vector<8x16xf32>
    %248 = math.exp %247 : vector<8x16xf32>
    %249 = arith.mulf %245, %248 : vector<8x16xf32>
    %250 = arith.addf %241, %249 : vector<8x16xf32>
    %251 = arith.divf %243, %244 : vector<8x16xf32>
    %cst_99 = arith.constant 0.000000e+00 : f32
    %252 = vector.broadcast %cst_99 : f32 to vector<8x16xf32>
    %253 = arith.subf %252, %244 : vector<8x16xf32>
    %c0_100 = arith.constant 0 : index
    %c0_101 = arith.constant 0 : index
    %254 = vector.load %arg20[%c0_100, %c0_101] : memref<8x16xf32, #tpu.memory_space<vmem>>, vector<8x16xf32>
    %cst_102 = arith.constant 1.000000e+00 : f32
    %255 = vector.broadcast %cst_102 : f32 to vector<8x16xf32>
    %256 = arith.subf %255, %254 : vector<8x16xf32>
    %257 = math.log %256 : vector<8x16xf32>
    %258 = arith.mulf %253, %257 : vector<8x16xf32>
    %259 = math.exp %258 : vector<8x16xf32>
    %cst_103 = arith.constant 1.000000e+00 : f32
    %260 = vector.broadcast %cst_103 : f32 to vector<8x16xf32>
    %261 = arith.subf %259, %260 : vector<8x16xf32>
    %262 = arith.mulf %251, %261 : vector<8x16xf32>
    %c0_104 = arith.constant 0 : index
    %c0_105 = arith.constant 0 : index
    %263 = vector.load %arg21[%c0_104, %c0_105] : memref<8x16xf32, #tpu.memory_space<vmem>>, vector<8x16xf32>
    %cst_106 = arith.constant 5.000000e-01 : f32
    %264 = vector.broadcast %cst_106 : f32 to vector<8x16xf32>
    %265 = arith.cmpf ogt, %263, %264 : vector<8x16xf32>
    %266 = arith.select %265, %250, %262 : vector<8x16xi1>, vector<8x16xf32>
    %267 = arith.truncf %266 : vector<8x16xf32> to vector<8x16xbf16>
    %c0_107 = arith.constant 0 : index
    %c0_108 = arith.constant 0 : index
    %268 = vector.load %arg11[%c0_107, %c0_108] : memref<16x128xbf16, #tpu.memory_space<vmem>>, vector<16x128xbf16>
    %cst_109 = arith.constant dense<0.000000e+00> : vector<8x128xf32>
    %269 = tpu.matmul %267, %268, %cst_109 {dimension_numbers = #tpu.dot_dimension_numbers<[1], [0], [0], [1], [0, 0, 1, 1], [], []>} : vector<8x16xbf16>, vector<16x128xbf16>, vector<8x128xf32> -> vector<8x128xf32>
    %c0_110 = arith.constant 0 : index
    %c0_111 = arith.constant 0 : index
    %270 = vector.load %arg12[%c0_110, %c0_111] : memref<1x128xf32, #tpu.memory_space<vmem>>, vector<1x128xf32>
    %271 = vector.broadcast %270 : vector<1x128xf32> to vector<8x128xf32>
    %272 = arith.addf %269, %271 : vector<8x128xf32>
    %cst_112 = arith.constant 0.000000e+00 : f32
    %273 = vector.broadcast %cst_112 : f32 to vector<8x128xf32>
    %274 = arith.maximumf %272, %273 : vector<8x128xf32>
    %275 = arith.truncf %274 : vector<8x128xf32> to vector<8x128xbf16>
    %c0_113 = arith.constant 0 : index
    %c0_114 = arith.constant 0 : index
    %276 = vector.load %arg13[%c0_113, %c0_114] : memref<128x512xbf16, #tpu.memory_space<vmem>>, vector<128x512xbf16>
    %cst_115 = arith.constant dense<0.000000e+00> : vector<8x512xf32>
    %277 = tpu.matmul %275, %276, %cst_115 {dimension_numbers = #tpu.dot_dimension_numbers<[1], [0], [0], [1], [0, 0, 1, 1], [], []>} : vector<8x128xbf16>, vector<128x512xbf16>, vector<8x512xf32> -> vector<8x512xf32>
    %c0_116 = arith.constant 0 : index
    %c0_117 = arith.constant 0 : index
    %278 = vector.load %arg14[%c0_116, %c0_117] : memref<1x512xf32, #tpu.memory_space<vmem>>, vector<1x512xf32>
    %279 = vector.broadcast %278 : vector<1x512xf32> to vector<8x512xf32>
    %280 = arith.addf %277, %279 : vector<8x512xf32>
    %cst_118 = arith.constant 0.000000e+00 : f32
    %281 = vector.broadcast %cst_118 : f32 to vector<8x512xf32>
    %282 = arith.maximumf %280, %281 : vector<8x512xf32>
    %283 = arith.truncf %282 : vector<8x512xf32> to vector<8x512xbf16>
    %c0_119 = arith.constant 0 : index
    %c0_120 = arith.constant 0 : index
    %284 = vector.load %arg15[%c0_119, %c0_120] : memref<512x8xbf16, #tpu.memory_space<vmem>>, vector<512x8xbf16>
    %cst_121 = arith.constant dense<0.000000e+00> : vector<8x8xf32>
    %285 = tpu.matmul %283, %284, %cst_121 {dimension_numbers = #tpu.dot_dimension_numbers<[1], [0], [0], [1], [0, 0, 1, 1], [], []>} : vector<8x512xbf16>, vector<512x8xbf16>, vector<8x8xf32> -> vector<8x8xf32>
    %c0_122 = arith.constant 0 : index
    %c0_123 = arith.constant 0 : index
    %286 = vector.load %arg16[%c0_122, %c0_123] : memref<1x8xf32, #tpu.memory_space<vmem>>, vector<1x8xf32>
    %287 = vector.broadcast %286 : vector<1x8xf32> to vector<8x8xf32>
    %288 = arith.addf %285, %287 : vector<8x8xf32>
    %289 = arith.truncf %288 : vector<8x8xf32> to vector<8x8xbf16>
    %c0_124 = arith.constant 0 : index
    %c0_125 = arith.constant 0 : index
    %290 = vector.load %arg17[%c0_124, %c0_125] : memref<8x8xbf16, #tpu.memory_space<vmem>>, vector<8x8xbf16>
    %cst_126 = arith.constant dense<0.000000e+00> : vector<8x8xf32>
    %291 = tpu.matmul %289, %290, %cst_126 {dimension_numbers = #tpu.dot_dimension_numbers<[1], [0], [0], [1], [0, 0, 1, 1], [], []>} : vector<8x8xbf16>, vector<8x8xbf16>, vector<8x8xf32> -> vector<8x8xf32>
    %c0_127 = arith.constant 0 : index
    %c0_128 = arith.constant 0 : index
    %292 = vector.load %arg18[%c0_127, %c0_128] : memref<1x8xf32, #tpu.memory_space<vmem>>, vector<1x8xf32>
    %293 = vector.broadcast %292 : vector<1x8xf32> to vector<8x8xf32>
    %294 = arith.addf %291, %293 : vector<8x8xf32>
    %c0_129 = arith.constant 0 : index
    %c0_130 = arith.constant 0 : index
    %295 = vector.load %arg22[%c0_129, %c0_130] : memref<8x8xf32, #tpu.memory_space<vmem>>, vector<8x8xf32>
    tpu.vector_store %arg22[%c0_129, %c0_130], %294 {strides = array<i32>} : memref<8x8xf32, #tpu.memory_space<vmem>>, vector<8x8xf32>,
    return
  }
}

</mosaic_0001>

<llo_original>
// kernel: vae_forward.3
$region0: #{vae_forward.3}
  #allocation0 [shape = 'u32[]', space=smem, size = 0x4, offset = 0x4, fixed_abs, tag = 'smem constant byte address 0x4 - core index']
  #allocation1 [shape = 'u32[72,128]{1,0:T(1,128)}', space=vmem, size = 0x9000, scoped, tag = 'internal scratch']
  #allocation2 [shape = 'f32[8,8,128]{2,1,0:T(8,128)}', space=vmem, size = 0x8000, scoped, tag = 'scratch operand']
  #allocation3 [shape = 'f32[8,8,512]{2,1,0:T(8,128)}', space=vmem, size = 0x20000, scoped, tag = 'scratch operand']
  %s0 = inlined_call_operand.vmem [shape: f32[8,8,8], index: 0, kind: input, shape index: {}]
  %s1 = inlined_call_operand.hbm [shape: bf16[8,512], index: 1, kind: input, shape index: {}]
  %s2 = inlined_call_operand.hbm [shape: bf16[9,128,512], index: 2, kind: input, shape index: {}]
  %s3 = inlined_call_operand.hbm [shape: bf16[10,128,512], index: 3, kind: input, shape index: {}]
  %s4 = inlined_call_operand.hbm [shape: f32[10,1,512], index: 4, kind: input, shape index: {}]
  %s5 = inlined_call_operand.hbm [shape: bf16[128,128], index: 5, kind: input, shape index: {}]
  %s6 = inlined_call_operand.hbm [shape: f32[1,128], index: 6, kind: input, shape index: {}]
  %s7 = inlined_call_operand.hbm [shape: bf16[128,64], index: 7, kind: input, shape index: {}]
  %s8 = inlined_call_operand.hbm [shape: f32[1,64], index: 8, kind: input, shape index: {}]
  %s9 = inlined_call_operand.hbm [shape: bf16[64,64], index: 9, kind: input, shape index: {}]
  %s10 = inlined_call_operand.hbm [shape: f32[1,64], index: 10, kind: input, shape index: {}]
  %s11 = inlined_call_operand.hbm [shape: bf16[16,128], index: 11, kind: input, shape index: {}]
  %s12 = inlined_call_operand.hbm [shape: f32[1,128], index: 12, kind: input, shape index: {}]
  %s13 = inlined_call_operand.hbm [shape: bf16[128,512], index: 13, kind: input, shape index: {}]
  %s14 = inlined_call_operand.hbm [shape: f32[1,512], index: 14, kind: input, shape index: {}]
  %s15 = inlined_call_operand.hbm [shape: bf16[512,8], index: 15, kind: input, shape index: {}]
  %s16 = inlined_call_operand.hbm [shape: f32[1,8], index: 16, kind: input, shape index: {}]
  %s17 = inlined_call_operand.hbm [shape: bf16[8,8], index: 17, kind: input, shape index: {}]
  %s18 = inlined_call_operand.hbm [shape: f32[1,8], index: 18, kind: input, shape index: {}]
  %s19 = inlined_call_operand.vmem [shape: f32[8,16], index: 19, kind: input, shape index: {}]
  %s20 = inlined_call_operand.vmem [shape: f32[8,16], index: 20, kind: input, shape index: {}]
  %s21 = inlined_call_operand.vmem [shape: f32[8,16], index: 21, kind: input, shape index: {}]
  %s22 = inlined_call_operand.vmem [shape: f32[8,8], index: 22, kind: output, shape index: {0}]
  %s23 = inlined_call_operand.vmem [shape: f32[8,64], index: 23, kind: output, shape index: {1}]
  %24 = xla_tuple %s22, %s23
  %s25 = sld [smem:[#allocation0]]
  $region185: #{vae_forward.3} parent=0
    _
  %s27 = ssub.s32 1, %s25
  %s28 = scalar_select 0, %s27, %s25
  $region1: #{vae_forward.3} parent=0
    #allocation4 [shape = 'u8[8192]{0}', space=vmem, size = 0x2000, scoped, tag = 'input window, operand 1, single buffered']
    #allocation5 [shape = 's32[1]{0}', space=sflag, size = 0x4, scoped, tag = 'scoped memory for vae_forward.3']
    #allocation6 [shape = 'u8[1179648]{0}', space=vmem, size = 0x120000, scoped, tag = 'input window, operand 2, single buffered']
    #allocation7 [shape = 's32[1]{0}', space=sflag, size = 0x4, scoped, tag = 'scoped memory for vae_forward.3']
    #allocation8 [shape = 'u8[1310720]{0}', space=vmem, size = 0x140000, scoped, tag = 'input window, operand 3, single buffered']
    #allocation9 [shape = 'u8[20480]{0}', space=vmem, size = 0x5000, scoped, tag = 'input window, operand 4, single buffered']
    #allocation10 [shape = 's32[1]{0}', space=sflag, size = 0x4, scoped, tag = 'scoped memory for vae_forward.3']
    #allocation11 [shape = 'u8[32768]{0}', space=vmem, size = 0x8000, scoped, tag = 'input window, operand 5, single buffered']
    #allocation12 [shape = 'u8[512]{0}', space=vmem, size = 0x400, scoped, tag = 'input window, operand 6, single buffered']
    #allocation13 [shape = 's32[1]{0}', space=sflag, size = 0x4, scoped, tag = 'scoped memory for vae_forward.3']
    #allocation14 [shape = 'u8[32768]{0}', space=vmem, size = 0x8000, scoped, tag = 'input window, operand 7, single buffered']
    #allocation15 [shape = 'u8[512]{0}', space=vmem, size = 0x400, scoped, tag = 'input window, operand 8, single buffered']
    #allocation16 [shape = 's32[1]{0}', space=sflag, size = 0x4, scoped, tag = 'scoped memory for vae_forward.3']
    #allocation17 [shape = 'u8[16384]{0}', space=vmem, size = 0x4000, scoped, tag = 'input window, operand 9, single buffered']
    #allocation18 [shape = 'u8[512]{0}', space=vmem, size = 0x400, scoped, tag = 'input window, operand 10, single buffered']
    #allocation19 [shape = 's32[1]{0}', space=sflag, size = 0x4, scoped, tag = 'scoped memory for vae_forward.3']
    #allocation20 [shape = 'u8[4096]{0}', space=vmem, size = 0x1000, scoped, tag = 'input window, operand 11, single buffered']
    #allocation21 [shape = 'u8[512]{0}', space=vmem, size = 0x400, scoped, tag = 'input window, operand 12, single buffered']
    #allocation22 [shape = 's32[1]{0}', space=sflag, size = 0x4, scoped, tag = 'scoped memory for vae_forward.3']
    #allocation23 [shape = 'u8[131072]{0}', space=vmem, size = 0x20000, scoped, tag = 'input window, operand 13, single buffered']
    #allocation24 [shape = 'u8[2048]{0}', space=vmem, size = 0x800, scoped, tag = 'input window, operand 14, single buffered']
    #allocation25 [shape = 's32[1]{0}', space=sflag, size = 0x4, scoped, tag = 'scoped memory for vae_forward.3']
    #allocation26 [shape = 'u8[131072]{0}', space=vmem, size = 0x20000, scoped, tag = 'input window, operand 15, single buffered']
    #allocation27 [shape = 'u8[512]{0}', space=vmem, size = 0x400, scoped, tag = 'input window, operand 16, single buffered']
    #allocation28 [shape = 's32[1]{0}', space=sflag, size = 0x4, scoped, tag = 'scoped memory for vae_forward.3']
    #allocation29 [shape = 'u8[2048]{0}', space=vmem, size = 0x800, scoped, tag = 'input window, operand 17, single buffered']
    #allocation30 [shape = 'u8[512]{0}', space=vmem, size = 0x400, scoped, tag = 'input window, operand 18, single buffered']
    #allocation31 [shape = 's32[1]{0}', space=sflag, size = 0x4, scoped, tag = 'scoped memory for vae_forward.3']
    %29 = vsyncpa [#allocation5], 0
    %30 = vsyncpa [#allocation7], 0
    %31 = vsyncpa [#allocation10], 0
    %32 = vsyncpa [#allocation13], 0
    %33 = vsyncpa [#allocation16], 0
    %34 = vsyncpa [#allocation19], 0
    %35 = vsyncpa [#allocation22], 0
    %36 = vsyncpa [#allocation25], 0
    %37 = vsyncpa [#allocation28], 0
    %38 = vsyncpa [#allocation31], 0
    // Predicated region
    $region2: #{vae_forward.3} parent=1 // pred_check
      _
    $region3: #{vae_forward.3} parent=1 // pred_check_branch
      %40 = sbr.rel (0) target = $region5
    $region4: #{vae_forward.3} parent=1 // pred_region
      _
    $region5: #{vae_forward.3} parent=1 // pred_fallthru
      _
    // Predicated region
    $region6: #{vae_forward.3} parent=1 // pred_check
      _
    $region7: #{vae_forward.3} parent=1 // pred_check_branch
      %42 = sbr.rel (0) target = $region9
    $region8: #{vae_forward.3} parent=1 // pred_region
      %44 = vsyncadd [#allocation5], 0
      %s46 = sshll.u32 %s1, 4
      %s47 = int_to_ptr.hbm [resolvable:$true] %s46
      %s48 = sshll.u32 [#allocation4], 4
      %s49 = int_to_ptr.vmem [resolvable:$true] %s48
      %51 = dma.hbm_to_vmem [thread:$0]  %s47, 256, %s49, [#allocation5]
    $region9: #{vae_forward.3} parent=1 // pred_fallthru
      _
    // Predicated region
    $region10: #{vae_forward.3} parent=1 // pred_check
      _
    $region11: #{vae_forward.3} parent=1 // pred_check_branch
      %53 = sbr.rel (0) target = $region13
    $region12: #{vae_forward.3} parent=1 // pred_region
      %55 = vsyncadd [#allocation7], 0
      %s56 = sshll.u32 %s2, 4
      %s57 = int_to_ptr.hbm [resolvable:$true] %s56
      %s58 = sshll.u32 [#allocation6], 4
      %s59 = int_to_ptr.vmem [resolvable:$true] %s58
      %64 = dma.hbm_to_vmem [thread:$0]  %s57, 36864, %s59, [#allocation7], 256, 256, 16
    $region13: #{vae_forward.3} parent=1 // pred_fallthru
      _
    // Predicated region
    $region14: #{vae_forward.3} parent=1 // pred_check
      _
    $region15: #{vae_forward.3} parent=1 // pred_check_branch
      %66 = sbr.rel (0) target = $region17
    $region16: #{vae_forward.3} parent=1 // pred_region
      %68 = vsyncadd [#allocation7], 0
      %s69 = sshll.u32 %s3, 4
      %s70 = int_to_ptr.hbm [resolvable:$true] %s69
      %s71 = sshll.u32 [#allocation8], 4
      %s72 = int_to_ptr.vmem [resolvable:$true] %s71
      %77 = dma.hbm_to_vmem [thread:$0]  %s70, 40960, %s72, [#allocation7], 256, 256, 16
    $region17: #{vae_forward.3} parent=1 // pred_fallthru
      _
    // Predicated region
    $region18: #{vae_forward.3} parent=1 // pred_check
      _
    $region19: #{vae_forward.3} parent=1 // pred_check_branch
      %79 = sbr.rel (0) target = $region21
    $region20: #{vae_forward.3} parent=1 // pred_region
      %81 = vsyncadd [#allocation10], 0
      %s82 = sshll.u32 %s4, 4
      %s83 = int_to_ptr.hbm [resolvable:$true] %s82
      %s84 = sshll.u32 [#allocation9], 4
      %s85 = int_to_ptr.vmem [resolvable:$true] %s84
      %90 = dma.hbm_to_vmem [thread:$0]  %s83, 640, %s85, [#allocation10], 64, 64, 4
    $region21: #{vae_forward.3} parent=1 // pred_fallthru
      _
    // Predicated region
    $region22: #{vae_forward.3} parent=1 // pred_check
      _
    $region23: #{vae_forward.3} parent=1 // pred_check_branch
      %92 = sbr.rel (0) target = $region25
    $region24: #{vae_forward.3} parent=1 // pred_region
      %94 = vsyncadd [#allocation10], 0
      %s95 = sshll.u32 %s5, 4
      %s96 = int_to_ptr.hbm [resolvable:$true] %s95
      %s97 = sshll.u32 [#allocation11], 4
      %s98 = int_to_ptr.vmem [resolvable:$true] %s97
      %103 = dma.hbm_to_vmem [thread:$0]  %s96, 1024, %s98, [#allocation10], 64, 64, 4
    $region25: #{vae_forward.3} parent=1 // pred_fallthru
      _
    // Predicated region
    $region26: #{vae_forward.3} parent=1 // pred_check
      _
    $region27: #{vae_forward.3} parent=1 // pred_check_branch
      %105 = sbr.rel (0) target = $region29
    $region28: #{vae_forward.3} parent=1 // pred_region
      %107 = vsyncadd [#allocation13], 0
      %s109 = sshll.u32 %s6, 4
      %s110 = int_to_ptr.hbm [resolvable:$true] %s109
      %s111 = sshll.u32 [#allocation12], 4
      %s112 = int_to_ptr.vmem [resolvable:$true] %s111
      %114 = dma.hbm_to_vmem [thread:$0]  %s110, 16, %s112, [#allocation13]
    $region29: #{vae_forward.3} parent=1 // pred_fallthru
      _
    // Predicated region
    $region30: #{vae_forward.3} parent=1 // pred_check
      _
    $region31: #{vae_forward.3} parent=1 // pred_check_branch
      %116 = sbr.rel (0) target = $region33
    $region32: #{vae_forward.3} parent=1 // pred_region
      %118 = vsyncadd [#allocation13], 0
      %s119 = sshll.u32 %s7, 4
      %s120 = int_to_ptr.hbm [resolvable:$true] %s119
      %s121 = sshll.u32 [#allocation14], 4
      %s122 = int_to_ptr.vmem [resolvable:$true] %s121
      %127 = dma.hbm_to_vmem [thread:$0]  %s120, 1024, %s122, [#allocation13], 64, 64, 4
    $region33: #{vae_forward.3} parent=1 // pred_fallthru
      _
    // Predicated region
    $region34: #{vae_forward.3} parent=1 // pred_check
      _
    $region35: #{vae_forward.3} parent=1 // pred_check_branch
      %129 = sbr.rel (0) target = $region37
    $region36: #{vae_forward.3} parent=1 // pred_region
      %131 = vsyncadd [#allocation16], 0
      %s133 = sshll.u32 %s8, 4
      %s134 = int_to_ptr.hbm [resolvable:$true] %s133
      %s135 = sshll.u32 [#allocation15], 4
      %s136 = int_to_ptr.vmem [resolvable:$true] %s135
      %138 = dma.hbm_to_vmem [thread:$0]  %s134, 16, %s136, [#allocation16]
    $region37: #{vae_forward.3} parent=1 // pred_fallthru
      _
    // Predicated region
    $region38: #{vae_forward.3} parent=1 // pred_check
      _
    $region39: #{vae_forward.3} parent=1 // pred_check_branch
      %140 = sbr.rel (0) target = $region41
    $region40: #{vae_forward.3} parent=1 // pred_region
      %142 = vsyncadd [#allocation16], 0
      %s143 = sshll.u32 %s9, 4
      %s144 = int_to_ptr.hbm [resolvable:$true] %s143
      %s145 = sshll.u32 [#allocation17], 4
      %s146 = int_to_ptr.vmem [resolvable:$true] %s145
      %151 = dma.hbm_to_vmem [thread:$0]  %s144, 512, %s146, [#allocation16], 64, 64, 4
    $region41: #{vae_forward.3} parent=1 // pred_fallthru
      _
    // Predicated region
    $region42: #{vae_forward.3} parent=1 // pred_check
      _
    $region43: #{vae_forward.3} parent=1 // pred_check_branch
      %153 = sbr.rel (0) target = $region45
    $region44: #{vae_forward.3} parent=1 // pred_region
      %155 = vsyncadd [#allocation19], 0
      %s157 = sshll.u32 %s10, 4
      %s158 = int_to_ptr.hbm [resolvable:$true] %s157
      %s159 = sshll.u32 [#allocation18], 4
      %s160 = int_to_ptr.vmem [resolvable:$true] %s159
      %162 = dma.hbm_to_vmem [thread:$0]  %s158, 16, %s160, [#allocation19]
    $region45: #{vae_forward.3} parent=1 // pred_fallthru
      _
    // Predicated region
    $region46: #{vae_forward.3} parent=1 // pred_check
      _
    $region47: #{vae_forward.3} parent=1 // pred_check_branch
      %164 = sbr.rel (0) target = $region49
    $region48: #{vae_forward.3} parent=1 // pred_region
      %166 = vsyncadd [#allocation19], 0
      %s167 = sshll.u32 %s11, 4
      %s168 = int_to_ptr.hbm [resolvable:$true] %s167
      %s169 = sshll.u32 [#allocation20], 4
      %s170 = int_to_ptr.vmem [resolvable:$true] %s169
      %175 = dma.hbm_to_vmem [thread:$0]  %s168, 128, %s170, [#allocation19], 64, 64, 4
    $region49: #{vae_forward.3} parent=1 // pred_fallthru
      _
    // Predicated region
    $region50: #{vae_forward.3} parent=1 // pred_check
      _
    $region51: #{vae_forward.3} parent=1 // pred_check_branch
      %177 = sbr.rel (0) target = $region53
    $region52: #{vae_forward.3} parent=1 // pred_region
      %179 = vsyncadd [#allocation22], 0
      %s181 = sshll.u32 %s12, 4
      %s182 = int_to_ptr.hbm [resolvable:$true] %s181
      %s183 = sshll.u32 [#allocation21], 4
      %s184 = int_to_ptr.vmem [resolvable:$true] %s183
      %186 = dma.hbm_to_vmem [thread:$0]  %s182, 16, %s184, [#allocation22]
    $region53: #{vae_forward.3} parent=1 // pred_fallthru
      _
    // Predicated region
    $region54: #{vae_forward.3} parent=1 // pred_check
      _
    $region55: #{vae_forward.3} parent=1 // pred_check_branch
      %188 = sbr.rel (0) target = $region57
    $region56: #{vae_forward.3} parent=1 // pred_region
      %190 = vsyncadd [#allocation22], 0
      %s191 = sshll.u32 %s13, 4
      %s192 = int_to_ptr.hbm [resolvable:$true] %s191
      %s193 = sshll.u32 [#allocation23], 4
      %s194 = int_to_ptr.vmem [resolvable:$true] %s193
      %199 = dma.hbm_to_vmem [thread:$0]  %s192, 4096, %s194, [#allocation22], 256, 256, 16
    $region57: #{vae_forward.3} parent=1 // pred_fallthru
      _
    // Predicated region
    $region58: #{vae_forward.3} parent=1 // pred_check
      _
    $region59: #{vae_forward.3} parent=1 // pred_check_branch
      %201 = sbr.rel (0) target = $region61
    $region60: #{vae_forward.3} parent=1 // pred_region
      %203 = vsyncadd [#allocation25], 0
      %s205 = sshll.u32 %s14, 4
      %s206 = int_to_ptr.hbm [resolvable:$true] %s205
      %s207 = sshll.u32 [#allocation24], 4
      %s208 = int_to_ptr.vmem [resolvable:$true] %s207
      %210 = dma.hbm_to_vmem [thread:$0]  %s206, 64, %s208, [#allocation25]
    $region61: #{vae_forward.3} parent=1 // pred_fallthru
      _
    // Predicated region
    $region62: #{vae_forward.3} parent=1 // pred_check
      _
    $region63: #{vae_forward.3} parent=1 // pred_check_branch
      %212 = sbr.rel (0) target = $region65
    $region64: #{vae_forward.3} parent=1 // pred_region
      %214 = vsyncadd [#allocation25], 0
      %s215 = sshll.u32 %s15, 4
      %s216 = int_to_ptr.hbm [resolvable:$true] %s215
      %s217 = sshll.u32 [#allocation26], 4
      %s218 = int_to_ptr.vmem [resolvable:$true] %s217
      %223 = dma.hbm_to_vmem [thread:$0]  %s216, 4096, %s218, [#allocation25], 64, 64, 4
    $region65: #{vae_forward.3} parent=1 // pred_fallthru
      _
    // Predicated region
    $region66: #{vae_forward.3} parent=1 // pred_check
      _
    $region67: #{vae_forward.3} parent=1 // pred_check_branch
      %225 = sbr.rel (0) target = $region69
    $region68: #{vae_forward.3} parent=1 // pred_region
      %227 = vsyncadd [#allocation28], 0
      %s229 = sshll.u32 %s16, 4
      %s230 = int_to_ptr.hbm [resolvable:$true] %s229
      %s231 = sshll.u32 [#allocation27], 4
      %s232 = int_to_ptr.vmem [resolvable:$true] %s231
      %234 = dma.hbm_to_vmem [thread:$0]  %s230, 16, %s232, [#allocation28]
    $region69: #{vae_forward.3} parent=1 // pred_fallthru
      _
    // Predicated region
    $region70: #{vae_forward.3} parent=1 // pred_check
      _
    $region71: #{vae_forward.3} parent=1 // pred_check_branch
      %236 = sbr.rel (0) target = $region73
    $region72: #{vae_forward.3} parent=1 // pred_region
      %238 = vsyncadd [#allocation28], 0
      %s240 = sshll.u32 %s17, 4
      %s241 = int_to_ptr.hbm [resolvable:$true] %s240
      %s242 = sshll.u32 [#allocation29], 4
      %s243 = int_to_ptr.vmem [resolvable:$true] %s242
      %245 = dma.hbm_to_vmem [thread:$0]  %s241, 64, %s243, [#allocation28]
    $region73: #{vae_forward.3} parent=1 // pred_fallthru
      _
    // Predicated region
    $region74: #{vae_forward.3} parent=1 // pred_check
      _
    $region75: #{vae_forward.3} parent=1 // pred_check_branch
      %247 = sbr.rel (0) target = $region77
    $region76: #{vae_forward.3} parent=1 // pred_region
      %249 = vsyncadd [#allocation31], 0
      %s251 = sshll.u32 %s18, 4
      %s252 = int_to_ptr.hbm [resolvable:$true] %s251
      %s253 = sshll.u32 [#allocation30], 4
      %s254 = int_to_ptr.vmem [resolvable:$true] %s253
      %256 = dma.hbm_to_vmem [thread:$0]  %s252, 16, %s254, [#allocation31]
    $region77: #{vae_forward.3} parent=1 // pred_fallthru
      _
    // Predicated region
    $region78: #{vae_forward.3} parent=1 // pred_check
      _
    $region79: #{vae_forward.3} parent=1 // pred_check_branch
      %258 = sbr.rel (0) target = $region81
    $region80: #{vae_forward.3} parent=1 // pred_region
      _
    $region81: #{vae_forward.3} parent=1 // pred_fallthru
      _
    // Predicated region
    $region82: #{vae_forward.3} parent=1 // pred_check
      _
    $region83: #{vae_forward.3} parent=1 // pred_check_branch
      %260 = sbr.rel (0) target = $region85
    $region84: #{vae_forward.3} parent=1 // pred_region
      _
    $region85: #{vae_forward.3} parent=1 // pred_fallthru
      _
    // Predicated region
    $region86: #{vae_forward.3} parent=1 // pred_check
      _
    $region87: #{vae_forward.3} parent=1 // pred_check_branch
      %262 = sbr.rel (0) target = $region89
    $region88: #{vae_forward.3} parent=1 // pred_region
      _
    $region89: #{vae_forward.3} parent=1 // pred_fallthru
      _
    // Predicated region
    $region90: #{vae_forward.3} parent=1 // pred_check
      _
    $region91: #{vae_forward.3} parent=1 // pred_check_branch
      %264 = sbr.rel (0) target = $region93
    $region92: #{vae_forward.3} parent=1 // pred_region
      %266 = dma.done [#allocation5], 256
    $region93: #{vae_forward.3} parent=1 // pred_fallthru
      _
    // Predicated region
    $region94: #{vae_forward.3} parent=1 // pred_check
      _
    $region95: #{vae_forward.3} parent=1 // pred_check_branch
      %268 = sbr.rel (0) target = $region97
    $region96: #{vae_forward.3} parent=1 // pred_region
      %270 = dma.done [#allocation7], 36864
    $region97: #{vae_forward.3} parent=1 // pred_fallthru
      _
    // Predicated region
    $region98: #{vae_forward.3} parent=1 // pred_check
      _
    $region99: #{vae_forward.3} parent=1 // pred_check_branch
      %272 = sbr.rel (0) target = $region101
    $region100: #{vae_forward.3} parent=1 // pred_region
      %274 = dma.done [#allocation7], 40960
    $region101: #{vae_forward.3} parent=1 // pred_fallthru
      _
    // Predicated region
    $region102: #{vae_forward.3} parent=1 // pred_check
      _
    $region103: #{vae_forward.3} parent=1 // pred_check_branch
      %276 = sbr.rel (0) target = $region105
    $region104: #{vae_forward.3} parent=1 // pred_region
      %278 = dma.done [#allocation10], 640
    $region105: #{vae_forward.3} parent=1 // pred_fallthru
      _
    // Predicated region
    $region106: #{vae_forward.3} parent=1 // pred_check
      _
    $region107: #{vae_forward.3} parent=1 // pred_check_branch
      %280 = sbr.rel (0) target = $region109
    $region108: #{vae_forward.3} parent=1 // pred_region
      %282 = dma.done [#allocation10], 1024
    $region109: #{vae_forward.3} parent=1 // pred_fallthru
      _
    // Predicated region
    $region110: #{vae_forward.3} parent=1 // pred_check
      _
    $region111: #{vae_forward.3} parent=1 // pred_check_branch
      %284 = sbr.rel (0) target = $region113
    $region112: #{vae_forward.3} parent=1 // pred_region
      %286 = dma.done [#allocation13], 16
    $region113: #{vae_forward.3} parent=1 // pred_fallthru
      _
    // Predicated region
    $region114: #{vae_forward.3} parent=1 // pred_check
      _
    $region115: #{vae_forward.3} parent=1 // pred_check_branch
      %288 = sbr.rel (0) target = $region117
    $region116: #{vae_forward.3} parent=1 // pred_region
      %290 = dma.done [#allocation13], 1024
    $region117: #{vae_forward.3} parent=1 // pred_fallthru
      _
    // Predicated region
    $region118: #{vae_forward.3} parent=1 // pred_check
      _
    $region119: #{vae_forward.3} parent=1 // pred_check_branch
      %292 = sbr.rel (0) target = $region121
    $region120: #{vae_forward.3} parent=1 // pred_region
      %294 = dma.done [#allocation16], 16
    $region121: #{vae_forward.3} parent=1 // pred_fallthru
      _
    // Predicated region
    $region122: #{vae_forward.3} parent=1 // pred_check
      _
    $region123: #{vae_forward.3} parent=1 // pred_check_branch
      %296 = sbr.rel (0) target = $region125
    $region124: #{vae_forward.3} parent=1 // pred_region
      %298 = dma.done [#allocation16], 512
    $region125: #{vae_forward.3} parent=1 // pred_fallthru
      _
    // Predicated region
    $region126: #{vae_forward.3} parent=1 // pred_check
      _
    $region127: #{vae_forward.3} parent=1 // pred_check_branch
      %300 = sbr.rel (0) target = $region129
    $region128: #{vae_forward.3} parent=1 // pred_region
      %302 = dma.done [#allocation19], 16
    $region129: #{vae_forward.3} parent=1 // pred_fallthru
      _
    // Predicated region
    $region130: #{vae_forward.3} parent=1 // pred_check
      _
    $region131: #{vae_forward.3} parent=1 // pred_check_branch
      %304 = sbr.rel (0) target = $region133
    $region132: #{vae_forward.3} parent=1 // pred_region
      %306 = dma.done [#allocation19], 128
    $region133: #{vae_forward.3} parent=1 // pred_fallthru
      _
    // Predicated region
    $region134: #{vae_forward.3} parent=1 // pred_check
      _
    $region135: #{vae_forward.3} parent=1 // pred_check_branch
      %308 = sbr.rel (0) target = $region137
    $region136: #{vae_forward.3} parent=1 // pred_region
      %310 = dma.done [#allocation22], 16
    $region137: #{vae_forward.3} parent=1 // pred_fallthru
      _
    // Predicated region
    $region138: #{vae_forward.3} parent=1 // pred_check
      _
    $region139: #{vae_forward.3} parent=1 // pred_check_branch
      %312 = sbr.rel (0) target = $region141
    $region140: #{vae_forward.3} parent=1 // pred_region
      %314 = dma.done [#allocation22], 4096
    $region141: #{vae_forward.3} parent=1 // pred_fallthru
      _
    // Predicated region
    $region142: #{vae_forward.3} parent=1 // pred_check
      _
    $region143: #{vae_forward.3} parent=1 // pred_check_branch
      %316 = sbr.rel (0) target = $region145
    $region144: #{vae_forward.3} parent=1 // pred_region
      %318 = dma.done [#allocation25], 64
    $region145: #{vae_forward.3} parent=1 // pred_fallthru
      _
    // Predicated region
    $region146: #{vae_forward.3} parent=1 // pred_check
      _
    $region147: #{vae_forward.3} parent=1 // pred_check_branch
      %320 = sbr.rel (0) target = $region149
    $region148: #{vae_forward.3} parent=1 // pred_region
      %322 = dma.done [#allocation25], 4096
    $region149: #{vae_forward.3} parent=1 // pred_fallthru
      _
    // Predicated region
    $region150: #{vae_forward.3} parent=1 // pred_check
      _
    $region151: #{vae_forward.3} parent=1 // pred_check_branch
      %324 = sbr.rel (0) target = $region153
    $region152: #{vae_forward.3} parent=1 // pred_region
      %326 = dma.done [#allocation28], 16
    $region153: #{vae_forward.3} parent=1 // pred_fallthru
      _
    // Predicated region
    $region154: #{vae_forward.3} parent=1 // pred_check
      _
    $region155: #{vae_forward.3} parent=1 // pred_check_branch
      %328 = sbr.rel (0) target = $region157
    $region156: #{vae_forward.3} parent=1 // pred_region
      %330 = dma.done [#allocation28], 64
    $region157: #{vae_forward.3} parent=1 // pred_fallthru
      _
    // Predicated region
    $region158: #{vae_forward.3} parent=1 // pred_check
      _
    $region159: #{vae_forward.3} parent=1 // pred_check_branch
      %332 = sbr.rel (0) target = $region161
    $region160: #{vae_forward.3} parent=1 // pred_region
      %334 = dma.done [#allocation31], 16
    $region161: #{vae_forward.3} parent=1 // pred_fallthru
      _
    %v336 = vld [vmem:[%s0] sm:$0xff]
    %v337 = vld [vmem:[%s0 + $0x8] sm:$0xff]
    %v338 = vld [vmem:[%s0 + $0x10] sm:$0xff]
    %v339 = vld [vmem:[%s0 + $0x18] sm:$0xff]
    %v340 = vld [vmem:[%s0 + $0x20] sm:$0xff]
    %v341 = vld [vmem:[%s0 + $0x28] sm:$0xff]
    %v342 = vld [vmem:[%s0 + $0x30] sm:$0xff]
    %v343 = vld [vmem:[%s0 + $0x38] sm:$0xff]
    %v344 = vpack.c.bf16 %v337, %v336
    %v345 = vpack.c.bf16 %v339, %v338
    %v346 = vpack.c.bf16 %v341, %v340
    %v347 = vpack.c.bf16 %v343, %v342
    %v348 = vld [vmem:[#allocation4] sm:$0xff]
    %v349 = vld [vmem:[#allocation4 + $0x8] sm:$0xff]
    %v350 = vld [vmem:[#allocation8] sm:$0xff]
    %v351 = vld [vmem:[#allocation8 + $0x8] sm:$0xff]
    %v352 = vld [vmem:[#allocation8 + $0x10] sm:$0xff]
    %v353 = vld [vmem:[#allocation8 + $0x18] sm:$0xff]
    %v354 = vld [vmem:[#allocation8 + $0x20] sm:$0xff]
    %v355 = vld [vmem:[#allocation8 + $0x28] sm:$0xff]
    %v356 = vld [vmem:[#allocation8 + $0x30] sm:$0xff]
    %v357 = vld [vmem:[#allocation8 + $0x38] sm:$0xff]
    %v358 = vld [vmem:[#allocation8 + $0x40] sm:$0xff]
    %v359 = vld [vmem:[#allocation8 + $0x48] sm:$0xff]
    %v360 = vld [vmem:[#allocation8 + $0x50] sm:$0xff]
    %v361 = vld [vmem:[#allocation8 + $0x58] sm:$0xff]
    %v362 = vld [vmem:[#allocation8 + $0x60] sm:$0xff]
    %v363 = vld [vmem:[#allocation8 + $0x68] sm:$0xff]
    %v364 = vld [vmem:[#allocation8 + $0x70] sm:$0xff]
    %v365 = vld [vmem:[#allocation8 + $0x78] sm:$0xff]
    %v366 = vld [vmem:[#allocation8 + $0x80] sm:$0xff]
    %v367 = vld [vmem:[#allocation8 + $0x88] sm:$0xff]
    %v368 = vld [vmem:[#allocation8 + $0x90] sm:$0xff]
    %v369 = vld [vmem:[#allocation8 + $0x98] sm:$0xff]
    %v370 = vld [vmem:[#allocation8 + $0xa0] sm:$0xff]
    %v371 = vld [vmem:[#allocation8 + $0xa8] sm:$0xff]
    %v372 = vld [vmem:[#allocation8 + $0xb0] sm:$0xff]
    %v373 = vld [vmem:[#allocation8 + $0xb8] sm:$0xff]
    %v374 = vld [vmem:[#allocation8 + $0xc0] sm:$0xff]
    %v375 = vld [vmem:[#allocation8 + $0xc8] sm:$0xff]
    %v376 = vld [vmem:[#allocation8 + $0xd0] sm:$0xff]
    %v377 = vld [vmem:[#allocation8 + $0xd8] sm:$0xff]
    %v378 = vld [vmem:[#allocation8 + $0xe0] sm:$0xff]
    %v379 = vld [vmem:[#allocation8 + $0xe8] sm:$0xff]
    %v380 = vld [vmem:[#allocation8 + $0xf0] sm:$0xff]
    %v381 = vld [vmem:[#allocation8 + $0xf8] sm:$0xff]
    %v382 = vld [vmem:[#allocation9] sm:$0xf]
    %v384 = vperm.slane %v382, 0
    %v385 = vperm.slane %v382, 1
    %v386 = vperm.slane %v382, 2
    %v387 = vperm.slane %v382, 3
    %v394 = vunpack.c.l.b16 %v348
    %v395 = vunpack.c.h.b16 %v348
    %v396 = vunpack.c.l.b16 %v349
    %v397 = vunpack.c.h.b16 %v349
    %v398 = vpack.c.b16 %v394, %v394
    %v399 = vpack.c.b16 %v395, %v395
    %v400 = vpack.c.b16 %v396, %v396
    %v401 = vpack.c.b16 %v397, %v397
    %vm402 = vcmask 64512
    %v404 = vsel %vm402, %v344, 0
    %v407 = vsel %vm402, %v345, 0
    %v410 = vsel %vm402, %v346, 0
    %v413 = vsel %vm402, %v347, 0
    %vm415 = vcmask 1043456
    %v417 = vsel %vm415, %v398, 0
    %v420 = vsel %vm415, %v399, 0
    %v423 = vsel %vm415, %v400, 0
    %v426 = vsel %vm415, %v401, 0
    %428 = vmatpush.bf16.msra.mxu0 0
    %429 = vmatpush.bf16.msra.mxu0 0
    %430 = vmatpush.bf16.msra.mxu0 0
    %431 = vmatpush.bf16.msra.mxu0 0
    %432 = vmatpush.bf16.msra.mxu0 0
    %433 = vmatpush.bf16.msra.mxu0 0
    %434 = vmatpush.bf16.msra.mxu0 0
    %435 = vmatpush.bf16.msra.mxu0 %v417
    %436 = vmatmul.bf16.gmra.mxu0 %v404
    %v437 = vpop.f32.mrf.mxu0
    %v438 = vadd.f32 %v384, %v437
    %v439 = vpop.f32.mrf.mxu0
    %v440 = vadd.f32 %v384, %v439
    %441 = vmatmul.bf16.gmra.mxu0 %v407
    %v442 = vpop.f32.mrf.mxu0
    %v443 = vadd.f32 %v384, %v442
    %v444 = vpop.f32.mrf.mxu0
    %v445 = vadd.f32 %v384, %v444
    %446 = vmatmul.bf16.gmra.mxu0 %v410
    %v447 = vpop.f32.mrf.mxu0
    %v448 = vadd.f32 %v384, %v447
    %v449 = vpop.f32.mrf.mxu0
    %v450 = vadd.f32 %v384, %v449
    %451 = vmatmul.bf16.gmra.mxu0 %v413
    %v452 = vpop.f32.mrf.mxu0
    %v453 = vadd.f32 %v384, %v452
    %v454 = vpop.f32.mrf.mxu0
    %v455 = vadd.f32 %v384, %v454
    %456 = vdwg.mxu0
    %457 = vmatpush.bf16.msra.mxu0 0
    %458 = vmatpush.bf16.msra.mxu0 0
    %459 = vmatpush.bf16.msra.mxu0 0
    %460 = vmatpush.bf16.msra.mxu0 0
    %461 = vmatpush.bf16.msra.mxu0 0
    %462 = vmatpush.bf16.msra.mxu0 0
    %463 = vmatpush.bf16.msra.mxu0 0
    %464 = vmatpush.bf16.msra.mxu0 %v420
    %465 = vmatmul.bf16.gmra.mxu0 %v404
    %v466 = vpop.f32.mrf.mxu0
    %v467 = vadd.f32 %v385, %v466
    %v468 = vpop.f32.mrf.mxu0
    %v469 = vadd.f32 %v385, %v468
    %470 = vmatmul.bf16.gmra.mxu0 %v407
    %v471 = vpop.f32.mrf.mxu0
    %v472 = vadd.f32 %v385, %v471
    %v473 = vpop.f32.mrf.mxu0
    %v474 = vadd.f32 %v385, %v473
    %475 = vmatmul.bf16.gmra.mxu0 %v410
    %v476 = vpop.f32.mrf.mxu0
    %v477 = vadd.f32 %v385, %v476
    %v478 = vpop.f32.mrf.mxu0
    %v479 = vadd.f32 %v385, %v478
    %480 = vmatmul.bf16.gmra.mxu0 %v413
    %v481 = vpop.f32.mrf.mxu0
    %v482 = vadd.f32 %v385, %v481
    %v483 = vpop.f32.mrf.mxu0
    %v484 = vadd.f32 %v385, %v483
    %485 = vdwg.mxu0
    %486 = vmatpush.bf16.msra.mxu0 0
    %487 = vmatpush.bf16.msra.mxu0 0
    %488 = vmatpush.bf16.msra.mxu0 0
    %489 = vmatpush.bf16.msra.mxu0 0
    %490 = vmatpush.bf16.msra.mxu0 0
    %491 = vmatpush.bf16.msra.mxu0 0
    %492 = vmatpush.bf16.msra.mxu0 0
    %493 = vmatpush.bf16.msra.mxu0 %v423
    %494 = vmatmul.bf16.gmra.mxu0 %v404
    %v495 = vpop.f32.mrf.mxu0
    %v496 = vadd.f32 %v386, %v495
    %v497 = vpop.f32.mrf.mxu0
    %v498 = vadd.f32 %v386, %v497
    %499 = vmatmul.bf16.gmra.mxu0 %v407
    %v500 = vpop.f32.mrf.mxu0
    %v501 = vadd.f32 %v386, %v500
    %v502 = vpop.f32.mrf.mxu0
    %v503 = vadd.f32 %v386, %v502
    %504 = vmatmul.bf16.gmra.mxu0 %v410
    %v505 = vpop.f32.mrf.mxu0
    %v506 = vadd.f32 %v386, %v505
    %v507 = vpop.f32.mrf.mxu0
    %v508 = vadd.f32 %v386, %v507
    %509 = vmatmul.bf16.gmra.mxu0 %v413
    %v510 = vpop.f32.mrf.mxu0
    %v511 = vadd.f32 %v386, %v510
    %v512 = vpop.f32.mrf.mxu0
    %v513 = vadd.f32 %v386, %v512
    %514 = vdwg.mxu0
    %515 = vmatpush.bf16.msra.mxu0 0
    %516 = vmatpush.bf16.msra.mxu0 0
    %517 = vmatpush.bf16.msra.mxu0 0
    %518 = vmatpush.bf16.msra.mxu0 0
    %519 = vmatpush.bf16.msra.mxu0 0
    %520 = vmatpush.bf16.msra.mxu0 0
    %521 = vmatpush.bf16.msra.mxu0 0
    %522 = vmatpush.bf16.msra.mxu0 %v426
    %523 = vmatmul.bf16.gmra.mxu0 %v404
    %v524 = vpop.f32.mrf.mxu0
    %v525 = vadd.f32 %v387, %v524
    %v526 = vpop.f32.mrf.mxu0
    %v527 = vadd.f32 %v387, %v526
    %528 = vmatmul.bf16.gmra.mxu0 %v407
    %v529 = vpop.f32.mrf.mxu0
    %v530 = vadd.f32 %v387, %v529
    %v531 = vpop.f32.mrf.mxu0
    %v532 = vadd.f32 %v387, %v531
    %533 = vmatmul.bf16.gmra.mxu0 %v410
    %v534 = vpop.f32.mrf.mxu0
    %v535 = vadd.f32 %v387, %v534
    %v536 = vpop.f32.mrf.mxu0
    %v537 = vadd.f32 %v387, %v536
    %538 = vmatmul.bf16.gmra.mxu0 %v413
    %v539 = vpop.f32.mrf.mxu0
    %v540 = vadd.f32 %v387, %v539
    %v541 = vpop.f32.mrf.mxu0
    %v542 = vadd.f32 %v387, %v541
    %543 = vdwg.mxu0
    %544 = vst [vmem:[#allocation3] sm:$0xff] %v438
    %545 = vst [vmem:[#allocation3 + $0x8] sm:$0xff] %v467
    %546 = vst [vmem:[#allocation3 + $0x10] sm:$0xff] %v496
    %547 = vst [vmem:[#allocation3 + $0x18] sm:$0xff] %v525
    %548 = vst [vmem:[#allocation3 + $0x20] sm:$0xff] %v440
    %549 = vst [vmem:[#allocation3 + $0x28] sm:$0xff] %v469
    %550 = vst [vmem:[#allocation3 + $0x30] sm:$0xff] %v498
    %551 = vst [vmem:[#allocation3 + $0x38] sm:$0xff] %v527
    %552 = vst [vmem:[#allocation3 + $0x40] sm:$0xff] %v443
    %553 = vst [vmem:[#allocation3 + $0x48] sm:$0xff] %v472
    %554 = vst [vmem:[#allocation3 + $0x50] sm:$0xff] %v501
    %555 = vst [vmem:[#allocation3 + $0x58] sm:$0xff] %v530
    %556 = vst [vmem:[#allocation3 + $0x60] sm:$0xff] %v445
    %557 = vst [vmem:[#allocation3 + $0x68] sm:$0xff] %v474
    %558 = vst [vmem:[#allocation3 + $0x70] sm:$0xff] %v503
    %559 = vst [vmem:[#allocation3 + $0x78] sm:$0xff] %v532
    %560 = vst [vmem:[#allocation3 + $0x80] sm:$0xff] %v448
    %561 = vst [vmem:[#allocation3 + $0x88] sm:$0xff] %v477
    %562 = vst [vmem:[#allocation3 + $0x90] sm:$0xff] %v506
    %563 = vst [vmem:[#allocation3 + $0x98] sm:$0xff] %v535
    %564 = vst [vmem:[#allocation3 + $0xa0] sm:$0xff] %v450
    %565 = vst [vmem:[#allocation3 + $0xa8] sm:$0xff] %v479
    %566 = vst [vmem:[#allocation3 + $0xb0] sm:$0xff] %v508
    %567 = vst [vmem:[#allocation3 + $0xb8] sm:$0xff] %v537
    %568 = vst [vmem:[#allocation3 + $0xc0] sm:$0xff] %v453
    %569 = vst [vmem:[#allocation3 + $0xc8] sm:$0xff] %v482
    %570 = vst [vmem:[#allocation3 + $0xd0] sm:$0xff] %v511
    %571 = vst [vmem:[#allocation3 + $0xd8] sm:$0xff] %v540
    %572 = vst [vmem:[#allocation3 + $0xe0] sm:$0xff] %v455
    %573 = vst [vmem:[#allocation3 + $0xe8] sm:$0xff] %v484
    %574 = vst [vmem:[#allocation3 + $0xf0] sm:$0xff] %v513
    %575 = vst [vmem:[#allocation3 + $0xf8] sm:$0xff] %v542
    %v576 = vld [vmem:[#allocation3] sm:$0xff]
    %v577 = vld [vmem:[#allocation3 + $0x8] sm:$0xff]
    %v578 = vld [vmem:[#allocation3 + $0x10] sm:$0xff]
    %v579 = vld [vmem:[#allocation3 + $0x18] sm:$0xff]
    %v612 = vunpack.c.l.b16 %v350
    %v613 = vunpack.c.h.b16 %v350
    %v614 = vunpack.c.l.b16 %v351
    %v615 = vunpack.c.h.b16 %v351
    %v616 = vunpack.c.l.b16 %v352
    %v617 = vunpack.c.h.b16 %v352
    %v618 = vunpack.c.l.b16 %v353
    %v619 = vunpack.c.h.b16 %v353
    %v620 = vunpack.c.l.b16 %v354
    %v621 = vunpack.c.h.b16 %v354
    %v622 = vunpack.c.l.b16 %v355
    %v623 = vunpack.c.h.b16 %v355
    %v624 = vunpack.c.l.b16 %v356
    %v625 = vunpack.c.h.b16 %v356
    %v626 = vunpack.c.l.b16 %v357
    %v627 = vunpack.c.h.b16 %v357
    %v628 = vunpack.c.l.b16 %v358
    %v629 = vunpack.c.h.b16 %v358
    %v630 = vunpack.c.l.b16 %v359
    %v631 = vunpack.c.h.b16 %v359
    %v632 = vunpack.c.l.b16 %v360
    %v633 = vunpack.c.h.b16 %v360
    %v634 = vunpack.c.l.b16 %v361
    %v635 = vunpack.c.h.b16 %v361
    %v636 = vunpack.c.l.b16 %v362
    %v637 = vunpack.c.h.b16 %v362
    %v638 = vunpack.c.l.b16 %v363
    %v639 = vunpack.c.h.b16 %v363
    %v640 = vunpack.c.l.b16 %v364
    %v641 = vunpack.c.h.b16 %v364
    %v642 = vunpack.c.l.b16 %v365
    %v643 = vunpack.c.h.b16 %v365
    %v644 = vunpack.c.l.b16 %v366
    %v645 = vunpack.c.h.b16 %v366
    %v646 = vunpack.c.l.b16 %v367
    %v647 = vunpack.c.h.b16 %v367
    %v648 = vunpack.c.l.b16 %v368
    %v649 = vunpack.c.h.b16 %v368
    %v650 = vunpack.c.l.b16 %v369
    %v651 = vunpack.c.h.b16 %v369
    %v652 = vunpack.c.l.b16 %v370
    %v653 = vunpack.c.h.b16 %v370
    %v654 = vunpack.c.l.b16 %v371
    %v655 = vunpack.c.h.b16 %v371
    %v656 = vunpack.c.l.b16 %v372
    %v657 = vunpack.c.h.b16 %v372
    %v658 = vunpack.c.l.b16 %v373
    %v659 = vunpack.c.h.b16 %v373
    %v660 = vunpack.c.l.b16 %v374
    %v661 = vunpack.c.h.b16 %v374
    %v662 = vunpack.c.l.b16 %v375
    %v663 = vunpack.c.h.b16 %v375
    %v664 = vunpack.c.l.b16 %v376
    %v665 = vunpack.c.h.b16 %v376
    %v666 = vunpack.c.l.b16 %v377
    %v667 = vunpack.c.h.b16 %v377
    %v668 = vunpack.c.l.b16 %v378
    %v669 = vunpack.c.h.b16 %v378
    %v670 = vunpack.c.l.b16 %v379
    %v671 = vunpack.c.h.b16 %v379
    %v672 = vunpack.c.l.b16 %v380
    %v673 = vunpack.c.h.b16 %v380
    %v674 = vunpack.c.l.b16 %v381
    %v675 = vunpack.c.h.b16 %v381
    %v676 = vpack.c.b16 %v616, %v612
    %v677 = vpack.c.b16 %v617, %v613
    %v678 = vpack.c.b16 %v618, %v614
    %v679 = vpack.c.b16 %v619, %v615
    %v680 = vpack.c.b16 %v624, %v620
    %v681 = vpack.c.b16 %v625, %v621
    %v682 = vpack.c.b16 %v626, %v622
    %v683 = vpack.c.b16 %v627, %v623
    %v684 = vpack.c.b16 %v632, %v628
    %v685 = vpack.c.b16 %v633, %v629
    %v686 = vpack.c.b16 %v634, %v630
    %v687 = vpack.c.b16 %v635, %v631
    %v688 = vpack.c.b16 %v640, %v636
    %v689 = vpack.c.b16 %v641, %v637
    %v690 = vpack.c.b16 %v642, %v638
    %v691 = vpack.c.b16 %v643, %v639
    %v692 = vpack.c.b16 %v648, %v644
    %v693 = vpack.c.b16 %v649, %v645
    %v694 = vpack.c.b16 %v650, %v646
    %v695 = vpack.c.b16 %v651, %v647
    %v696 = vpack.c.b16 %v656, %v652
    %v697 = vpack.c.b16 %v657, %v653
    %v698 = vpack.c.b16 %v658, %v654
    %v699 = vpack.c.b16 %v659, %v655
    %v700 = vpack.c.b16 %v664, %v660
    %v701 = vpack.c.b16 %v665, %v661
    %v702 = vpack.c.b16 %v666, %v662
    %v703 = vpack.c.b16 %v667, %v663
    %v704 = vpack.c.b16 %v672, %v668
    %v705 = vpack.c.b16 %v673, %v669
    %v706 = vpack.c.b16 %v674, %v670
    %v707 = vpack.c.b16 %v675, %v671
    %740 = vmatpush.bf16.msra.mxu0 %v704
    %741 = vmatpush.bf16.msra.mxu0 %v700
    %742 = vmatpush.bf16.msra.mxu0 %v696
    %743 = vmatpush.bf16.msra.mxu0 %v692
    %744 = vmatpush.bf16.msra.mxu0 %v688
    %745 = vmatpush.bf16.msra.mxu0 %v684
    %746 = vmatpush.bf16.msra.mxu0 %v680
    %747 = vmatpush.bf16.msra.mxu0 %v676
    %748 = vmatmul.bf16.gmra.mxu0 0
    %v749 = vpop.f32.mrf.mxu0
    %v750 = vadd.f32 0.0, %v749
    %v751 = vpop.f32.mrf.mxu0
    %752 = vdwg.mxu0
    %753 = vmatpush.bf16.msra.mxu0 %v705
    %754 = vmatpush.bf16.msra.mxu0 %v701
    %755 = vmatpush.bf16.msra.mxu0 %v697
    %756 = vmatpush.bf16.msra.mxu0 %v693
    %757 = vmatpush.bf16.msra.mxu0 %v689
    %758 = vmatpush.bf16.msra.mxu0 %v685
    %759 = vmatpush.bf16.msra.mxu0 %v681
    %760 = vmatpush.bf16.msra.mxu0 %v677
    %761 = vmatmul.bf16.gmra.mxu0 0
    %v762 = vpop.f32.mrf.mxu0
    %v763 = vadd.f32 0.0, %v762
    %v764 = vpop.f32.mrf.mxu0
    %765 = vdwg.mxu0
    %766 = vmatpush.bf16.msra.mxu0 %v706
    %767 = vmatpush.bf16.msra.mxu0 %v702
    %768 = vmatpush.bf16.msra.mxu0 %v698
    %769 = vmatpush.bf16.msra.mxu0 %v694
    %770 = vmatpush.bf16.msra.mxu0 %v690
    %771 = vmatpush.bf16.msra.mxu0 %v686
    %772 = vmatpush.bf16.msra.mxu0 %v682
    %773 = vmatpush.bf16.msra.mxu0 %v678
    %774 = vmatmul.bf16.gmra.mxu0 0
    %v775 = vpop.f32.mrf.mxu0
    %v776 = vadd.f32 0.0, %v775
    %v777 = vpop.f32.mrf.mxu0
    %778 = vdwg.mxu0
    %779 = vmatpush.bf16.msra.mxu0 %v707
    %780 = vmatpush.bf16.msra.mxu0 %v703
    %781 = vmatpush.bf16.msra.mxu0 %v699
    %782 = vmatpush.bf16.msra.mxu0 %v695
    %783 = vmatpush.bf16.msra.mxu0 %v691
    %784 = vmatpush.bf16.msra.mxu0 %v687
    %785 = vmatpush.bf16.msra.mxu0 %v683
    %786 = vmatpush.bf16.msra.mxu0 %v679
    %787 = vmatmul.bf16.gmra.mxu0 0
    %v788 = vpop.f32.mrf.mxu0
    %v789 = vadd.f32 0.0, %v788
    %v790 = vpop.f32.mrf.mxu0
    %791 = vdwg.mxu0
    %v792 = vadd.f32 %v576, %v750
    %v793 = vadd.f32 %v577, %v763
    %v794 = vadd.f32 %v578, %v776
    %v795 = vadd.f32 %v579, %v789
    %v796 = vxor.u32 %v792, 2147483648
    %v797 = vxor.u32 %v793, 2147483648
    %v798 = vxor.u32 %v794, 2147483648
    %v799 = vmul.f32 %v796, 1.442695
    %v800 = vpow.pop %v799
    %v801 = vmul.f32 %v797, 1.442695
    %v802 = vpow.pop %v801
    %v803 = vmul.f32 %v798, 1.442695
    %v804 = vpow.pop %v803
    %v805 = vadd.f32 %v800, 1.0
    %v806 = vadd.f32 %v802, 1.0
    %v807 = vadd.f32 %v804, 1.0
    %v808 = vrcp.pop %v805
    %v809 = vmul.f32 %v805, %v808
    %v810 = vsub.f32 1.0, %v809
    %v811 = vmul.f32 %v808, %v810
    %v812 = vadd.f32 %v808, %v811
    %vm813 = vweird.f32 %v805
    %vm814 = vweird.f32 %v808
    %vm815 = vmor %vm813, %vm814
    %v816 = vsel %vm815, %v808, %v812
    %v817 = vand.u32 2147483647, %v805
    %vm818 = vcmp.eq.f32.partialorder %v817, 8.507059e+37
    %v819 = vand.u32 %v805, 2147483648
    %v820 = vor.u32 1.1754944e-38, %v819
    %v821 = vsel %vm818, %v820, %v816
    %v822 = vmul.f32 1.0, %v821
    %v823 = vrcp.pop %v806
    %v824 = vmul.f32 %v806, %v823
    %v825 = vsub.f32 1.0, %v824
    %v826 = vmul.f32 %v823, %v825
    %v827 = vadd.f32 %v823, %v826
    %vm828 = vweird.f32 %v806
    %vm829 = vweird.f32 %v823
    %vm830 = vmor %vm828, %vm829
    %v831 = vsel %vm830, %v823, %v827
    %v832 = vand.u32 2147483647, %v806
    %vm833 = vcmp.eq.f32.partialorder %v832, 8.507059e+37
    %v834 = vand.u32 %v806, 2147483648
    %v835 = vor.u32 1.1754944e-38, %v834
    %v836 = vsel %vm833, %v835, %v831
    %v837 = vmul.f32 1.0, %v836
    %v838 = vrcp.pop %v807
    %v839 = vmul.f32 %v807, %v838
    %v840 = vsub.f32 1.0, %v839
    %v841 = vmul.f32 %v838, %v840
    %v842 = vadd.f32 %v838, %v841
    %vm843 = vweird.f32 %v807
    %vm844 = vweird.f32 %v838
    %vm845 = vmor %vm843, %vm844
    %v846 = vsel %vm845, %v838, %v842
    %v847 = vand.u32 2147483647, %v807
    %vm848 = vcmp.eq.f32.partialorder %v847, 8.507059e+37
    %v849 = vand.u32 %v807, 2147483648
    %v850 = vor.u32 1.1754944e-38, %v849
    %v851 = vsel %vm848, %v850, %v846
    %v852 = vmul.f32 1.0, %v851
    %v853 = vtanh.pop %v795
    %v854 = vmul.f32 %v837, 0.0
    %v855 = vmul.f32 %v822, %v853
    %v856 = vadd.f32 %v854, %v855
    %v857 = vtanh.pop %v856
    %v858 = vmul.f32 %v852, %v857
    %859 = vst [vmem:[#allocation2] sm:$0xff] %v858
    %s860 = scalar_lea.vmem [#allocation3], 32
    %v861 = vld [vmem:[%s860] sm:$0xff]
    %v862 = vld [vmem:[%s860 + $0x8] sm:$0xff]
    %v863 = vld [vmem:[%s860 + $0x10] sm:$0xff]
    %v864 = vld [vmem:[%s860 + $0x18] sm:$0xff]
    %v865 = vpack.c.bf16 %v858, %v858
    %866 = vmatpush.bf16.msra.mxu0 %v704
    %867 = vmatpush.bf16.msra.mxu0 %v700
    %868 = vmatpush.bf16.msra.mxu0 %v696
    %869 = vmatpush.bf16.msra.mxu0 %v692
    %870 = vmatpush.bf16.msra.mxu0 %v688
    %871 = vmatpush.bf16.msra.mxu0 %v684
    %872 = vmatpush.bf16.msra.mxu0 %v680
    %873 = vmatpush.bf16.msra.mxu0 %v676
    %874 = vmatmul.bf16.gmra.mxu0 %v865
    %v875 = vpop.f32.mrf.mxu0
    %v876 = vadd.f32 0.0, %v875
    %v877 = vpop.f32.mrf.mxu0
    %878 = vdwg.mxu0
    %879 = vmatpush.bf16.msra.mxu0 %v705
    %880 = vmatpush.bf16.msra.mxu0 %v701
    %881 = vmatpush.bf16.msra.mxu0 %v697
    %882 = vmatpush.bf16.msra.mxu0 %v693
    %883 = vmatpush.bf16.msra.mxu0 %v689
    %884 = vmatpush.bf16.msra.mxu0 %v685
    %885 = vmatpush.bf16.msra.mxu0 %v681
    %886 = vmatpush.bf16.msra.mxu0 %v677
    %887 = vmatmul.bf16.gmra.mxu0 %v865
    %v888 = vpop.f32.mrf.mxu0
    %v889 = vadd.f32 0.0, %v888
    %v890 = vpop.f32.mrf.mxu0
    %891 = vdwg.mxu0
    %892 = vmatpush.bf16.msra.mxu0 %v706
    %893 = vmatpush.bf16.msra.mxu0 %v702
    %894 = vmatpush.bf16.msra.mxu0 %v698
    %895 = vmatpush.bf16.msra.mxu0 %v694
    %896 = vmatpush.bf16.msra.mxu0 %v690
    %897 = vmatpush.bf16.msra.mxu0 %v686
    %898 = vmatpush.bf16.msra.mxu0 %v682
    %899 = vmatpush.bf16.msra.mxu0 %v678
    %900 = vmatmul.bf16.gmra.mxu0 %v865
    %v901 = vpop.f32.mrf.mxu0
    %v902 = vadd.f32 0.0, %v901
    %v903 = vpop.f32.mrf.mxu0
    %904 = vdwg.mxu0
    %905 = vmatpush.bf16.msra.mxu0 %v707
    %906 = vmatpush.bf16.msra.mxu0 %v703
    %907 = vmatpush.bf16.msra.mxu0 %v699
    %908 = vmatpush.bf16.msra.mxu0 %v695
    %909 = vmatpush.bf16.msra.mxu0 %v691
    %910 = vmatpush.bf16.msra.mxu0 %v687
    %911 = vmatpush.bf16.msra.mxu0 %v683
    %912 = vmatpush.bf16.msra.mxu0 %v679
    %913 = vmatmul.bf16.gmra.mxu0 %v865
    %v914 = vpop.f32.mrf.mxu0
    %v915 = vadd.f32 0.0, %v914
    %v916 = vpop.f32.mrf.mxu0
    %917 = vdwg.mxu0
    %v918 = vadd.f32 %v861, %v876
    %v919 = vadd.f32 %v862, %v889
    %v920 = vadd.f32 %v863, %v902
    %v921 = vadd.f32 %v864, %v915
    %v922 = vxor.u32 %v918, 2147483648
    %v923 = vxor.u32 %v919, 2147483648
    %v924 = vxor.u32 %v920, 2147483648
    %v925 = vmul.f32 %v922, 1.442695
    %v926 = vpow.pop %v925
    %v927 = vmul.f32 %v923, 1.442695
    %v928 = vpow.pop %v927
    %v929 = vmul.f32 %v924, 1.442695
    %v930 = vpow.pop %v929
    %v931 = vadd.f32 %v926, 1.0
    %v932 = vadd.f32 %v928, 1.0
    %v933 = vadd.f32 %v930, 1.0
    %v934 = vrcp.pop %v931
    %v935 = vmul.f32 %v931, %v934
    %v936 = vsub.f32 1.0, %v935
    %v937 = vmul.f32 %v934, %v936
    %v938 = vadd.f32 %v934, %v937
    %vm939 = vweird.f32 %v931
    %vm940 = vweird.f32 %v934
    %vm941 = vmor %vm939, %vm940
    %v942 = vsel %vm941, %v934, %v938
    %v943 = vand.u32 2147483647, %v931
    %vm944 = vcmp.eq.f32.partialorder %v943, 8.507059e+37
    %v945 = vand.u32 %v931, 2147483648
    %v946 = vor.u32 1.1754944e-38, %v945
    %v947 = vsel %vm944, %v946, %v942
    %v948 = vmul.f32 1.0, %v947
    %v949 = vrcp.pop %v932
    %v950 = vmul.f32 %v932, %v949
    %v951 = vsub.f32 1.0, %v950
    %v952 = vmul.f32 %v949, %v951
    %v953 = vadd.f32 %v949, %v952
    %vm954 = vweird.f32 %v932
    %vm955 = vweird.f32 %v949
    %vm956 = vmor %vm954, %vm955
    %v957 = vsel %vm956, %v949, %v953
    %v958 = vand.u32 2147483647, %v932
    %vm959 = vcmp.eq.f32.partialorder %v958, 8.507059e+37
    %v960 = vand.u32 %v932, 2147483648
    %v961 = vor.u32 1.1754944e-38, %v960
    %v962 = vsel %vm959, %v961, %v957
    %v963 = vmul.f32 1.0, %v962
    %v964 = vrcp.pop %v933
    %v965 = vmul.f32 %v933, %v964
    %v966 = vsub.f32 1.0, %v965
    %v967 = vmul.f32 %v964, %v966
    %v968 = vadd.f32 %v964, %v967
    %vm969 = vweird.f32 %v933
    %vm970 = vweird.f32 %v964
    %vm971 = vmor %vm969, %vm970
    %v972 = vsel %vm971, %v964, %v968
    %v973 = vand.u32 2147483647, %v933
    %vm974 = vcmp.eq.f32.partialorder %v973, 8.507059e+37
    %v975 = vand.u32 %v933, 2147483648
    %v976 = vor.u32 1.1754944e-38, %v975
    %v977 = vsel %vm974, %v976, %v972
    %v978 = vmul.f32 1.0, %v977
    %v979 = vtanh.pop %v921
    %v980 = vmul.f32 %v963, %v856
    %v981 = vmul.f32 %v948, %v979
    %v982 = vadd.f32 %v980, %v981
    %v983 = vtanh.pop %v982
    %v984 = vmul.f32 %v978, %v983
    %s985 = scalar_lea.vmem [#allocation2], 8
    %986 = vst [vmem:[%s985] sm:$0xff] %v984
    %s987 = scalar_lea.vmem [#allocation3], 64
    %v988 = vld [vmem:[%s987] sm:$0xff]
    %v989 = vld [vmem:[%s987 + $0x8] sm:$0xff]
    %v990 = vld [vmem:[%s987 + $0x10] sm:$0xff]
    %v991 = vld [vmem:[%s987 + $0x18] sm:$0xff]
    %v992 = vpack.c.bf16 %v984, %v984
    %993 = vmatpush.bf16.msra.mxu0 %v704
    %994 = vmatpush.bf16.msra.mxu0 %v700
    %995 = vmatpush.bf16.msra.mxu0 %v696
    %996 = vmatpush.bf16.msra.mxu0 %v692
    %997 = vmatpush.bf16.msra.mxu0 %v688
    %998 = vmatpush.bf16.msra.mxu0 %v684
    %999 = vmatpush.bf16.msra.mxu0 %v680
    %1000 = vmatpush.bf16.msra.mxu0 %v676
    %1001 = vmatmul.bf16.gmra.mxu0 %v992
    %v1002 = vpop.f32.mrf.mxu0
    %v1003 = vadd.f32 0.0, %v1002
    %v1004 = vpop.f32.mrf.mxu0
    %1005 = vdwg.mxu0
    %1006 = vmatpush.bf16.msra.mxu0 %v705
    %1007 = vmatpush.bf16.msra.mxu0 %v701
    %1008 = vmatpush.bf16.msra.mxu0 %v697
    %1009 = vmatpush.bf16.msra.mxu0 %v693
    %1010 = vmatpush.bf16.msra.mxu0 %v689
    %1011 = vmatpush.bf16.msra.mxu0 %v685
    %1012 = vmatpush.bf16.msra.mxu0 %v681
    %1013 = vmatpush.bf16.msra.mxu0 %v677
    %1014 = vmatmul.bf16.gmra.mxu0 %v992
    %v1015 = vpop.f32.mrf.mxu0
    %v1016 = vadd.f32 0.0, %v1015
    %v1017 = vpop.f32.mrf.mxu0
    %1018 = vdwg.mxu0
    %1019 = vmatpush.bf16.msra.mxu0 %v706
    %1020 = vmatpush.bf16.msra.mxu0 %v702
    %1021 = vmatpush.bf16.msra.mxu0 %v698
    %1022 = vmatpush.bf16.msra.mxu0 %v694
    %1023 = vmatpush.bf16.msra.mxu0 %v690
    %1024 = vmatpush.bf16.msra.mxu0 %v686
    %1025 = vmatpush.bf16.msra.mxu0 %v682
    %1026 = vmatpush.bf16.msra.mxu0 %v678
    %1027 = vmatmul.bf16.gmra.mxu0 %v992
    %v1028 = vpop.f32.mrf.mxu0
    %v1029 = vadd.f32 0.0, %v1028
    %v1030 = vpop.f32.mrf.mxu0
    %1031 = vdwg.mxu0
    %1032 = vmatpush.bf16.msra.mxu0 %v707
    %1033 = vmatpush.bf16.msra.mxu0 %v703
    %1034 = vmatpush.bf16.msra.mxu0 %v699
    %1035 = vmatpush.bf16.msra.mxu0 %v695
    %1036 = vmatpush.bf16.msra.mxu0 %v691
    %1037 = vmatpush.bf16.msra.mxu0 %v687
    %1038 = vmatpush.bf16.msra.mxu0 %v683
    %1039 = vmatpush.bf16.msra.mxu0 %v679
    %1040 = vmatmul.bf16.gmra.mxu0 %v992
    %v1041 = vpop.f32.mrf.mxu0
    %v1042 = vadd.f32 0.0, %v1041
    %v1043 = vpop.f32.mrf.mxu0
    %1044 = vdwg.mxu0
    %v1045 = vadd.f32 %v988, %v1003
    %v1046 = vadd.f32 %v989, %v1016
    %v1047 = vadd.f32 %v990, %v1029
    %v1048 = vadd.f32 %v991, %v1042
    %v1049 = vxor.u32 %v1045, 2147483648
    %v1050 = vxor.u32 %v1046, 2147483648
    %v1051 = vxor.u32 %v1047, 2147483648
    %v1052 = vmul.f32 %v1049, 1.442695
    %v1053 = vpow.pop %v1052
    %v1054 = vmul.f32 %v1050, 1.442695
    %v1055 = vpow.pop %v1054
    %v1056 = vmul.f32 %v1051, 1.442695
    %v1057 = vpow.pop %v1056
    %v1058 = vadd.f32 %v1053, 1.0
    %v1059 = vadd.f32 %v1055, 1.0
    %v1060 = vadd.f32 %v1057, 1.0
    %v1061 = vrcp.pop %v1058
    %v1062 = vmul.f32 %v1058, %v1061
    %v1063 = vsub.f32 1.0, %v1062
    %v1064 = vmul.f32 %v1061, %v1063
    %v1065 = vadd.f32 %v1061, %v1064
    %vm1066 = vweird.f32 %v1058
    %vm1067 = vweird.f32 %v1061
    %vm1068 = vmor %vm1066, %vm1067
    %v1069 = vsel %vm1068, %v1061, %v1065
    %v1070 = vand.u32 2147483647, %v1058
    %vm1071 = vcmp.eq.f32.partialorder %v1070, 8.507059e+37
    %v1072 = vand.u32 %v1058, 2147483648
    %v1073 = vor.u32 1.1754944e-38, %v1072
    %v1074 = vsel %vm1071, %v1073, %v1069
    %v1075 = vmul.f32 1.0, %v1074
    %v1076 = vrcp.pop %v1059
    %v1077 = vmul.f32 %v1059, %v1076
    %v1078 = vsub.f32 1.0, %v1077
    %v1079 = vmul.f32 %v1076, %v1078
    %v1080 = vadd.f32 %v1076, %v1079
    %vm1081 = vweird.f32 %v1059
    %vm1082 = vweird.f32 %v1076
    %vm1083 = vmor %vm1081, %vm1082
    %v1084 = vsel %vm1083, %v1076, %v1080
    %v1085 = vand.u32 2147483647, %v1059
    %vm1086 = vcmp.eq.f32.partialorder %v1085, 8.507059e+37
    %v1087 = vand.u32 %v1059, 2147483648
    %v1088 = vor.u32 1.1754944e-38, %v1087
    %v1089 = vsel %vm1086, %v1088, %v1084
    %v1090 = vmul.f32 1.0, %v1089
    %v1091 = vrcp.pop %v1060
    %v1092 = vmul.f32 %v1060, %v1091
    %v1093 = vsub.f32 1.0, %v1092
    %v1094 = vmul.f32 %v1091, %v1093
    %v1095 = vadd.f32 %v1091, %v1094
    %vm1096 = vweird.f32 %v1060
    %vm1097 = vweird.f32 %v1091
    %vm1098 = vmor %vm1096, %vm1097
    %v1099 = vsel %vm1098, %v1091, %v1095
    %v1100 = vand.u32 2147483647, %v1060
    %vm1101 = vcmp.eq.f32.partialorder %v1100, 8.507059e+37
    %v1102 = vand.u32 %v1060, 2147483648
    %v1103 = vor.u32 1.1754944e-38, %v1102
    %v1104 = vsel %vm1101, %v1103, %v1099
    %v1105 = vmul.f32 1.0, %v1104
    %v1106 = vtanh.pop %v1048
    %v1107 = vmul.f32 %v1090, %v982
    %v1108 = vmul.f32 %v1075, %v1106
    %v1109 = vadd.f32 %v1107, %v1108
    %v1110 = vtanh.pop %v1109
    %v1111 = vmul.f32 %v1105, %v1110
    %s1112 = scalar_lea.vmem [#allocation2], 16
    %1113 = vst [vmem:[%s1112] sm:$0xff] %v1111
    %s1114 = scalar_lea.vmem [#allocation3], 96
    %v1115 = vld [vmem:[%s1114] sm:$0xff]
    %v1116 = vld [vmem:[%s1114 + $0x8] sm:$0xff]
    %v1117 = vld [vmem:[%s1114 + $0x10] sm:$0xff]
    %v1118 = vld [vmem:[%s1114 + $0x18] sm:$0xff]
    %v1119 = vpack.c.bf16 %v1111, %v1111
    %1120 = vmatpush.bf16.msra.mxu0 %v704
    %1121 = vmatpush.bf16.msra.mxu0 %v700
    %1122 = vmatpush.bf16.msra.mxu0 %v696
    %1123 = vmatpush.bf16.msra.mxu0 %v692
    %1124 = vmatpush.bf16.msra.mxu0 %v688
    %1125 = vmatpush.bf16.msra.mxu0 %v684
    %1126 = vmatpush.bf16.msra.mxu0 %v680
    %1127 = vmatpush.bf16.msra.mxu0 %v676
    %1128 = vmatmul.bf16.gmra.mxu0 %v1119
    %v1129 = vpop.f32.mrf.mxu0
    %v1130 = vadd.f32 0.0, %v1129
    %v1131 = vpop.f32.mrf.mxu0
    %1132 = vdwg.mxu0
    %1133 = vmatpush.bf16.msra.mxu0 %v705
    %1134 = vmatpush.bf16.msra.mxu0 %v701
    %1135 = vmatpush.bf16.msra.mxu0 %v697
    %1136 = vmatpush.bf16.msra.mxu0 %v693
    %1137 = vmatpush.bf16.msra.mxu0 %v689
    %1138 = vmatpush.bf16.msra.mxu0 %v685
    %1139 = vmatpush.bf16.msra.mxu0 %v681
    %1140 = vmatpush.bf16.msra.mxu0 %v677
    %1141 = vmatmul.bf16.gmra.mxu0 %v1119
    %v1142 = vpop.f32.mrf.mxu0
    %v1143 = vadd.f32 0.0, %v1142
    %v1144 = vpop.f32.mrf.mxu0
    %1145 = vdwg.mxu0
    %1146 = vmatpush.bf16.msra.mxu0 %v706
    %1147 = vmatpush.bf16.msra.mxu0 %v702
    %1148 = vmatpush.bf16.msra.mxu0 %v698
    %1149 = vmatpush.bf16.msra.mxu0 %v694
    %1150 = vmatpush.bf16.msra.mxu0 %v690
    %1151 = vmatpush.bf16.msra.mxu0 %v686
    %1152 = vmatpush.bf16.msra.mxu0 %v682
    %1153 = vmatpush.bf16.msra.mxu0 %v678
    %1154 = vmatmul.bf16.gmra.mxu0 %v1119
    %v1155 = vpop.f32.mrf.mxu0
    %v1156 = vadd.f32 0.0, %v1155
    %v1157 = vpop.f32.mrf.mxu0
    %1158 = vdwg.mxu0
    %1159 = vmatpush.bf16.msra.mxu0 %v707
    %1160 = vmatpush.bf16.msra.mxu0 %v703
    %1161 = vmatpush.bf16.msra.mxu0 %v699
    %1162 = vmatpush.bf16.msra.mxu0 %v695
    %1163 = vmatpush.bf16.msra.mxu0 %v691
    %1164 = vmatpush.bf16.msra.mxu0 %v687
    %1165 = vmatpush.bf16.msra.mxu0 %v683
    %1166 = vmatpush.bf16.msra.mxu0 %v679
    %1167 = vmatmul.bf16.gmra.mxu0 %v1119
    %v1168 = vpop.f32.mrf.mxu0
    %v1169 = vadd.f32 0.0, %v1168
    %v1170 = vpop.f32.mrf.mxu0
    %1171 = vdwg.mxu0
    %v1172 = vadd.f32 %v1115, %v1130
    %v1173 = vadd.f32 %v1116, %v1143
    %v1174 = vadd.f32 %v1117, %v1156
    %v1175 = vadd.f32 %v1118, %v1169
    %v1176 = vxor.u32 %v1172, 2147483648
    %v1177 = vxor.u32 %v1173, 2147483648
    %v1178 = vxor.u32 %v1174, 2147483648
    %v1179 = vmul.f32 %v1176, 1.442695
    %v1180 = vpow.pop %v1179
    %v1181 = vmul.f32 %v1177, 1.442695
    %v1182 = vpow.pop %v1181
    %v1183 = vmul.f32 %v1178, 1.442695
    %v1184 = vpow.pop %v1183
    %v1185 = vadd.f32 %v1180, 1.0
    %v1186 = vadd.f32 %v1182, 1.0
    %v1187 = vadd.f32 %v1184, 1.0
    %v1188 = vrcp.pop %v1185
    %v1189 = vmul.f32 %v1185, %v1188
    %v1190 = vsub.f32 1.0, %v1189
    %v1191 = vmul.f32 %v1188, %v1190
    %v1192 = vadd.f32 %v1188, %v1191
    %vm1193 = vweird.f32 %v1185
    %vm1194 = vweird.f32 %v1188
    %vm1195 = vmor %vm1193, %vm1194
    %v1196 = vsel %vm1195, %v1188, %v1192
    %v1197 = vand.u32 2147483647, %v1185
    %vm1198 = vcmp.eq.f32.partialorder %v1197, 8.507059e+37
    %v1199 = vand.u32 %v1185, 2147483648
    %v1200 = vor.u32 1.1754944e-38, %v1199
    %v1201 = vsel %vm1198, %v1200, %v1196
    %v1202 = vmul.f32 1.0, %v1201
    %v1203 = vrcp.pop %v1186
    %v1204 = vmul.f32 %v1186, %v1203
    %v1205 = vsub.f32 1.0, %v1204
    %v1206 = vmul.f32 %v1203, %v1205
    %v1207 = vadd.f32 %v1203, %v1206
    %vm1208 = vweird.f32 %v1186
    %vm1209 = vweird.f32 %v1203
    %vm1210 = vmor %vm1208, %vm1209
    %v1211 = vsel %vm1210, %v1203, %v1207
    %v1212 = vand.u32 2147483647, %v1186
    %vm1213 = vcmp.eq.f32.partialorder %v1212, 8.507059e+37
    %v1214 = vand.u32 %v1186, 2147483648
    %v1215 = vor.u32 1.1754944e-38, %v1214
    %v1216 = vsel %vm1213, %v1215, %v1211
    %v1217 = vmul.f32 1.0, %v1216
    %v1218 = vrcp.pop %v1187
    %v1219 = vmul.f32 %v1187, %v1218
    %v1220 = vsub.f32 1.0, %v1219
    %v1221 = vmul.f32 %v1218, %v1220
    %v1222 = vadd.f32 %v1218, %v1221
    %vm1223 = vweird.f32 %v1187
    %vm1224 = vweird.f32 %v1218
    %vm1225 = vmor %vm1223, %vm1224
    %v1226 = vsel %vm1225, %v1218, %v1222
    %v1227 = vand.u32 2147483647, %v1187
    %vm1228 = vcmp.eq.f32.partialorder %v1227, 8.507059e+37
    %v1229 = vand.u32 %v1187, 2147483648
    %v1230 = vor.u32 1.1754944e-38, %v1229
    %v1231 = vsel %vm1228, %v1230, %v1226
    %v1232 = vmul.f32 1.0, %v1231
    %v1233 = vtanh.pop %v1175
    %v1234 = vmul.f32 %v1217, %v1109
    %v1235 = vmul.f32 %v1202, %v1233
    %v1236 = vadd.f32 %v1234, %v1235
    %v1237 = vtanh.pop %v1236
    %v1238 = vmul.f32 %v1232, %v1237
    %s1239 = scalar_lea.vmem [#allocation2], 24
    %1240 = vst [vmem:[%s1239] sm:$0xff] %v1238
    %s1241 = scalar_lea.vmem [#allocation3], 128
    %v1242 = vld [vmem:[%s1241] sm:$0xff]
    %v1243 = vld [vmem:[%s1241 + $0x8] sm:$0xff]
    %v1244 = vld [vmem:[%s1241 + $0x10] sm:$0xff]
    %v1245 = vld [vmem:[%s1241 + $0x18] sm:$0xff]
    %v1246 = vpack.c.bf16 %v1238, %v1238
    %1247 = vmatpush.bf16.msra.mxu0 %v704
    %1248 = vmatpush.bf16.msra.mxu0 %v700
    %1249 = vmatpush.bf16.msra.mxu0 %v696
    %1250 = vmatpush.bf16.msra.mxu0 %v692
    %1251 = vmatpush.bf16.msra.mxu0 %v688
    %1252 = vmatpush.bf16.msra.mxu0 %v684
    %1253 = vmatpush.bf16.msra.mxu0 %v680
    %1254 = vmatpush.bf16.msra.mxu0 %v676
    %1255 = vmatmul.bf16.gmra.mxu0 %v1246
    %v1256 = vpop.f32.mrf.mxu0
    %v1257 = vadd.f32 0.0, %v1256
    %v1258 = vpop.f32.mrf.mxu0
    %1259 = vdwg.mxu0
    %1260 = vmatpush.bf16.msra.mxu0 %v705
    %1261 = vmatpush.bf16.msra.mxu0 %v701
    %1262 = vmatpush.bf16.msra.mxu0 %v697
    %1263 = vmatpush.bf16.msra.mxu0 %v693
    %1264 = vmatpush.bf16.msra.mxu0 %v689
    %1265 = vmatpush.bf16.msra.mxu0 %v685
    %1266 = vmatpush.bf16.msra.mxu0 %v681
    %1267 = vmatpush.bf16.msra.mxu0 %v677
    %1268 = vmatmul.bf16.gmra.mxu0 %v1246
    %v1269 = vpop.f32.mrf.mxu0
    %v1270 = vadd.f32 0.0, %v1269
    %v1271 = vpop.f32.mrf.mxu0
    %1272 = vdwg.mxu0
    %1273 = vmatpush.bf16.msra.mxu0 %v706
    %1274 = vmatpush.bf16.msra.mxu0 %v702
    %1275 = vmatpush.bf16.msra.mxu0 %v698
    %1276 = vmatpush.bf16.msra.mxu0 %v694
    %1277 = vmatpush.bf16.msra.mxu0 %v690
    %1278 = vmatpush.bf16.msra.mxu0 %v686
    %1279 = vmatpush.bf16.msra.mxu0 %v682
    %1280 = vmatpush.bf16.msra.mxu0 %v678
    %1281 = vmatmul.bf16.gmra.mxu0 %v1246
    %v1282 = vpop.f32.mrf.mxu0
    %v1283 = vadd.f32 0.0, %v1282
    %v1284 = vpop.f32.mrf.mxu0
    %1285 = vdwg.mxu0
    %1286 = vmatpush.bf16.msra.mxu0 %v707
    %1287 = vmatpush.bf16.msra.mxu0 %v703
    %1288 = vmatpush.bf16.msra.mxu0 %v699
    %1289 = vmatpush.bf16.msra.mxu0 %v695
    %1290 = vmatpush.bf16.msra.mxu0 %v691
    %1291 = vmatpush.bf16.msra.mxu0 %v687
    %1292 = vmatpush.bf16.msra.mxu0 %v683
    %1293 = vmatpush.bf16.msra.mxu0 %v679
    %1294 = vmatmul.bf16.gmra.mxu0 %v1246
    %v1295 = vpop.f32.mrf.mxu0
    %v1296 = vadd.f32 0.0, %v1295
    %v1297 = vpop.f32.mrf.mxu0
    %1298 = vdwg.mxu0
    %v1299 = vadd.f32 %v1242, %v1257
    %v1300 = vadd.f32 %v1243, %v1270
    %v1301 = vadd.f32 %v1244, %v1283
    %v1302 = vadd.f32 %v1245, %v1296
    %v1303 = vxor.u32 %v1299, 2147483648
    %v1304 = vxor.u32 %v1300, 2147483648
    %v1305 = vxor.u32 %v1301, 2147483648
    %v1306 = vmul.f32 %v1303, 1.442695
    %v1307 = vpow.pop %v1306
    %v1308 = vmul.f32 %v1304, 1.442695
    %v1309 = vpow.pop %v1308
    %v1310 = vmul.f32 %v1305, 1.442695
    %v1311 = vpow.pop %v1310
    %v1312 = vadd.f32 %v1307, 1.0
    %v1313 = vadd.f32 %v1309, 1.0
    %v1314 = vadd.f32 %v1311, 1.0
    %v1315 = vrcp.pop %v1312
    %v1316 = vmul.f32 %v1312, %v1315
    %v1317 = vsub.f32 1.0, %v1316
    %v1318 = vmul.f32 %v1315, %v1317
    %v1319 = vadd.f32 %v1315, %v1318
    %vm1320 = vweird.f32 %v1312
    %vm1321 = vweird.f32 %v1315
    %vm1322 = vmor %vm1320, %vm1321
    %v1323 = vsel %vm1322, %v1315, %v1319
    %v1324 = vand.u32 2147483647, %v1312
    %vm1325 = vcmp.eq.f32.partialorder %v1324, 8.507059e+37
    %v1326 = vand.u32 %v1312, 2147483648
    %v1327 = vor.u32 1.1754944e-38, %v1326
    %v1328 = vsel %vm1325, %v1327, %v1323
    %v1329 = vmul.f32 1.0, %v1328
    %v1330 = vrcp.pop %v1313
    %v1331 = vmul.f32 %v1313, %v1330
    %v1332 = vsub.f32 1.0, %v1331
    %v1333 = vmul.f32 %v1330, %v1332
    %v1334 = vadd.f32 %v1330, %v1333
    %vm1335 = vweird.f32 %v1313
    %vm1336 = vweird.f32 %v1330
    %vm1337 = vmor %vm1335, %vm1336
    %v1338 = vsel %vm1337, %v1330, %v1334
    %v1339 = vand.u32 2147483647, %v1313
    %vm1340 = vcmp.eq.f32.partialorder %v1339, 8.507059e+37
    %v1341 = vand.u32 %v1313, 2147483648
    %v1342 = vor.u32 1.1754944e-38, %v1341
    %v1343 = vsel %vm1340, %v1342, %v1338
    %v1344 = vmul.f32 1.0, %v1343
    %v1345 = vrcp.pop %v1314
    %v1346 = vmul.f32 %v1314, %v1345
    %v1347 = vsub.f32 1.0, %v1346
    %v1348 = vmul.f32 %v1345, %v1347
    %v1349 = vadd.f32 %v1345, %v1348
    %vm1350 = vweird.f32 %v1314
    %vm1351 = vweird.f32 %v1345
    %vm1352 = vmor %vm1350, %vm1351
    %v1353 = vsel %vm1352, %v1345, %v1349
    %v1354 = vand.u32 2147483647, %v1314
    %vm1355 = vcmp.eq.f32.partialorder %v1354, 8.507059e+37
    %v1356 = vand.u32 %v1314, 2147483648
    %v1357 = vor.u32 1.1754944e-38, %v1356
    %v1358 = vsel %vm1355, %v1357, %v1353
    %v1359 = vmul.f32 1.0, %v1358
    %v1360 = vtanh.pop %v1302
    %v1361 = vmul.f32 %v1344, %v1236
    %v1362 = vmul.f32 %v1329, %v1360
    %v1363 = vadd.f32 %v1361, %v1362
    %v1364 = vtanh.pop %v1363
    %v1365 = vmul.f32 %v1359, %v1364
    %s1366 = scalar_lea.vmem [#allocation2], 32
    %1367 = vst [vmem:[%s1366] sm:$0xff] %v1365
    %s1368 = scalar_lea.vmem [#allocation3], 160
    %v1369 = vld [vmem:[%s1368] sm:$0xff]
    %v1370 = vld [vmem:[%s1368 + $0x8] sm:$0xff]
    %v1371 = vld [vmem:[%s1368 + $0x10] sm:$0xff]
    %v1372 = vld [vmem:[%s1368 + $0x18] sm:$0xff]
    %v1373 = vpack.c.bf16 %v1365, %v1365
    %1374 = vmatpush.bf16.msra.mxu0 %v704
    %1375 = vmatpush.bf16.msra.mxu0 %v700
    %1376 = vmatpush.bf16.msra.mxu0 %v696
    %1377 = vmatpush.bf16.msra.mxu0 %v692
    %1378 = vmatpush.bf16.msra.mxu0 %v688
    %1379 = vmatpush.bf16.msra.mxu0 %v684
    %1380 = vmatpush.bf16.msra.mxu0 %v680
    %1381 = vmatpush.bf16.msra.mxu0 %v676
    %1382 = vmatmul.bf16.gmra.mxu0 %v1373
    %v1383 = vpop.f32.mrf.mxu0
    %v1384 = vadd.f32 0.0, %v1383
    %v1385 = vpop.f32.mrf.mxu0
    %1386 = vdwg.mxu0
    %1387 = vmatpush.bf16.msra.mxu0 %v705
    %1388 = vmatpush.bf16.msra.mxu0 %v701
    %1389 = vmatpush.bf16.msra.mxu0 %v697
    %1390 = vmatpush.bf16.msra.mxu0 %v693
    %1391 = vmatpush.bf16.msra.mxu0 %v689
    %1392 = vmatpush.bf16.msra.mxu0 %v685
    %1393 = vmatpush.bf16.msra.mxu0 %v681
    %1394 = vmatpush.bf16.msra.mxu0 %v677
    %1395 = vmatmul.bf16.gmra.mxu0 %v1373
    %v1396 = vpop.f32.mrf.mxu0
    %v1397 = vadd.f32 0.0, %v1396
    %v1398 = vpop.f32.mrf.mxu0
    %1399 = vdwg.mxu0
    %1400 = vmatpush.bf16.msra.mxu0 %v706
    %1401 = vmatpush.bf16.msra.mxu0 %v702
    %1402 = vmatpush.bf16.msra.mxu0 %v698
    %1403 = vmatpush.bf16.msra.mxu0 %v694
    %1404 = vmatpush.bf16.msra.mxu0 %v690
    %1405 = vmatpush.bf16.msra.mxu0 %v686
    %1406 = vmatpush.bf16.msra.mxu0 %v682
    %1407 = vmatpush.bf16.msra.mxu0 %v678
    %1408 = vmatmul.bf16.gmra.mxu0 %v1373
    %v1409 = vpop.f32.mrf.mxu0
    %v1410 = vadd.f32 0.0, %v1409
    %v1411 = vpop.f32.mrf.mxu0
    %1412 = vdwg.mxu0
    %1413 = vmatpush.bf16.msra.mxu0 %v707
    %1414 = vmatpush.bf16.msra.mxu0 %v703
    %1415 = vmatpush.bf16.msra.mxu0 %v699
    %1416 = vmatpush.bf16.msra.mxu0 %v695
    %1417 = vmatpush.bf16.msra.mxu0 %v691
    %1418 = vmatpush.bf16.msra.mxu0 %v687
    %1419 = vmatpush.bf16.msra.mxu0 %v683
    %1420 = vmatpush.bf16.msra.mxu0 %v679
    %1421 = vmatmul.bf16.gmra.mxu0 %v1373
    %v1422 = vpop.f32.mrf.mxu0
    %v1423 = vadd.f32 0.0, %v1422
    %v1424 = vpop.f32.mrf.mxu0
    %1425 = vdwg.mxu0
    %v1426 = vadd.f32 %v1369, %v1384
    %v1427 = vadd.f32 %v1370, %v1397
    %v1428 = vadd.f32 %v1371, %v1410
    %v1429 = vadd.f32 %v1372, %v1423
    %v1430 = vxor.u32 %v1426, 2147483648
    %v1431 = vxor.u32 %v1427, 2147483648
    %v1432 = vxor.u32 %v1428, 2147483648
    %v1433 = vmul.f32 %v1430, 1.442695
    %v1434 = vpow.pop %v1433
    %v1435 = vmul.f32 %v1431, 1.442695
    %v1436 = vpow.pop %v1435
    %v1437 = vmul.f32 %v1432, 1.442695
    %v1438 = vpow.pop %v1437
    %v1439 = vadd.f32 %v1434, 1.0
    %v1440 = vadd.f32 %v1436, 1.0
    %v1441 = vadd.f32 %v1438, 1.0
    %v1442 = vrcp.pop %v1439
    %v1443 = vmul.f32 %v1439, %v1442
    %v1444 = vsub.f32 1.0, %v1443
    %v1445 = vmul.f32 %v1442, %v1444
    %v1446 = vadd.f32 %v1442, %v1445
    %vm1447 = vweird.f32 %v1439
    %vm1448 = vweird.f32 %v1442
    %vm1449 = vmor %vm1447, %vm1448
    %v1450 = vsel %vm1449, %v1442, %v1446
    %v1451 = vand.u32 2147483647, %v1439
    %vm1452 = vcmp.eq.f32.partialorder %v1451, 8.507059e+37
    %v1453 = vand.u32 %v1439, 2147483648
    %v1454 = vor.u32 1.1754944e-38, %v1453
    %v1455 = vsel %vm1452, %v1454, %v1450
    %v1456 = vmul.f32 1.0, %v1455
    %v1457 = vrcp.pop %v1440
    %v1458 = vmul.f32 %v1440, %v1457
    %v1459 = vsub.f32 1.0, %v1458
    %v1460 = vmul.f32 %v1457, %v1459
    %v1461 = vadd.f32 %v1457, %v1460
    %vm1462 = vweird.f32 %v1440
    %vm1463 = vweird.f32 %v1457
    %vm1464 = vmor %vm1462, %vm1463
    %v1465 = vsel %vm1464, %v1457, %v1461
    %v1466 = vand.u32 2147483647, %v1440
    %vm1467 = vcmp.eq.f32.partialorder %v1466, 8.507059e+37
    %v1468 = vand.u32 %v1440, 2147483648
    %v1469 = vor.u32 1.1754944e-38, %v1468
    %v1470 = vsel %vm1467, %v1469, %v1465
    %v1471 = vmul.f32 1.0, %v1470
    %v1472 = vrcp.pop %v1441
    %v1473 = vmul.f32 %v1441, %v1472
    %v1474 = vsub.f32 1.0, %v1473
    %v1475 = vmul.f32 %v1472, %v1474
    %v1476 = vadd.f32 %v1472, %v1475
    %vm1477 = vweird.f32 %v1441
    %vm1478 = vweird.f32 %v1472
    %vm1479 = vmor %vm1477, %vm1478
    %v1480 = vsel %vm1479, %v1472, %v1476
    %v1481 = vand.u32 2147483647, %v1441
    %vm1482 = vcmp.eq.f32.partialorder %v1481, 8.507059e+37
    %v1483 = vand.u32 %v1441, 2147483648
    %v1484 = vor.u32 1.1754944e-38, %v1483
    %v1485 = vsel %vm1482, %v1484, %v1480
    %v1486 = vmul.f32 1.0, %v1485
    %v1487 = vtanh.pop %v1429
    %v1488 = vmul.f32 %v1471, %v1363
    %v1489 = vmul.f32 %v1456, %v1487
    %v1490 = vadd.f32 %v1488, %v1489
    %v1491 = vtanh.pop %v1490
    %v1492 = vmul.f32 %v1486, %v1491
    %s1493 = scalar_lea.vmem [#allocation2], 40
    %1494 = vst [vmem:[%s1493] sm:$0xff] %v1492
    %s1495 = scalar_lea.vmem [#allocation3], 192
    %v1496 = vld [vmem:[%s1495] sm:$0xff]
    %v1497 = vld [vmem:[%s1495 + $0x8] sm:$0xff]
    %v1498 = vld [vmem:[%s1495 + $0x10] sm:$0xff]
    %v1499 = vld [vmem:[%s1495 + $0x18] sm:$0xff]
    %v1500 = vpack.c.bf16 %v1492, %v1492
    %1501 = vmatpush.bf16.msra.mxu0 %v704
    %1502 = vmatpush.bf16.msra.mxu0 %v700
    %1503 = vmatpush.bf16.msra.mxu0 %v696
    %1504 = vmatpush.bf16.msra.mxu0 %v692
    %1505 = vmatpush.bf16.msra.mxu0 %v688
    %1506 = vmatpush.bf16.msra.mxu0 %v684
    %1507 = vmatpush.bf16.msra.mxu0 %v680
    %1508 = vmatpush.bf16.msra.mxu0 %v676
    %1509 = vmatmul.bf16.gmra.mxu0 %v1500
    %v1510 = vpop.f32.mrf.mxu0
    %v1511 = vadd.f32 0.0, %v1510
    %v1512 = vpop.f32.mrf.mxu0
    %1513 = vdwg.mxu0
    %1514 = vmatpush.bf16.msra.mxu0 %v705
    %1515 = vmatpush.bf16.msra.mxu0 %v701
    %1516 = vmatpush.bf16.msra.mxu0 %v697
    %1517 = vmatpush.bf16.msra.mxu0 %v693
    %1518 = vmatpush.bf16.msra.mxu0 %v689
    %1519 = vmatpush.bf16.msra.mxu0 %v685
    %1520 = vmatpush.bf16.msra.mxu0 %v681
    %1521 = vmatpush.bf16.msra.mxu0 %v677
    %1522 = vmatmul.bf16.gmra.mxu0 %v1500
    %v1523 = vpop.f32.mrf.mxu0
    %v1524 = vadd.f32 0.0, %v1523
    %v1525 = vpop.f32.mrf.mxu0
    %1526 = vdwg.mxu0
    %1527 = vmatpush.bf16.msra.mxu0 %v706
    %1528 = vmatpush.bf16.msra.mxu0 %v702
    %1529 = vmatpush.bf16.msra.mxu0 %v698
    %1530 = vmatpush.bf16.msra.mxu0 %v694
    %1531 = vmatpush.bf16.msra.mxu0 %v690
    %1532 = vmatpush.bf16.msra.mxu0 %v686
    %1533 = vmatpush.bf16.msra.mxu0 %v682
    %1534 = vmatpush.bf16.msra.mxu0 %v678
    %1535 = vmatmul.bf16.gmra.mxu0 %v1500
    %v1536 = vpop.f32.mrf.mxu0
    %v1537 = vadd.f32 0.0, %v1536
    %v1538 = vpop.f32.mrf.mxu0
    %1539 = vdwg.mxu0
    %1540 = vmatpush.bf16.msra.mxu0 %v707
    %1541 = vmatpush.bf16.msra.mxu0 %v703
    %1542 = vmatpush.bf16.msra.mxu0 %v699
    %1543 = vmatpush.bf16.msra.mxu0 %v695
    %1544 = vmatpush.bf16.msra.mxu0 %v691
    %1545 = vmatpush.bf16.msra.mxu0 %v687
    %1546 = vmatpush.bf16.msra.mxu0 %v683
    %1547 = vmatpush.bf16.msra.mxu0 %v679
    %1548 = vmatmul.bf16.gmra.mxu0 %v1500
    %v1549 = vpop.f32.mrf.mxu0
    %v1550 = vadd.f32 0.0, %v1549
    %v1551 = vpop.f32.mrf.mxu0
    %1552 = vdwg.mxu0
    %v1553 = vadd.f32 %v1496, %v1511
    %v1554 = vadd.f32 %v1497, %v1524
    %v1555 = vadd.f32 %v1498, %v1537
    %v1556 = vadd.f32 %v1499, %v1550
    %v1557 = vxor.u32 %v1553, 2147483648
    %v1558 = vxor.u32 %v1554, 2147483648
    %v1559 = vxor.u32 %v1555, 2147483648
    %v1560 = vmul.f32 %v1557, 1.442695
    %v1561 = vpow.pop %v1560
    %v1562 = vmul.f32 %v1558, 1.442695
    %v1563 = vpow.pop %v1562
    %v1564 = vmul.f32 %v1559, 1.442695
    %v1565 = vpow.pop %v1564
    %v1566 = vadd.f32 %v1561, 1.0
    %v1567 = vadd.f32 %v1563, 1.0
    %v1568 = vadd.f32 %v1565, 1.0
    %v1569 = vrcp.pop %v1566
    %v1570 = vmul.f32 %v1566, %v1569
    %v1571 = vsub.f32 1.0, %v1570
    %v1572 = vmul.f32 %v1569, %v1571
    %v1573 = vadd.f32 %v1569, %v1572
    %vm1574 = vweird.f32 %v1566
    %vm1575 = vweird.f32 %v1569
    %vm1576 = vmor %vm1574, %vm1575
    %v1577 = vsel %vm1576, %v1569, %v1573
    %v1578 = vand.u32 2147483647, %v1566
    %vm1579 = vcmp.eq.f32.partialorder %v1578, 8.507059e+37
    %v1580 = vand.u32 %v1566, 2147483648
    %v1581 = vor.u32 1.1754944e-38, %v1580
    %v1582 = vsel %vm1579, %v1581, %v1577
    %v1583 = vmul.f32 1.0, %v1582
    %v1584 = vrcp.pop %v1567
    %v1585 = vmul.f32 %v1567, %v1584
    %v1586 = vsub.f32 1.0, %v1585
    %v1587 = vmul.f32 %v1584, %v1586
    %v1588 = vadd.f32 %v1584, %v1587
    %vm1589 = vweird.f32 %v1567
    %vm1590 = vweird.f32 %v1584
    %vm1591 = vmor %vm1589, %vm1590
    %v1592 = vsel %vm1591, %v1584, %v1588
    %v1593 = vand.u32 2147483647, %v1567
    %vm1594 = vcmp.eq.f32.partialorder %v1593, 8.507059e+37
    %v1595 = vand.u32 %v1567, 2147483648
    %v1596 = vor.u32 1.1754944e-38, %v1595
    %v1597 = vsel %vm1594, %v1596, %v1592
    %v1598 = vmul.f32 1.0, %v1597
    %v1599 = vrcp.pop %v1568
    %v1600 = vmul.f32 %v1568, %v1599
    %v1601 = vsub.f32 1.0, %v1600
    %v1602 = vmul.f32 %v1599, %v1601
    %v1603 = vadd.f32 %v1599, %v1602
    %vm1604 = vweird.f32 %v1568
    %vm1605 = vweird.f32 %v1599
    %vm1606 = vmor %vm1604, %vm1605
    %v1607 = vsel %vm1606, %v1599, %v1603
    %v1608 = vand.u32 2147483647, %v1568
    %vm1609 = vcmp.eq.f32.partialorder %v1608, 8.507059e+37
    %v1610 = vand.u32 %v1568, 2147483648
    %v1611 = vor.u32 1.1754944e-38, %v1610
    %v1612 = vsel %vm1609, %v1611, %v1607
    %v1613 = vmul.f32 1.0, %v1612
    %v1614 = vtanh.pop %v1556
    %v1615 = vmul.f32 %v1598, %v1490
    %v1616 = vmul.f32 %v1583, %v1614
    %v1617 = vadd.f32 %v1615, %v1616
    %v1618 = vtanh.pop %v1617
    %v1619 = vmul.f32 %v1613, %v1618
    %s1620 = scalar_lea.vmem [#allocation2], 48
    %1621 = vst [vmem:[%s1620] sm:$0xff] %v1619
    %s1622 = scalar_lea.vmem [#allocation3], 224
    %v1623 = vld [vmem:[%s1622] sm:$0xff]
    %v1624 = vld [vmem:[%s1622 + $0x8] sm:$0xff]
    %v1625 = vld [vmem:[%s1622 + $0x10] sm:$0xff]
    %v1626 = vld [vmem:[%s1622 + $0x18] sm:$0xff]
    %v1627 = vpack.c.bf16 %v1619, %v1619
    %1628 = vmatpush.bf16.msra.mxu0 %v704
    %1629 = vmatpush.bf16.msra.mxu0 %v700
    %1630 = vmatpush.bf16.msra.mxu0 %v696
    %1631 = vmatpush.bf16.msra.mxu0 %v692
    %1632 = vmatpush.bf16.msra.mxu0 %v688
    %1633 = vmatpush.bf16.msra.mxu0 %v684
    %1634 = vmatpush.bf16.msra.mxu0 %v680
    %1635 = vmatpush.bf16.msra.mxu0 %v676
    %1636 = vmatmul.bf16.gmra.mxu0 %v1627
    %v1637 = vpop.f32.mrf.mxu0
    %v1638 = vadd.f32 0.0, %v1637
    %v1639 = vpop.f32.mrf.mxu0
    %1640 = vdwg.mxu0
    %1641 = vmatpush.bf16.msra.mxu0 %v705
    %1642 = vmatpush.bf16.msra.mxu0 %v701
    %1643 = vmatpush.bf16.msra.mxu0 %v697
    %1644 = vmatpush.bf16.msra.mxu0 %v693
    %1645 = vmatpush.bf16.msra.mxu0 %v689
    %1646 = vmatpush.bf16.msra.mxu0 %v685
    %1647 = vmatpush.bf16.msra.mxu0 %v681
    %1648 = vmatpush.bf16.msra.mxu0 %v677
    %1649 = vmatmul.bf16.gmra.mxu0 %v1627
    %v1650 = vpop.f32.mrf.mxu0
    %v1651 = vadd.f32 0.0, %v1650
    %v1652 = vpop.f32.mrf.mxu0
    %1653 = vdwg.mxu0
    %1654 = vmatpush.bf16.msra.mxu0 %v706
    %1655 = vmatpush.bf16.msra.mxu0 %v702
    %1656 = vmatpush.bf16.msra.mxu0 %v698
    %1657 = vmatpush.bf16.msra.mxu0 %v694
    %1658 = vmatpush.bf16.msra.mxu0 %v690
    %1659 = vmatpush.bf16.msra.mxu0 %v686
    %1660 = vmatpush.bf16.msra.mxu0 %v682
    %1661 = vmatpush.bf16.msra.mxu0 %v678
    %1662 = vmatmul.bf16.gmra.mxu0 %v1627
    %v1663 = vpop.f32.mrf.mxu0
    %v1664 = vadd.f32 0.0, %v1663
    %v1665 = vpop.f32.mrf.mxu0
    %1666 = vdwg.mxu0
    %1667 = vmatpush.bf16.msra.mxu0 %v707
    %1668 = vmatpush.bf16.msra.mxu0 %v703
    %1669 = vmatpush.bf16.msra.mxu0 %v699
    %1670 = vmatpush.bf16.msra.mxu0 %v695
    %1671 = vmatpush.bf16.msra.mxu0 %v691
    %1672 = vmatpush.bf16.msra.mxu0 %v687
    %1673 = vmatpush.bf16.msra.mxu0 %v683
    %1674 = vmatpush.bf16.msra.mxu0 %v679
    %1675 = vmatmul.bf16.gmra.mxu0 %v1627
    %v1676 = vpop.f32.mrf.mxu0
    %v1677 = vadd.f32 0.0, %v1676
    %v1678 = vpop.f32.mrf.mxu0
    %1679 = vdwg.mxu0
    %v1680 = vadd.f32 %v1623, %v1638
    %v1681 = vadd.f32 %v1624, %v1651
    %v1682 = vadd.f32 %v1625, %v1664
    %v1683 = vadd.f32 %v1626, %v1677
    %v1684 = vxor.u32 %v1680, 2147483648
    %v1685 = vxor.u32 %v1681, 2147483648
    %v1686 = vxor.u32 %v1682, 2147483648
    %v1687 = vmul.f32 %v1684, 1.442695
    %v1688 = vpow.pop %v1687
    %v1689 = vmul.f32 %v1685, 1.442695
    %v1690 = vpow.pop %v1689
    %v1691 = vmul.f32 %v1686, 1.442695
    %v1692 = vpow.pop %v1691
    %v1693 = vadd.f32 %v1688, 1.0
    %v1694 = vadd.f32 %v1690, 1.0
    %v1695 = vadd.f32 %v1692, 1.0
    %v1696 = vrcp.pop %v1693
    %v1697 = vmul.f32 %v1693, %v1696
    %v1698 = vsub.f32 1.0, %v1697
    %v1699 = vmul.f32 %v1696, %v1698
    %v1700 = vadd.f32 %v1696, %v1699
    %vm1701 = vweird.f32 %v1693
    %vm1702 = vweird.f32 %v1696
    %vm1703 = vmor %vm1701, %vm1702
    %v1704 = vsel %vm1703, %v1696, %v1700
    %v1705 = vand.u32 2147483647, %v1693
    %vm1706 = vcmp.eq.f32.partialorder %v1705, 8.507059e+37
    %v1707 = vand.u32 %v1693, 2147483648
    %v1708 = vor.u32 1.1754944e-38, %v1707
    %v1709 = vsel %vm1706, %v1708, %v1704
    %v1710 = vmul.f32 1.0, %v1709
    %v1711 = vrcp.pop %v1694
    %v1712 = vmul.f32 %v1694, %v1711
    %v1713 = vsub.f32 1.0, %v1712
    %v1714 = vmul.f32 %v1711, %v1713
    %v1715 = vadd.f32 %v1711, %v1714
    %vm1716 = vweird.f32 %v1694
    %vm1717 = vweird.f32 %v1711
    %vm1718 = vmor %vm1716, %vm1717
    %v1719 = vsel %vm1718, %v1711, %v1715
    %v1720 = vand.u32 2147483647, %v1694
    %vm1721 = vcmp.eq.f32.partialorder %v1720, 8.507059e+37
    %v1722 = vand.u32 %v1694, 2147483648
    %v1723 = vor.u32 1.1754944e-38, %v1722
    %v1724 = vsel %vm1721, %v1723, %v1719
    %v1725 = vmul.f32 1.0, %v1724
    %v1726 = vrcp.pop %v1695
    %v1727 = vmul.f32 %v1695, %v1726
    %v1728 = vsub.f32 1.0, %v1727
    %v1729 = vmul.f32 %v1726, %v1728
    %v1730 = vadd.f32 %v1726, %v1729
    %vm1731 = vweird.f32 %v1695
    %vm1732 = vweird.f32 %v1726
    %vm1733 = vmor %vm1731, %vm1732
    %v1734 = vsel %vm1733, %v1726, %v1730
    %v1735 = vand.u32 2147483647, %v1695
    %vm1736 = vcmp.eq.f32.partialorder %v1735, 8.507059e+37
    %v1737 = vand.u32 %v1695, 2147483648
    %v1738 = vor.u32 1.1754944e-38, %v1737
    %v1739 = vsel %vm1736, %v1738, %v1734
    %v1740 = vmul.f32 1.0, %v1739
    %v1741 = vtanh.pop %v1683
    %v1742 = vmul.f32 %v1725, %v1617
    %v1743 = vmul.f32 %v1710, %v1741
    %v1744 = vadd.f32 %v1742, %v1743
    %v1745 = vtanh.pop %v1744
    %v1746 = vmul.f32 %v1740, %v1745
    %s1747 = scalar_lea.vmem [#allocation2], 56
    %1748 = vst [vmem:[%s1747] sm:$0xff] %v1746
    loop: start=1, step=1, limit=10
    $region162: #{vae_forward.3} parent=1 // loop_pre_header
      _
    $region163: #{vae_forward.3} parent=1 // loop_header
      %s1750 = sphi 1, %s1754
      %p1751 = scmp.ge.s32.totalorder %s1750, 10
    $region164: #{vae_forward.3} parent=1 // loop_header_branch
      %1753 = sbr.rel (%p1751) target = $region168
    $region165: #{vae_forward.3} parent=1 // loop_body
      %v1755 = vld [vmem:[#allocation2] sm:$0xff]
      %v1756 = vld [vmem:[#allocation2 + $0x8] sm:$0xff]
      %v1757 = vld [vmem:[#allocation2 + $0x10] sm:$0xff]
      %v1758 = vld [vmem:[#allocation2 + $0x18] sm:$0xff]
      %v1759 = vld [vmem:[#allocation2 + $0x20] sm:$0xff]
      %v1760 = vld [vmem:[#allocation2 + $0x28] sm:$0xff]
      %v1761 = vld [vmem:[#allocation2 + $0x30] sm:$0xff]
      %v1762 = vld [vmem:[#allocation2 + $0x38] sm:$0xff]
      %v1763 = vpack.c.bf16 %v1756, %v1755
      %v1764 = vpack.c.bf16 %v1758, %v1757
      %v1765 = vpack.c.bf16 %v1760, %v1759
      %v1766 = vpack.c.bf16 %v1762, %v1761
      %s1767 = ssub.s32 %s1750, 1
      %s1768 = smul.u32 %s1767, 64
      %s1769 = smul.addr %s1768, 4
      %s1770 = scalar_lea.vmem [#allocation6], %s1769
      %v1771 = vld [vmem:[%s1770] sm:$0xff]
      %v1772 = vld [vmem:[%s1770 + $0x8] sm:$0xff]
      %v1773 = vld [vmem:[%s1770 + $0x10] sm:$0xff]
      %v1774 = vld [vmem:[%s1770 + $0x18] sm:$0xff]
      %v1775 = vld [vmem:[%s1770 + $0x20] sm:$0xff]
      %v1776 = vld [vmem:[%s1770 + $0x28] sm:$0xff]
      %v1777 = vld [vmem:[%s1770 + $0x30] sm:$0xff]
      %v1778 = vld [vmem:[%s1770 + $0x38] sm:$0xff]
      %v1779 = vld [vmem:[%s1770 + $0x40] sm:$0xff]
      %v1780 = vld [vmem:[%s1770 + $0x48] sm:$0xff]
      %v1781 = vld [vmem:[%s1770 + $0x50] sm:$0xff]
      %v1782 = vld [vmem:[%s1770 + $0x58] sm:$0xff]
      %v1783 = vld [vmem:[%s1770 + $0x60] sm:$0xff]
      %v1784 = vld [vmem:[%s1770 + $0x68] sm:$0xff]
      %v1785 = vld [vmem:[%s1770 + $0x70] sm:$0xff]
      %v1786 = vld [vmem:[%s1770 + $0x78] sm:$0xff]
      %v1787 = vld [vmem:[%s1770 + $0x80] sm:$0xff]
      %v1788 = vld [vmem:[%s1770 + $0x88] sm:$0xff]
      %v1789 = vld [vmem:[%s1770 + $0x90] sm:$0xff]
      %v1790 = vld [vmem:[%s1770 + $0x98] sm:$0xff]
      %v1791 = vld [vmem:[%s1770 + $0xa0] sm:$0xff]
      %v1792 = vld [vmem:[%s1770 + $0xa8] sm:$0xff]
      %v1793 = vld [vmem:[%s1770 + $0xb0] sm:$0xff]
      %v1794 = vld [vmem:[%s1770 + $0xb8] sm:$0xff]
      %v1795 = vld [vmem:[%s1770 + $0xc0] sm:$0xff]
      %v1796 = vld [vmem:[%s1770 + $0xc8] sm:$0xff]
      %v1797 = vld [vmem:[%s1770 + $0xd0] sm:$0xff]
      %v1798 = vld [vmem:[%s1770 + $0xd8] sm:$0xff]
      %v1799 = vld [vmem:[%s1770 + $0xe0] sm:$0xff]
      %v1800 = vld [vmem:[%s1770 + $0xe8] sm:$0xff]
      %v1801 = vld [vmem:[%s1770 + $0xf0] sm:$0xff]
      %v1802 = vld [vmem:[%s1770 + $0xf8] sm:$0xff]
      %s1803 = smul.u32 %s1750, 64
      %s1804 = smul.addr %s1803, 4
      %s1805 = scalar_lea.vmem [#allocation8], %s1804
      %v1806 = vld [vmem:[%s1805] sm:$0xff]
      %v1807 = vld [vmem:[%s1805 + $0x8] sm:$0xff]
      %v1808 = vld [vmem:[%s1805 + $0x10] sm:$0xff]
      %v1809 = vld [vmem:[%s1805 + $0x18] sm:$0xff]
      %v1810 = vld [vmem:[%s1805 + $0x20] sm:$0xff]
      %v1811 = vld [vmem:[%s1805 + $0x28] sm:$0xff]
      %v1812 = vld [vmem:[%s1805 + $0x30] sm:$0xff]
      %v1813 = vld [vmem:[%s1805 + $0x38] sm:$0xff]
      %v1814 = vld [vmem:[%s1805 + $0x40] sm:$0xff]
      %v1815 = vld [vmem:[%s1805 + $0x48] sm:$0xff]
      %v1816 = vld [vmem:[%s1805 + $0x50] sm:$0xff]
      %v1817 = vld [vmem:[%s1805 + $0x58] sm:$0xff]
      %v1818 = vld [vmem:[%s1805 + $0x60] sm:$0xff]
      %v1819 = vld [vmem:[%s1805 + $0x68] sm:$0xff]
      %v1820 = vld [vmem:[%s1805 + $0x70] sm:$0xff]
      %v1821 = vld [vmem:[%s1805 + $0x78] sm:$0xff]
      %v1822 = vld [vmem:[%s1805 + $0x80] sm:$0xff]
      %v1823 = vld [vmem:[%s1805 + $0x88] sm:$0xff]
      %v1824 = vld [vmem:[%s1805 + $0x90] sm:$0xff]
      %v1825 = vld [vmem:[%s1805 + $0x98] sm:$0xff]
      %v1826 = vld [vmem:[%s1805 + $0xa0] sm:$0xff]
      %v1827 = vld [vmem:[%s1805 + $0xa8] sm:$0xff]
      %v1828 = vld [vmem:[%s1805 + $0xb0] sm:$0xff]
      %v1829 = vld [vmem:[%s1805 + $0xb8] sm:$0xff]
      %v1830 = vld [vmem:[%s1805 + $0xc0] sm:$0xff]
      %v1831 = vld [vmem:[%s1805 + $0xc8] sm:$0xff]
      %v1832 = vld [vmem:[%s1805 + $0xd0] sm:$0xff]
      %v1833 = vld [vmem:[%s1805 + $0xd8] sm:$0xff]
      %v1834 = vld [vmem:[%s1805 + $0xe0] sm:$0xff]
      %v1835 = vld [vmem:[%s1805 + $0xe8] sm:$0xff]
      %v1836 = vld [vmem:[%s1805 + $0xf0] sm:$0xff]
      %v1837 = vld [vmem:[%s1805 + $0xf8] sm:$0xff]
      %s1838 = smul.u32 %s1750, 4
      %s1839 = scalar_lea.vmem [#allocation9], %s1838
      %v1840 = vld [vmem:[%s1839] sm:$0xf]
      %v1842 = vperm.slane %v1840, 0
      %v1843 = vperm.slane %v1840, 1
      %v1844 = vperm.slane %v1840, 2
      %v1845 = vperm.slane %v1840, 3
      %v1882 = vunpack.c.l.b16 %v1771
      %v1883 = vunpack.c.h.b16 %v1771
      %v1884 = vunpack.c.l.b16 %v1772
      %v1885 = vunpack.c.h.b16 %v1772
      %v1886 = vunpack.c.l.b16 %v1773
      %v1887 = vunpack.c.h.b16 %v1773
      %v1888 = vunpack.c.l.b16 %v1774
      %v1889 = vunpack.c.h.b16 %v1774
      %v1890 = vunpack.c.l.b16 %v1775
      %v1891 = vunpack.c.h.b16 %v1775
      %v1892 = vunpack.c.l.b16 %v1776
      %v1893 = vunpack.c.h.b16 %v1776
      %v1894 = vunpack.c.l.b16 %v1777
      %v1895 = vunpack.c.h.b16 %v1777
      %v1896 = vunpack.c.l.b16 %v1778
      %v1897 = vunpack.c.h.b16 %v1778
      %v1898 = vunpack.c.l.b16 %v1779
      %v1899 = vunpack.c.h.b16 %v1779
      %v1900 = vunpack.c.l.b16 %v1780
      %v1901 = vunpack.c.h.b16 %v1780
      %v1902 = vunpack.c.l.b16 %v1781
      %v1903 = vunpack.c.h.b16 %v1781
      %v1904 = vunpack.c.l.b16 %v1782
      %v1905 = vunpack.c.h.b16 %v1782
      %v1906 = vunpack.c.l.b16 %v1783
      %v1907 = vunpack.c.h.b16 %v1783
      %v1908 = vunpack.c.l.b16 %v1784
      %v1909 = vunpack.c.h.b16 %v1784
      %v1910 = vunpack.c.l.b16 %v1785
      %v1911 = vunpack.c.h.b16 %v1785
      %v1912 = vunpack.c.l.b16 %v1786
      %v1913 = vunpack.c.h.b16 %v1786
      %v1914 = vunpack.c.l.b16 %v1787
      %v1915 = vunpack.c.h.b16 %v1787
      %v1916 = vunpack.c.l.b16 %v1788
      %v1917 = vunpack.c.h.b16 %v1788
      %v1918 = vunpack.c.l.b16 %v1789
      %v1919 = vunpack.c.h.b16 %v1789
      %v1920 = vunpack.c.l.b16 %v1790
      %v1921 = vunpack.c.h.b16 %v1790
      %v1922 = vunpack.c.l.b16 %v1791
      %v1923 = vunpack.c.h.b16 %v1791
      %v1924 = vunpack.c.l.b16 %v1792
      %v1925 = vunpack.c.h.b16 %v1792
      %v1926 = vunpack.c.l.b16 %v1793
      %v1927 = vunpack.c.h.b16 %v1793
      %v1928 = vunpack.c.l.b16 %v1794
      %v1929 = vunpack.c.h.b16 %v1794
      %v1930 = vunpack.c.l.b16 %v1795
      %v1931 = vunpack.c.h.b16 %v1795
      %v1932 = vunpack.c.l.b16 %v1796
      %v1933 = vunpack.c.h.b16 %v1796
      %v1934 = vunpack.c.l.b16 %v1797
      %v1935 = vunpack.c.h.b16 %v1797
      %v1936 = vunpack.c.l.b16 %v1798
      %v1937 = vunpack.c.h.b16 %v1798
      %v1938 = vunpack.c.l.b16 %v1799
      %v1939 = vunpack.c.h.b16 %v1799
      %v1940 = vunpack.c.l.b16 %v1800
      %v1941 = vunpack.c.h.b16 %v1800
      %v1942 = vunpack.c.l.b16 %v1801
      %v1943 = vunpack.c.h.b16 %v1801
      %v1944 = vunpack.c.l.b16 %v1802
      %v1945 = vunpack.c.h.b16 %v1802
      %v1946 = vpack.c.b16 %v1886, %v1882
      %v1947 = vpack.c.b16 %v1887, %v1883
      %v1948 = vpack.c.b16 %v1888, %v1884
      %v1949 = vpack.c.b16 %v1889, %v1885
      %v1950 = vpack.c.b16 %v1894, %v1890
      %v1951 = vpack.c.b16 %v1895, %v1891
      %v1952 = vpack.c.b16 %v1896, %v1892
      %v1953 = vpack.c.b16 %v1897, %v1893
      %v1954 = vpack.c.b16 %v1902, %v1898
      %v1955 = vpack.c.b16 %v1903, %v1899
      %v1956 = vpack.c.b16 %v1904, %v1900
      %v1957 = vpack.c.b16 %v1905, %v1901
      %v1958 = vpack.c.b16 %v1910, %v1906
      %v1959 = vpack.c.b16 %v1911, %v1907
      %v1960 = vpack.c.b16 %v1912, %v1908
      %v1961 = vpack.c.b16 %v1913, %v1909
      %v1962 = vpack.c.b16 %v1918, %v1914
      %v1963 = vpack.c.b16 %v1919, %v1915
      %v1964 = vpack.c.b16 %v1920, %v1916
      %v1965 = vpack.c.b16 %v1921, %v1917
      %v1966 = vpack.c.b16 %v1926, %v1922
      %v1967 = vpack.c.b16 %v1927, %v1923
      %v1968 = vpack.c.b16 %v1928, %v1924
      %v1969 = vpack.c.b16 %v1929, %v1925
      %v1970 = vpack.c.b16 %v1934, %v1930
      %v1971 = vpack.c.b16 %v1935, %v1931
      %v1972 = vpack.c.b16 %v1936, %v1932
      %v1973 = vpack.c.b16 %v1937, %v1933
      %v1974 = vpack.c.b16 %v1942, %v1938
      %v1975 = vpack.c.b16 %v1943, %v1939
      %v1976 = vpack.c.b16 %v1944, %v1940
      %v1977 = vpack.c.b16 %v1945, %v1941
      %2010 = vmatpush.bf16.msra.mxu0 %v1974
      %2011 = vmatpush.bf16.msra.mxu0 %v1970
      %2012 = vmatpush.bf16.msra.mxu0 %v1966
      %2013 = vmatpush.bf16.msra.mxu0 %v1962
      %2014 = vmatpush.bf16.msra.mxu0 %v1958
      %2015 = vmatpush.bf16.msra.mxu0 %v1954
      %2016 = vmatpush.bf16.msra.mxu0 %v1950
      %2017 = vmatpush.bf16.msra.mxu0 %v1946
      %2018 = vmatmul.bf16.gmra.mxu0 %v1763
      %v2019 = vpop.f32.mrf.mxu0
      %v2020 = vadd.f32 %v1842, %v2019
      %v2021 = vpop.f32.mrf.mxu0
      %v2022 = vadd.f32 %v1842, %v2021
      %2023 = vmatmul.bf16.gmra.mxu0 %v1764
      %v2024 = vpop.f32.mrf.mxu0
      %v2025 = vadd.f32 %v1842, %v2024
      %v2026 = vpop.f32.mrf.mxu0
      %v2027 = vadd.f32 %v1842, %v2026
      %2028 = vmatmul.bf16.gmra.mxu0 %v1765
      %v2029 = vpop.f32.mrf.mxu0
      %v2030 = vadd.f32 %v1842, %v2029
      %v2031 = vpop.f32.mrf.mxu0
      %v2032 = vadd.f32 %v1842, %v2031
      %2033 = vmatmul.bf16.gmra.mxu0 %v1766
      %v2034 = vpop.f32.mrf.mxu0
      %v2035 = vadd.f32 %v1842, %v2034
      %v2036 = vpop.f32.mrf.mxu0
      %v2037 = vadd.f32 %v1842, %v2036
      %2038 = vdwg.mxu0
      %2039 = vmatpush.bf16.msra.mxu0 %v1975
      %2040 = vmatpush.bf16.msra.mxu0 %v1971
      %2041 = vmatpush.bf16.msra.mxu0 %v1967
      %2042 = vmatpush.bf16.msra.mxu0 %v1963
      %2043 = vmatpush.bf16.msra.mxu0 %v1959
      %2044 = vmatpush.bf16.msra.mxu0 %v1955
      %2045 = vmatpush.bf16.msra.mxu0 %v1951
      %2046 = vmatpush.bf16.msra.mxu0 %v1947
      %2047 = vmatmul.bf16.gmra.mxu0 %v1763
      %v2048 = vpop.f32.mrf.mxu0
      %v2049 = vadd.f32 %v1843, %v2048
      %v2050 = vpop.f32.mrf.mxu0
      %v2051 = vadd.f32 %v1843, %v2050
      %2052 = vmatmul.bf16.gmra.mxu0 %v1764
      %v2053 = vpop.f32.mrf.mxu0
      %v2054 = vadd.f32 %v1843, %v2053
      %v2055 = vpop.f32.mrf.mxu0
      %v2056 = vadd.f32 %v1843, %v2055
      %2057 = vmatmul.bf16.gmra.mxu0 %v1765
      %v2058 = vpop.f32.mrf.mxu0
      %v2059 = vadd.f32 %v1843, %v2058
      %v2060 = vpop.f32.mrf.mxu0
      %v2061 = vadd.f32 %v1843, %v2060
      %2062 = vmatmul.bf16.gmra.mxu0 %v1766
      %v2063 = vpop.f32.mrf.mxu0
      %v2064 = vadd.f32 %v1843, %v2063
      %v2065 = vpop.f32.mrf.mxu0
      %v2066 = vadd.f32 %v1843, %v2065
      %2067 = vdwg.mxu0
      %2068 = vmatpush.bf16.msra.mxu0 %v1976
      %2069 = vmatpush.bf16.msra.mxu0 %v1972
      %2070 = vmatpush.bf16.msra.mxu0 %v1968
      %2071 = vmatpush.bf16.msra.mxu0 %v1964
      %2072 = vmatpush.bf16.msra.mxu0 %v1960
      %2073 = vmatpush.bf16.msra.mxu0 %v1956
      %2074 = vmatpush.bf16.msra.mxu0 %v1952
      %2075 = vmatpush.bf16.msra.mxu0 %v1948
      %2076 = vmatmul.bf16.gmra.mxu0 %v1763
      %v2077 = vpop.f32.mrf.mxu0
      %v2078 = vadd.f32 %v1844, %v2077
      %v2079 = vpop.f32.mrf.mxu0
      %v2080 = vadd.f32 %v1844, %v2079
      %2081 = vmatmul.bf16.gmra.mxu0 %v1764
      %v2082 = vpop.f32.mrf.mxu0
      %v2083 = vadd.f32 %v1844, %v2082
      %v2084 = vpop.f32.mrf.mxu0
      %v2085 = vadd.f32 %v1844, %v2084
      %2086 = vmatmul.bf16.gmra.mxu0 %v1765
      %v2087 = vpop.f32.mrf.mxu0
      %v2088 = vadd.f32 %v1844, %v2087
      %v2089 = vpop.f32.mrf.mxu0
      %v2090 = vadd.f32 %v1844, %v2089
      %2091 = vmatmul.bf16.gmra.mxu0 %v1766
      %v2092 = vpop.f32.mrf.mxu0
      %v2093 = vadd.f32 %v1844, %v2092
      %v2094 = vpop.f32.mrf.mxu0
      %v2095 = vadd.f32 %v1844, %v2094
      %2096 = vdwg.mxu0
      %2097 = vmatpush.bf16.msra.mxu0 %v1977
      %2098 = vmatpush.bf16.msra.mxu0 %v1973
      %2099 = vmatpush.bf16.msra.mxu0 %v1969
      %2100 = vmatpush.bf16.msra.mxu0 %v1965
      %2101 = vmatpush.bf16.msra.mxu0 %v1961
      %2102 = vmatpush.bf16.msra.mxu0 %v1957
      %2103 = vmatpush.bf16.msra.mxu0 %v1953
      %2104 = vmatpush.bf16.msra.mxu0 %v1949
      %2105 = vmatmul.bf16.gmra.mxu0 %v1763
      %v2106 = vpop.f32.mrf.mxu0
      %v2107 = vadd.f32 %v1845, %v2106
      %v2108 = vpop.f32.mrf.mxu0
      %v2109 = vadd.f32 %v1845, %v2108
      %2110 = vmatmul.bf16.gmra.mxu0 %v1764
      %v2111 = vpop.f32.mrf.mxu0
      %v2112 = vadd.f32 %v1845, %v2111
      %v2113 = vpop.f32.mrf.mxu0
      %v2114 = vadd.f32 %v1845, %v2113
      %2115 = vmatmul.bf16.gmra.mxu0 %v1765
      %v2116 = vpop.f32.mrf.mxu0
      %v2117 = vadd.f32 %v1845, %v2116
      %v2118 = vpop.f32.mrf.mxu0
      %v2119 = vadd.f32 %v1845, %v2118
      %2120 = vmatmul.bf16.gmra.mxu0 %v1766
      %v2121 = vpop.f32.mrf.mxu0
      %v2122 = vadd.f32 %v1845, %v2121
      %v2123 = vpop.f32.mrf.mxu0
      %v2124 = vadd.f32 %v1845, %v2123
      %2125 = vdwg.mxu0
      %2126 = vst [vmem:[#allocation3] sm:$0xff] %v2020
      %2127 = vst [vmem:[#allocation3 + $0x8] sm:$0xff] %v2049
      %2128 = vst [vmem:[#allocation3 + $0x10] sm:$0xff] %v2078
      %2129 = vst [vmem:[#allocation3 + $0x18] sm:$0xff] %v2107
      %2130 = vst [vmem:[#allocation3 + $0x20] sm:$0xff] %v2022
      %2131 = vst [vmem:[#allocation3 + $0x28] sm:$0xff] %v2051
      %2132 = vst [vmem:[#allocation3 + $0x30] sm:$0xff] %v2080
      %2133 = vst [vmem:[#allocation3 + $0x38] sm:$0xff] %v2109
      %2134 = vst [vmem:[#allocation3 + $0x40] sm:$0xff] %v2025
      %2135 = vst [vmem:[#allocation3 + $0x48] sm:$0xff] %v2054
      %2136 = vst [vmem:[#allocation3 + $0x50] sm:$0xff] %v2083
      %2137 = vst [vmem:[#allocation3 + $0x58] sm:$0xff] %v2112
      %2138 = vst [vmem:[#allocation3 + $0x60] sm:$0xff] %v2027
      %2139 = vst [vmem:[#allocation3 + $0x68] sm:$0xff] %v2056
      %2140 = vst [vmem:[#allocation3 + $0x70] sm:$0xff] %v2085
      %2141 = vst [vmem:[#allocation3 + $0x78] sm:$0xff] %v2114
      %2142 = vst [vmem:[#allocation3 + $0x80] sm:$0xff] %v2030
      %2143 = vst [vmem:[#allocation3 + $0x88] sm:$0xff] %v2059
      %2144 = vst [vmem:[#allocation3 + $0x90] sm:$0xff] %v2088
      %2145 = vst [vmem:[#allocation3 + $0x98] sm:$0xff] %v2117
      %2146 = vst [vmem:[#allocation3 + $0xa0] sm:$0xff] %v2032
      %2147 = vst [vmem:[#allocation3 + $0xa8] sm:$0xff] %v2061
      %2148 = vst [vmem:[#allocation3 + $0xb0] sm:$0xff] %v2090
      %2149 = vst [vmem:[#allocation3 + $0xb8] sm:$0xff] %v2119
      %2150 = vst [vmem:[#allocation3 + $0xc0] sm:$0xff] %v2035
      %2151 = vst [vmem:[#allocation3 + $0xc8] sm:$0xff] %v2064
      %2152 = vst [vmem:[#allocation3 + $0xd0] sm:$0xff] %v2093
      %2153 = vst [vmem:[#allocation3 + $0xd8] sm:$0xff] %v2122
      %2154 = vst [vmem:[#allocation3 + $0xe0] sm:$0xff] %v2037
      %2155 = vst [vmem:[#allocation3 + $0xe8] sm:$0xff] %v2066
      %2156 = vst [vmem:[#allocation3 + $0xf0] sm:$0xff] %v2095
      %2157 = vst [vmem:[#allocation3 + $0xf8] sm:$0xff] %v2124
      %v2158 = vld [vmem:[#allocation3] sm:$0xff]
      %v2159 = vld [vmem:[#allocation3 + $0x8] sm:$0xff]
      %v2160 = vld [vmem:[#allocation3 + $0x10] sm:$0xff]
      %v2161 = vld [vmem:[#allocation3 + $0x18] sm:$0xff]
      %v2194 = vunpack.c.l.b16 %v1806
      %v2195 = vunpack.c.h.b16 %v1806
      %v2196 = vunpack.c.l.b16 %v1807
      %v2197 = vunpack.c.h.b16 %v1807
      %v2198 = vunpack.c.l.b16 %v1808
      %v2199 = vunpack.c.h.b16 %v1808
      %v2200 = vunpack.c.l.b16 %v1809
      %v2201 = vunpack.c.h.b16 %v1809
      %v2202 = vunpack.c.l.b16 %v1810
      %v2203 = vunpack.c.h.b16 %v1810
      %v2204 = vunpack.c.l.b16 %v1811
      %v2205 = vunpack.c.h.b16 %v1811
      %v2206 = vunpack.c.l.b16 %v1812
      %v2207 = vunpack.c.h.b16 %v1812
      %v2208 = vunpack.c.l.b16 %v1813
      %v2209 = vunpack.c.h.b16 %v1813
      %v2210 = vunpack.c.l.b16 %v1814
      %v2211 = vunpack.c.h.b16 %v1814
      %v2212 = vunpack.c.l.b16 %v1815
      %v2213 = vunpack.c.h.b16 %v1815
      %v2214 = vunpack.c.l.b16 %v1816
      %v2215 = vunpack.c.h.b16 %v1816
      %v2216 = vunpack.c.l.b16 %v1817
      %v2217 = vunpack.c.h.b16 %v1817
      %v2218 = vunpack.c.l.b16 %v1818
      %v2219 = vunpack.c.h.b16 %v1818
      %v2220 = vunpack.c.l.b16 %v1819
      %v2221 = vunpack.c.h.b16 %v1819
      %v2222 = vunpack.c.l.b16 %v1820
      %v2223 = vunpack.c.h.b16 %v1820
      %v2224 = vunpack.c.l.b16 %v1821
      %v2225 = vunpack.c.h.b16 %v1821
      %v2226 = vunpack.c.l.b16 %v1822
      %v2227 = vunpack.c.h.b16 %v1822
      %v2228 = vunpack.c.l.b16 %v1823
      %v2229 = vunpack.c.h.b16 %v1823
      %v2230 = vunpack.c.l.b16 %v1824
      %v2231 = vunpack.c.h.b16 %v1824
      %v2232 = vunpack.c.l.b16 %v1825
      %v2233 = vunpack.c.h.b16 %v1825
      %v2234 = vunpack.c.l.b16 %v1826
      %v2235 = vunpack.c.h.b16 %v1826
      %v2236 = vunpack.c.l.b16 %v1827
      %v2237 = vunpack.c.h.b16 %v1827
      %v2238 = vunpack.c.l.b16 %v1828
      %v2239 = vunpack.c.h.b16 %v1828
      %v2240 = vunpack.c.l.b16 %v1829
      %v2241 = vunpack.c.h.b16 %v1829
      %v2242 = vunpack.c.l.b16 %v1830
      %v2243 = vunpack.c.h.b16 %v1830
      %v2244 = vunpack.c.l.b16 %v1831
      %v2245 = vunpack.c.h.b16 %v1831
      %v2246 = vunpack.c.l.b16 %v1832
      %v2247 = vunpack.c.h.b16 %v1832
      %v2248 = vunpack.c.l.b16 %v1833
      %v2249 = vunpack.c.h.b16 %v1833
      %v2250 = vunpack.c.l.b16 %v1834
      %v2251 = vunpack.c.h.b16 %v1834
      %v2252 = vunpack.c.l.b16 %v1835
      %v2253 = vunpack.c.h.b16 %v1835
      %v2254 = vunpack.c.l.b16 %v1836
      %v2255 = vunpack.c.h.b16 %v1836
      %v2256 = vunpack.c.l.b16 %v1837
      %v2257 = vunpack.c.h.b16 %v1837
      %v2258 = vpack.c.b16 %v2198, %v2194
      %v2259 = vpack.c.b16 %v2199, %v2195
      %v2260 = vpack.c.b16 %v2200, %v2196
      %v2261 = vpack.c.b16 %v2201, %v2197
      %v2262 = vpack.c.b16 %v2206, %v2202
      %v2263 = vpack.c.b16 %v2207, %v2203
      %v2264 = vpack.c.b16 %v2208, %v2204
      %v2265 = vpack.c.b16 %v2209, %v2205
      %v2266 = vpack.c.b16 %v2214, %v2210
      %v2267 = vpack.c.b16 %v2215, %v2211
      %v2268 = vpack.c.b16 %v2216, %v2212
      %v2269 = vpack.c.b16 %v2217, %v2213
      %v2270 = vpack.c.b16 %v2222, %v2218
      %v2271 = vpack.c.b16 %v2223, %v2219
      %v2272 = vpack.c.b16 %v2224, %v2220
      %v2273 = vpack.c.b16 %v2225, %v2221
      %v2274 = vpack.c.b16 %v2230, %v2226
      %v2275 = vpack.c.b16 %v2231, %v2227
      %v2276 = vpack.c.b16 %v2232, %v2228
      %v2277 = vpack.c.b16 %v2233, %v2229
      %v2278 = vpack.c.b16 %v2238, %v2234
      %v2279 = vpack.c.b16 %v2239, %v2235
      %v2280 = vpack.c.b16 %v2240, %v2236
      %v2281 = vpack.c.b16 %v2241, %v2237
      %v2282 = vpack.c.b16 %v2246, %v2242
      %v2283 = vpack.c.b16 %v2247, %v2243
      %v2284 = vpack.c.b16 %v2248, %v2244
      %v2285 = vpack.c.b16 %v2249, %v2245
      %v2286 = vpack.c.b16 %v2254, %v2250
      %v2287 = vpack.c.b16 %v2255, %v2251
      %v2288 = vpack.c.b16 %v2256, %v2252
      %v2289 = vpack.c.b16 %v2257, %v2253
      %2322 = vmatpush.bf16.msra.mxu0 %v2286
      %2323 = vmatpush.bf16.msra.mxu0 %v2282
      %2324 = vmatpush.bf16.msra.mxu0 %v2278
      %2325 = vmatpush.bf16.msra.mxu0 %v2274
      %2326 = vmatpush.bf16.msra.mxu0 %v2270
      %2327 = vmatpush.bf16.msra.mxu0 %v2266
      %2328 = vmatpush.bf16.msra.mxu0 %v2262
      %2329 = vmatpush.bf16.msra.mxu0 %v2258
      %2330 = vmatmul.bf16.gmra.mxu0 0
      %v2331 = vpop.f32.mrf.mxu0
      %v2332 = vadd.f32 0.0, %v2331
      %v2333 = vpop.f32.mrf.mxu0
      %2334 = vdwg.mxu0
      %2335 = vmatpush.bf16.msra.mxu0 %v2287
      %2336 = vmatpush.bf16.msra.mxu0 %v2283
      %2337 = vmatpush.bf16.msra.mxu0 %v2279
      %2338 = vmatpush.bf16.msra.mxu0 %v2275
      %2339 = vmatpush.bf16.msra.mxu0 %v2271
      %2340 = vmatpush.bf16.msra.mxu0 %v2267
      %2341 = vmatpush.bf16.msra.mxu0 %v2263
      %2342 = vmatpush.bf16.msra.mxu0 %v2259
      %2343 = vmatmul.bf16.gmra.mxu0 0
      %v2344 = vpop.f32.mrf.mxu0
      %v2345 = vadd.f32 0.0, %v2344
      %v2346 = vpop.f32.mrf.mxu0
      %2347 = vdwg.mxu0
      %2348 = vmatpush.bf16.msra.mxu0 %v2288
      %2349 = vmatpush.bf16.msra.mxu0 %v2284
      %2350 = vmatpush.bf16.msra.mxu0 %v2280
      %2351 = vmatpush.bf16.msra.mxu0 %v2276
      %2352 = vmatpush.bf16.msra.mxu0 %v2272
      %2353 = vmatpush.bf16.msra.mxu0 %v2268
      %2354 = vmatpush.bf16.msra.mxu0 %v2264
      %2355 = vmatpush.bf16.msra.mxu0 %v2260
      %2356 = vmatmul.bf16.gmra.mxu0 0
      %v2357 = vpop.f32.mrf.mxu0
      %v2358 = vadd.f32 0.0, %v2357
      %v2359 = vpop.f32.mrf.mxu0
      %2360 = vdwg.mxu0
      %2361 = vmatpush.bf16.msra.mxu0 %v2289
      %2362 = vmatpush.bf16.msra.mxu0 %v2285
      %2363 = vmatpush.bf16.msra.mxu0 %v2281
      %2364 = vmatpush.bf16.msra.mxu0 %v2277
      %2365 = vmatpush.bf16.msra.mxu0 %v2273
      %2366 = vmatpush.bf16.msra.mxu0 %v2269
      %2367 = vmatpush.bf16.msra.mxu0 %v2265
      %2368 = vmatpush.bf16.msra.mxu0 %v2261
      %2369 = vmatmul.bf16.gmra.mxu0 0
      %v2370 = vpop.f32.mrf.mxu0
      %v2371 = vadd.f32 0.0, %v2370
      %v2372 = vpop.f32.mrf.mxu0
      %2373 = vdwg.mxu0
      %v2374 = vadd.f32 %v2158, %v2332
      %v2375 = vadd.f32 %v2159, %v2345
      %v2376 = vadd.f32 %v2160, %v2358
      %v2377 = vadd.f32 %v2161, %v2371
      %v2378 = vxor.u32 %v2374, 2147483648
      %v2379 = vxor.u32 %v2375, 2147483648
      %v2380 = vxor.u32 %v2376, 2147483648
      %v2381 = vmul.f32 %v2378, 1.442695
      %v2382 = vpow.pop %v2381
      %v2383 = vmul.f32 %v2379, 1.442695
      %v2384 = vpow.pop %v2383
      %v2385 = vmul.f32 %v2380, 1.442695
      %v2386 = vpow.pop %v2385
      %v2387 = vadd.f32 %v2382, 1.0
      %v2388 = vadd.f32 %v2384, 1.0
      %v2389 = vadd.f32 %v2386, 1.0
      %v2390 = vrcp.pop %v2387
      %v2391 = vmul.f32 %v2387, %v2390
      %v2392 = vsub.f32 1.0, %v2391
      %v2393 = vmul.f32 %v2390, %v2392
      %v2394 = vadd.f32 %v2390, %v2393
      %vm2395 = vweird.f32 %v2387
      %vm2396 = vweird.f32 %v2390
      %vm2397 = vmor %vm2395, %vm2396
      %v2398 = vsel %vm2397, %v2390, %v2394
      %v2399 = vand.u32 2147483647, %v2387
      %vm2400 = vcmp.eq.f32.partialorder %v2399, 8.507059e+37
      %v2401 = vand.u32 %v2387, 2147483648
      %v2402 = vor.u32 1.1754944e-38, %v2401
      %v2403 = vsel %vm2400, %v2402, %v2398
      %v2404 = vmul.f32 1.0, %v2403
      %v2405 = vrcp.pop %v2388
      %v2406 = vmul.f32 %v2388, %v2405
      %v2407 = vsub.f32 1.0, %v2406
      %v2408 = vmul.f32 %v2405, %v2407
      %v2409 = vadd.f32 %v2405, %v2408
      %vm2410 = vweird.f32 %v2388
      %vm2411 = vweird.f32 %v2405
      %vm2412 = vmor %vm2410, %vm2411
      %v2413 = vsel %vm2412, %v2405, %v2409
      %v2414 = vand.u32 2147483647, %v2388
      %vm2415 = vcmp.eq.f32.partialorder %v2414, 8.507059e+37
      %v2416 = vand.u32 %v2388, 2147483648
      %v2417 = vor.u32 1.1754944e-38, %v2416
      %v2418 = vsel %vm2415, %v2417, %v2413
      %v2419 = vmul.f32 1.0, %v2418
      %v2420 = vrcp.pop %v2389
      %v2421 = vmul.f32 %v2389, %v2420
      %v2422 = vsub.f32 1.0, %v2421
      %v2423 = vmul.f32 %v2420, %v2422
      %v2424 = vadd.f32 %v2420, %v2423
      %vm2425 = vweird.f32 %v2389
      %vm2426 = vweird.f32 %v2420
      %vm2427 = vmor %vm2425, %vm2426
      %v2428 = vsel %vm2427, %v2420, %v2424
      %v2429 = vand.u32 2147483647, %v2389
      %vm2430 = vcmp.eq.f32.partialorder %v2429, 8.507059e+37
      %v2431 = vand.u32 %v2389, 2147483648
      %v2432 = vor.u32 1.1754944e-38, %v2431
      %v2433 = vsel %vm2430, %v2432, %v2428
      %v2434 = vmul.f32 1.0, %v2433
      %v2435 = vtanh.pop %v2377
      %v2436 = vmul.f32 %v2419, 0.0
      %v2437 = vmul.f32 %v2404, %v2435
      %v2438 = vadd.f32 %v2436, %v2437
      %v2439 = vtanh.pop %v2438
      %v2440 = vmul.f32 %v2434, %v2439
      %2441 = vst [vmem:[#allocation2] sm:$0xff] %v2440
      %v2442 = vld [vmem:[%s860] sm:$0xff]
      %v2443 = vld [vmem:[%s860 + $0x8] sm:$0xff]
      %v2444 = vld [vmem:[%s860 + $0x10] sm:$0xff]
      %v2445 = vld [vmem:[%s860 + $0x18] sm:$0xff]
      %v2446 = vpack.c.bf16 %v2440, %v2440
      %2447 = vmatpush.bf16.msra.mxu0 %v2286
      %2448 = vmatpush.bf16.msra.mxu0 %v2282
      %2449 = vmatpush.bf16.msra.mxu0 %v2278
      %2450 = vmatpush.bf16.msra.mxu0 %v2274
      %2451 = vmatpush.bf16.msra.mxu0 %v2270
      %2452 = vmatpush.bf16.msra.mxu0 %v2266
      %2453 = vmatpush.bf16.msra.mxu0 %v2262
      %2454 = vmatpush.bf16.msra.mxu0 %v2258
      %2455 = vmatmul.bf16.gmra.mxu0 %v2446
      %v2456 = vpop.f32.mrf.mxu0
      %v2457 = vadd.f32 0.0, %v2456
      %v2458 = vpop.f32.mrf.mxu0
      %2459 = vdwg.mxu0
      %2460 = vmatpush.bf16.msra.mxu0 %v2287
      %2461 = vmatpush.bf16.msra.mxu0 %v2283
      %2462 = vmatpush.bf16.msra.mxu0 %v2279
      %2463 = vmatpush.bf16.msra.mxu0 %v2275
      %2464 = vmatpush.bf16.msra.mxu0 %v2271
      %2465 = vmatpush.bf16.msra.mxu0 %v2267
      %2466 = vmatpush.bf16.msra.mxu0 %v2263
      %2467 = vmatpush.bf16.msra.mxu0 %v2259
      %2468 = vmatmul.bf16.gmra.mxu0 %v2446
      %v2469 = vpop.f32.mrf.mxu0
      %v2470 = vadd.f32 0.0, %v2469
      %v2471 = vpop.f32.mrf.mxu0
      %2472 = vdwg.mxu0
      %2473 = vmatpush.bf16.msra.mxu0 %v2288
      %2474 = vmatpush.bf16.msra.mxu0 %v2284
      %2475 = vmatpush.bf16.msra.mxu0 %v2280
      %2476 = vmatpush.bf16.msra.mxu0 %v2276
      %2477 = vmatpush.bf16.msra.mxu0 %v2272
      %2478 = vmatpush.bf16.msra.mxu0 %v2268
      %2479 = vmatpush.bf16.msra.mxu0 %v2264
      %2480 = vmatpush.bf16.msra.mxu0 %v2260
      %2481 = vmatmul.bf16.gmra.mxu0 %v2446
      %v2482 = vpop.f32.mrf.mxu0
      %v2483 = vadd.f32 0.0, %v2482
      %v2484 = vpop.f32.mrf.mxu0
      %2485 = vdwg.mxu0
      %2486 = vmatpush.bf16.msra.mxu0 %v2289
      %2487 = vmatpush.bf16.msra.mxu0 %v2285
      %2488 = vmatpush.bf16.msra.mxu0 %v2281
      %2489 = vmatpush.bf16.msra.mxu0 %v2277
      %2490 = vmatpush.bf16.msra.mxu0 %v2273
      %2491 = vmatpush.bf16.msra.mxu0 %v2269
      %2492 = vmatpush.bf16.msra.mxu0 %v2265
      %2493 = vmatpush.bf16.msra.mxu0 %v2261
      %2494 = vmatmul.bf16.gmra.mxu0 %v2446
      %v2495 = vpop.f32.mrf.mxu0
      %v2496 = vadd.f32 0.0, %v2495
      %v2497 = vpop.f32.mrf.mxu0
      %2498 = vdwg.mxu0
      %v2499 = vadd.f32 %v2442, %v2457
      %v2500 = vadd.f32 %v2443, %v2470
      %v2501 = vadd.f32 %v2444, %v2483
      %v2502 = vadd.f32 %v2445, %v2496
      %v2503 = vxor.u32 %v2499, 2147483648
      %v2504 = vxor.u32 %v2500, 2147483648
      %v2505 = vxor.u32 %v2501, 2147483648
      %v2506 = vmul.f32 %v2503, 1.442695
      %v2507 = vpow.pop %v2506
      %v2508 = vmul.f32 %v2504, 1.442695
      %v2509 = vpow.pop %v2508
      %v2510 = vmul.f32 %v2505, 1.442695
      %v2511 = vpow.pop %v2510
      %v2512 = vadd.f32 %v2507, 1.0
      %v2513 = vadd.f32 %v2509, 1.0
      %v2514 = vadd.f32 %v2511, 1.0
      %v2515 = vrcp.pop %v2512
      %v2516 = vmul.f32 %v2512, %v2515
      %v2517 = vsub.f32 1.0, %v2516
      %v2518 = vmul.f32 %v2515, %v2517
      %v2519 = vadd.f32 %v2515, %v2518
      %vm2520 = vweird.f32 %v2512
      %vm2521 = vweird.f32 %v2515
      %vm2522 = vmor %vm2520, %vm2521
      %v2523 = vsel %vm2522, %v2515, %v2519
      %v2524 = vand.u32 2147483647, %v2512
      %vm2525 = vcmp.eq.f32.partialorder %v2524, 8.507059e+37
      %v2526 = vand.u32 %v2512, 2147483648
      %v2527 = vor.u32 1.1754944e-38, %v2526
      %v2528 = vsel %vm2525, %v2527, %v2523
      %v2529 = vmul.f32 1.0, %v2528
      %v2530 = vrcp.pop %v2513
      %v2531 = vmul.f32 %v2513, %v2530
      %v2532 = vsub.f32 1.0, %v2531
      %v2533 = vmul.f32 %v2530, %v2532
      %v2534 = vadd.f32 %v2530, %v2533
      %vm2535 = vweird.f32 %v2513
      %vm2536 = vweird.f32 %v2530
      %vm2537 = vmor %vm2535, %vm2536
      %v2538 = vsel %vm2537, %v2530, %v2534
      %v2539 = vand.u32 2147483647, %v2513
      %vm2540 = vcmp.eq.f32.partialorder %v2539, 8.507059e+37
      %v2541 = vand.u32 %v2513, 2147483648
      %v2542 = vor.u32 1.1754944e-38, %v2541
      %v2543 = vsel %vm2540, %v2542, %v2538
      %v2544 = vmul.f32 1.0, %v2543
      %v2545 = vrcp.pop %v2514
      %v2546 = vmul.f32 %v2514, %v2545
      %v2547 = vsub.f32 1.0, %v2546
      %v2548 = vmul.f32 %v2545, %v2547
      %v2549 = vadd.f32 %v2545, %v2548
      %vm2550 = vweird.f32 %v2514
      %vm2551 = vweird.f32 %v2545
      %vm2552 = vmor %vm2550, %vm2551
      %v2553 = vsel %vm2552, %v2545, %v2549
      %v2554 = vand.u32 2147483647, %v2514
      %vm2555 = vcmp.eq.f32.partialorder %v2554, 8.507059e+37
      %v2556 = vand.u32 %v2514, 2147483648
      %v2557 = vor.u32 1.1754944e-38, %v2556
      %v2558 = vsel %vm2555, %v2557, %v2553
      %v2559 = vmul.f32 1.0, %v2558
      %v2560 = vtanh.pop %v2502
      %v2561 = vmul.f32 %v2544, %v2438
      %v2562 = vmul.f32 %v2529, %v2560
      %v2563 = vadd.f32 %v2561, %v2562
      %v2564 = vtanh.pop %v2563
      %v2565 = vmul.f32 %v2559, %v2564
      %2566 = vst [vmem:[%s985] sm:$0xff] %v2565
      %v2567 = vld [vmem:[%s987] sm:$0xff]
      %v2568 = vld [vmem:[%s987 + $0x8] sm:$0xff]
      %v2569 = vld [vmem:[%s987 + $0x10] sm:$0xff]
      %v2570 = vld [vmem:[%s987 + $0x18] sm:$0xff]
      %v2571 = vpack.c.bf16 %v2565, %v2565
      %2572 = vmatpush.bf16.msra.mxu0 %v2286
      %2573 = vmatpush.bf16.msra.mxu0 %v2282
      %2574 = vmatpush.bf16.msra.mxu0 %v2278
      %2575 = vmatpush.bf16.msra.mxu0 %v2274
      %2576 = vmatpush.bf16.msra.mxu0 %v2270
      %2577 = vmatpush.bf16.msra.mxu0 %v2266
      %2578 = vmatpush.bf16.msra.mxu0 %v2262
      %2579 = vmatpush.bf16.msra.mxu0 %v2258
      %2580 = vmatmul.bf16.gmra.mxu0 %v2571
      %v2581 = vpop.f32.mrf.mxu0
      %v2582 = vadd.f32 0.0, %v2581
      %v2583 = vpop.f32.mrf.mxu0
      %2584 = vdwg.mxu0
      %2585 = vmatpush.bf16.msra.mxu0 %v2287
      %2586 = vmatpush.bf16.msra.mxu0 %v2283
      %2587 = vmatpush.bf16.msra.mxu0 %v2279
      %2588 = vmatpush.bf16.msra.mxu0 %v2275
      %2589 = vmatpush.bf16.msra.mxu0 %v2271
      %2590 = vmatpush.bf16.msra.mxu0 %v2267
      %2591 = vmatpush.bf16.msra.mxu0 %v2263
      %2592 = vmatpush.bf16.msra.mxu0 %v2259
      %2593 = vmatmul.bf16.gmra.mxu0 %v2571
      %v2594 = vpop.f32.mrf.mxu0
      %v2595 = vadd.f32 0.0, %v2594
      %v2596 = vpop.f32.mrf.mxu0
      %2597 = vdwg.mxu0
      %2598 = vmatpush.bf16.msra.mxu0 %v2288
      %2599 = vmatpush.bf16.msra.mxu0 %v2284
      %2600 = vmatpush.bf16.msra.mxu0 %v2280
      %2601 = vmatpush.bf16.msra.mxu0 %v2276
      %2602 = vmatpush.bf16.msra.mxu0 %v2272
      %2603 = vmatpush.bf16.msra.mxu0 %v2268
      %2604 = vmatpush.bf16.msra.mxu0 %v2264
      %2605 = vmatpush.bf16.msra.mxu0 %v2260
      %2606 = vmatmul.bf16.gmra.mxu0 %v2571
      %v2607 = vpop.f32.mrf.mxu0
      %v2608 = vadd.f32 0.0, %v2607
      %v2609 = vpop.f32.mrf.mxu0
      %2610 = vdwg.mxu0
      %2611 = vmatpush.bf16.msra.mxu0 %v2289
      %2612 = vmatpush.bf16.msra.mxu0 %v2285
      %2613 = vmatpush.bf16.msra.mxu0 %v2281
      %2614 = vmatpush.bf16.msra.mxu0 %v2277
      %2615 = vmatpush.bf16.msra.mxu0 %v2273
      %2616 = vmatpush.bf16.msra.mxu0 %v2269
      %2617 = vmatpush.bf16.msra.mxu0 %v2265
      %2618 = vmatpush.bf16.msra.mxu0 %v2261
      %2619 = vmatmul.bf16.gmra.mxu0 %v2571
      %v2620 = vpop.f32.mrf.mxu0
      %v2621 = vadd.f32 0.0, %v2620
      %v2622 = vpop.f32.mrf.mxu0
      %2623 = vdwg.mxu0
      %v2624 = vadd.f32 %v2567, %v2582
      %v2625 = vadd.f32 %v2568, %v2595
      %v2626 = vadd.f32 %v2569, %v2608
      %v2627 = vadd.f32 %v2570, %v2621
      %v2628 = vxor.u32 %v2624, 2147483648
      %v2629 = vxor.u32 %v2625, 2147483648
      %v2630 = vxor.u32 %v2626, 2147483648
      %v2631 = vmul.f32 %v2628, 1.442695
      %v2632 = vpow.pop %v2631
      %v2633 = vmul.f32 %v2629, 1.442695
      %v2634 = vpow.pop %v2633
      %v2635 = vmul.f32 %v2630, 1.442695
      %v2636 = vpow.pop %v2635
      %v2637 = vadd.f32 %v2632, 1.0
      %v2638 = vadd.f32 %v2634, 1.0
      %v2639 = vadd.f32 %v2636, 1.0
      %v2640 = vrcp.pop %v2637
      %v2641 = vmul.f32 %v2637, %v2640
      %v2642 = vsub.f32 1.0, %v2641
      %v2643 = vmul.f32 %v2640, %v2642
      %v2644 = vadd.f32 %v2640, %v2643
      %vm2645 = vweird.f32 %v2637
      %vm2646 = vweird.f32 %v2640
      %vm2647 = vmor %vm2645, %vm2646
      %v2648 = vsel %vm2647, %v2640, %v2644
      %v2649 = vand.u32 2147483647, %v2637
      %vm2650 = vcmp.eq.f32.partialorder %v2649, 8.507059e+37
      %v2651 = vand.u32 %v2637, 2147483648
      %v2652 = vor.u32 1.1754944e-38, %v2651
      %v2653 = vsel %vm2650, %v2652, %v2648
      %v2654 = vmul.f32 1.0, %v2653
      %v2655 = vrcp.pop %v2638
      %v2656 = vmul.f32 %v2638, %v2655
      %v2657 = vsub.f32 1.0, %v2656
      %v2658 = vmul.f32 %v2655, %v2657
      %v2659 = vadd.f32 %v2655, %v2658
      %vm2660 = vweird.f32 %v2638
      %vm2661 = vweird.f32 %v2655
      %vm2662 = vmor %vm2660, %vm2661
      %v2663 = vsel %vm2662, %v2655, %v2659
      %v2664 = vand.u32 2147483647, %v2638
      %vm2665 = vcmp.eq.f32.partialorder %v2664, 8.507059e+37
      %v2666 = vand.u32 %v2638, 2147483648
      %v2667 = vor.u32 1.1754944e-38, %v2666
      %v2668 = vsel %vm2665, %v2667, %v2663
      %v2669 = vmul.f32 1.0, %v2668
      %v2670 = vrcp.pop %v2639
      %v2671 = vmul.f32 %v2639, %v2670
      %v2672 = vsub.f32 1.0, %v2671
      %v2673 = vmul.f32 %v2670, %v2672
      %v2674 = vadd.f32 %v2670, %v2673
      %vm2675 = vweird.f32 %v2639
      %vm2676 = vweird.f32 %v2670
      %vm2677 = vmor %vm2675, %vm2676
      %v2678 = vsel %vm2677, %v2670, %v2674
      %v2679 = vand.u32 2147483647, %v2639
      %vm2680 = vcmp.eq.f32.partialorder %v2679, 8.507059e+37
      %v2681 = vand.u32 %v2639, 2147483648
      %v2682 = vor.u32 1.1754944e-38, %v2681
      %v2683 = vsel %vm2680, %v2682, %v2678
      %v2684 = vmul.f32 1.0, %v2683
      %v2685 = vtanh.pop %v2627
      %v2686 = vmul.f32 %v2669, %v2563
      %v2687 = vmul.f32 %v2654, %v2685
      %v2688 = vadd.f32 %v2686, %v2687
      %v2689 = vtanh.pop %v2688
      %v2690 = vmul.f32 %v2684, %v2689
      %2691 = vst [vmem:[%s1112] sm:$0xff] %v2690
      %v2692 = vld [vmem:[%s1114] sm:$0xff]
      %v2693 = vld [vmem:[%s1114 + $0x8] sm:$0xff]
      %v2694 = vld [vmem:[%s1114 + $0x10] sm:$0xff]
      %v2695 = vld [vmem:[%s1114 + $0x18] sm:$0xff]
      %v2696 = vpack.c.bf16 %v2690, %v2690
      %2697 = vmatpush.bf16.msra.mxu0 %v2286
      %2698 = vmatpush.bf16.msra.mxu0 %v2282
      %2699 = vmatpush.bf16.msra.mxu0 %v2278
      %2700 = vmatpush.bf16.msra.mxu0 %v2274
      %2701 = vmatpush.bf16.msra.mxu0 %v2270
      %2702 = vmatpush.bf16.msra.mxu0 %v2266
      %2703 = vmatpush.bf16.msra.mxu0 %v2262
      %2704 = vmatpush.bf16.msra.mxu0 %v2258
      %2705 = vmatmul.bf16.gmra.mxu0 %v2696
      %v2706 = vpop.f32.mrf.mxu0
      %v2707 = vadd.f32 0.0, %v2706
      %v2708 = vpop.f32.mrf.mxu0
      %2709 = vdwg.mxu0
      %2710 = vmatpush.bf16.msra.mxu0 %v2287
      %2711 = vmatpush.bf16.msra.mxu0 %v2283
      %2712 = vmatpush.bf16.msra.mxu0 %v2279
      %2713 = vmatpush.bf16.msra.mxu0 %v2275
      %2714 = vmatpush.bf16.msra.mxu0 %v2271
      %2715 = vmatpush.bf16.msra.mxu0 %v2267
      %2716 = vmatpush.bf16.msra.mxu0 %v2263
      %2717 = vmatpush.bf16.msra.mxu0 %v2259
      %2718 = vmatmul.bf16.gmra.mxu0 %v2696
      %v2719 = vpop.f32.mrf.mxu0
      %v2720 = vadd.f32 0.0, %v2719
      %v2721 = vpop.f32.mrf.mxu0
      %2722 = vdwg.mxu0
      %2723 = vmatpush.bf16.msra.mxu0 %v2288
      %2724 = vmatpush.bf16.msra.mxu0 %v2284
      %2725 = vmatpush.bf16.msra.mxu0 %v2280
      %2726 = vmatpush.bf16.msra.mxu0 %v2276
      %2727 = vmatpush.bf16.msra.mxu0 %v2272
      %2728 = vmatpush.bf16.msra.mxu0 %v2268
      %2729 = vmatpush.bf16.msra.mxu0 %v2264
      %2730 = vmatpush.bf16.msra.mxu0 %v2260
      %2731 = vmatmul.bf16.gmra.mxu0 %v2696
      %v2732 = vpop.f32.mrf.mxu0
      %v2733 = vadd.f32 0.0, %v2732
      %v2734 = vpop.f32.mrf.mxu0
      %2735 = vdwg.mxu0
      %2736 = vmatpush.bf16.msra.mxu0 %v2289
      %2737 = vmatpush.bf16.msra.mxu0 %v2285
      %2738 = vmatpush.bf16.msra.mxu0 %v2281
      %2739 = vmatpush.bf16.msra.mxu0 %v2277
      %2740 = vmatpush.bf16.msra.mxu0 %v2273
      %2741 = vmatpush.bf16.msra.mxu0 %v2269
      %2742 = vmatpush.bf16.msra.mxu0 %v2265
      %2743 = vmatpush.bf16.msra.mxu0 %v2261
      %2744 = vmatmul.bf16.gmra.mxu0 %v2696
      %v2745 = vpop.f32.mrf.mxu0
      %v2746 = vadd.f32 0.0, %v2745
      %v2747 = vpop.f32.mrf.mxu0
      %2748 = vdwg.mxu0
      %v2749 = vadd.f32 %v2692, %v2707
      %v2750 = vadd.f32 %v2693, %v2720
      %v2751 = vadd.f32 %v2694, %v2733
      %v2752 = vadd.f32 %v2695, %v2746
      %v2753 = vxor.u32 %v2749, 2147483648
      %v2754 = vxor.u32 %v2750, 2147483648
      %v2755 = vxor.u32 %v2751, 2147483648
      %v2756 = vmul.f32 %v2753, 1.442695
      %v2757 = vpow.pop %v2756
      %v2758 = vmul.f32 %v2754, 1.442695
      %v2759 = vpow.pop %v2758
      %v2760 = vmul.f32 %v2755, 1.442695
      %v2761 = vpow.pop %v2760
      %v2762 = vadd.f32 %v2757, 1.0
      %v2763 = vadd.f32 %v2759, 1.0
      %v2764 = vadd.f32 %v2761, 1.0
      %v2765 = vrcp.pop %v2762
      %v2766 = vmul.f32 %v2762, %v2765
      %v2767 = vsub.f32 1.0, %v2766
      %v2768 = vmul.f32 %v2765, %v2767
      %v2769 = vadd.f32 %v2765, %v2768
      %vm2770 = vweird.f32 %v2762
      %vm2771 = vweird.f32 %v2765
      %vm2772 = vmor %vm2770, %vm2771
      %v2773 = vsel %vm2772, %v2765, %v2769
      %v2774 = vand.u32 2147483647, %v2762
      %vm2775 = vcmp.eq.f32.partialorder %v2774, 8.507059e+37
      %v2776 = vand.u32 %v2762, 2147483648
      %v2777 = vor.u32 1.1754944e-38, %v2776
      %v2778 = vsel %vm2775, %v2777, %v2773
      %v2779 = vmul.f32 1.0, %v2778
      %v2780 = vrcp.pop %v2763
      %v2781 = vmul.f32 %v2763, %v2780
      %v2782 = vsub.f32 1.0, %v2781
      %v2783 = vmul.f32 %v2780, %v2782
      %v2784 = vadd.f32 %v2780, %v2783
      %vm2785 = vweird.f32 %v2763
      %vm2786 = vweird.f32 %v2780
      %vm2787 = vmor %vm2785, %vm2786
      %v2788 = vsel %vm2787, %v2780, %v2784
      %v2789 = vand.u32 2147483647, %v2763
      %vm2790 = vcmp.eq.f32.partialorder %v2789, 8.507059e+37
      %v2791 = vand.u32 %v2763, 2147483648
      %v2792 = vor.u32 1.1754944e-38, %v2791
      %v2793 = vsel %vm2790, %v2792, %v2788
      %v2794 = vmul.f32 1.0, %v2793
      %v2795 = vrcp.pop %v2764
      %v2796 = vmul.f32 %v2764, %v2795
      %v2797 = vsub.f32 1.0, %v2796
      %v2798 = vmul.f32 %v2795, %v2797
      %v2799 = vadd.f32 %v2795, %v2798
      %vm2800 = vweird.f32 %v2764
      %vm2801 = vweird.f32 %v2795
      %vm2802 = vmor %vm2800, %vm2801
      %v2803 = vsel %vm2802, %v2795, %v2799
      %v2804 = vand.u32 2147483647, %v2764
      %vm2805 = vcmp.eq.f32.partialorder %v2804, 8.507059e+37
      %v2806 = vand.u32 %v2764, 2147483648
      %v2807 = vor.u32 1.1754944e-38, %v2806
      %v2808 = vsel %vm2805, %v2807, %v2803
      %v2809 = vmul.f32 1.0, %v2808
      %v2810 = vtanh.pop %v2752
      %v2811 = vmul.f32 %v2794, %v2688
      %v2812 = vmul.f32 %v2779, %v2810
      %v2813 = vadd.f32 %v2811, %v2812
      %v2814 = vtanh.pop %v2813
      %v2815 = vmul.f32 %v2809, %v2814
      %2816 = vst [vmem:[%s1239] sm:$0xff] %v2815
      %v2817 = vld [vmem:[%s1241] sm:$0xff]
      %v2818 = vld [vmem:[%s1241 + $0x8] sm:$0xff]
      %v2819 = vld [vmem:[%s1241 + $0x10] sm:$0xff]
      %v2820 = vld [vmem:[%s1241 + $0x18] sm:$0xff]
      %v2821 = vpack.c.bf16 %v2815, %v2815
      %2822 = vmatpush.bf16.msra.mxu0 %v2286
      %2823 = vmatpush.bf16.msra.mxu0 %v2282
      %2824 = vmatpush.bf16.msra.mxu0 %v2278
      %2825 = vmatpush.bf16.msra.mxu0 %v2274
      %2826 = vmatpush.bf16.msra.mxu0 %v2270
      %2827 = vmatpush.bf16.msra.mxu0 %v2266
      %2828 = vmatpush.bf16.msra.mxu0 %v2262
      %2829 = vmatpush.bf16.msra.mxu0 %v2258
      %2830 = vmatmul.bf16.gmra.mxu0 %v2821
      %v2831 = vpop.f32.mrf.mxu0
      %v2832 = vadd.f32 0.0, %v2831
      %v2833 = vpop.f32.mrf.mxu0
      %2834 = vdwg.mxu0
      %2835 = vmatpush.bf16.msra.mxu0 %v2287
      %2836 = vmatpush.bf16.msra.mxu0 %v2283
      %2837 = vmatpush.bf16.msra.mxu0 %v2279
      %2838 = vmatpush.bf16.msra.mxu0 %v2275
      %2839 = vmatpush.bf16.msra.mxu0 %v2271
      %2840 = vmatpush.bf16.msra.mxu0 %v2267
      %2841 = vmatpush.bf16.msra.mxu0 %v2263
      %2842 = vmatpush.bf16.msra.mxu0 %v2259
      %2843 = vmatmul.bf16.gmra.mxu0 %v2821
      %v2844 = vpop.f32.mrf.mxu0
      %v2845 = vadd.f32 0.0, %v2844
      %v2846 = vpop.f32.mrf.mxu0
      %2847 = vdwg.mxu0
      %2848 = vmatpush.bf16.msra.mxu0 %v2288
      %2849 = vmatpush.bf16.msra.mxu0 %v2284
      %2850 = vmatpush.bf16.msra.mxu0 %v2280
      %2851 = vmatpush.bf16.msra.mxu0 %v2276
      %2852 = vmatpush.bf16.msra.mxu0 %v2272
      %2853 = vmatpush.bf16.msra.mxu0 %v2268
      %2854 = vmatpush.bf16.msra.mxu0 %v2264
      %2855 = vmatpush.bf16.msra.mxu0 %v2260
      %2856 = vmatmul.bf16.gmra.mxu0 %v2821
      %v2857 = vpop.f32.mrf.mxu0
      %v2858 = vadd.f32 0.0, %v2857
      %v2859 = vpop.f32.mrf.mxu0
      %2860 = vdwg.mxu0
      %2861 = vmatpush.bf16.msra.mxu0 %v2289
      %2862 = vmatpush.bf16.msra.mxu0 %v2285
      %2863 = vmatpush.bf16.msra.mxu0 %v2281
      %2864 = vmatpush.bf16.msra.mxu0 %v2277
      %2865 = vmatpush.bf16.msra.mxu0 %v2273
      %2866 = vmatpush.bf16.msra.mxu0 %v2269
      %2867 = vmatpush.bf16.msra.mxu0 %v2265
      %2868 = vmatpush.bf16.msra.mxu0 %v2261
      %2869 = vmatmul.bf16.gmra.mxu0 %v2821
      %v2870 = vpop.f32.mrf.mxu0
      %v2871 = vadd.f32 0.0, %v2870
      %v2872 = vpop.f32.mrf.mxu0
      %2873 = vdwg.mxu0
      %v2874 = vadd.f32 %v2817, %v2832
      %v2875 = vadd.f32 %v2818, %v2845
      %v2876 = vadd.f32 %v2819, %v2858
      %v2877 = vadd.f32 %v2820, %v2871
      %v2878 = vxor.u32 %v2874, 2147483648
      %v2879 = vxor.u32 %v2875, 2147483648
      %v2880 = vxor.u32 %v2876, 2147483648
      %v2881 = vmul.f32 %v2878, 1.442695
      %v2882 = vpow.pop %v2881
      %v2883 = vmul.f32 %v2879, 1.442695
      %v2884 = vpow.pop %v2883
      %v2885 = vmul.f32 %v2880, 1.442695
      %v2886 = vpow.pop %v2885
      %v2887 = vadd.f32 %v2882, 1.0
      %v2888 = vadd.f32 %v2884, 1.0
      %v2889 = vadd.f32 %v2886, 1.0
      %v2890 = vrcp.pop %v2887
      %v2891 = vmul.f32 %v2887, %v2890
      %v2892 = vsub.f32 1.0, %v2891
      %v2893 = vmul.f32 %v2890, %v2892
      %v2894 = vadd.f32 %v2890, %v2893
      %vm2895 = vweird.f32 %v2887
      %vm2896 = vweird.f32 %v2890
      %vm2897 = vmor %vm2895, %vm2896
      %v2898 = vsel %vm2897, %v2890, %v2894
      %v2899 = vand.u32 2147483647, %v2887
      %vm2900 = vcmp.eq.f32.partialorder %v2899, 8.507059e+37
      %v2901 = vand.u32 %v2887, 2147483648
      %v2902 = vor.u32 1.1754944e-38, %v2901
      %v2903 = vsel %vm2900, %v2902, %v2898
      %v2904 = vmul.f32 1.0, %v2903
      %v2905 = vrcp.pop %v2888
      %v2906 = vmul.f32 %v2888, %v2905
      %v2907 = vsub.f32 1.0, %v2906
      %v2908 = vmul.f32 %v2905, %v2907
      %v2909 = vadd.f32 %v2905, %v2908
      %vm2910 = vweird.f32 %v2888
      %vm2911 = vweird.f32 %v2905
      %vm2912 = vmor %vm2910, %vm2911
      %v2913 = vsel %vm2912, %v2905, %v2909
      %v2914 = vand.u32 2147483647, %v2888
      %vm2915 = vcmp.eq.f32.partialorder %v2914, 8.507059e+37
      %v2916 = vand.u32 %v2888, 2147483648
      %v2917 = vor.u32 1.1754944e-38, %v2916
      %v2918 = vsel %vm2915, %v2917, %v2913
      %v2919 = vmul.f32 1.0, %v2918
      %v2920 = vrcp.pop %v2889
      %v2921 = vmul.f32 %v2889, %v2920
      %v2922 = vsub.f32 1.0, %v2921
      %v2923 = vmul.f32 %v2920, %v2922
      %v2924 = vadd.f32 %v2920, %v2923
      %vm2925 = vweird.f32 %v2889
      %vm2926 = vweird.f32 %v2920
      %vm2927 = vmor %vm2925, %vm2926
      %v2928 = vsel %vm2927, %v2920, %v2924
      %v2929 = vand.u32 2147483647, %v2889
      %vm2930 = vcmp.eq.f32.partialorder %v2929, 8.507059e+37
      %v2931 = vand.u32 %v2889, 2147483648
      %v2932 = vor.u32 1.1754944e-38, %v2931
      %v2933 = vsel %vm2930, %v2932, %v2928
      %v2934 = vmul.f32 1.0, %v2933
      %v2935 = vtanh.pop %v2877
      %v2936 = vmul.f32 %v2919, %v2813
      %v2937 = vmul.f32 %v2904, %v2935
      %v2938 = vadd.f32 %v2936, %v2937
      %v2939 = vtanh.pop %v2938
      %v2940 = vmul.f32 %v2934, %v2939
      %2941 = vst [vmem:[%s1366] sm:$0xff] %v2940
      %v2942 = vld [vmem:[%s1368] sm:$0xff]
      %v2943 = vld [vmem:[%s1368 + $0x8] sm:$0xff]
      %v2944 = vld [vmem:[%s1368 + $0x10] sm:$0xff]
      %v2945 = vld [vmem:[%s1368 + $0x18] sm:$0xff]
      %v2946 = vpack.c.bf16 %v2940, %v2940
      %2947 = vmatpush.bf16.msra.mxu0 %v2286
      %2948 = vmatpush.bf16.msra.mxu0 %v2282
      %2949 = vmatpush.bf16.msra.mxu0 %v2278
      %2950 = vmatpush.bf16.msra.mxu0 %v2274
      %2951 = vmatpush.bf16.msra.mxu0 %v2270
      %2952 = vmatpush.bf16.msra.mxu0 %v2266
      %2953 = vmatpush.bf16.msra.mxu0 %v2262
      %2954 = vmatpush.bf16.msra.mxu0 %v2258
      %2955 = vmatmul.bf16.gmra.mxu0 %v2946
      %v2956 = vpop.f32.mrf.mxu0
      %v2957 = vadd.f32 0.0, %v2956
      %v2958 = vpop.f32.mrf.mxu0
      %2959 = vdwg.mxu0
      %2960 = vmatpush.bf16.msra.mxu0 %v2287
      %2961 = vmatpush.bf16.msra.mxu0 %v2283
      %2962 = vmatpush.bf16.msra.mxu0 %v2279
      %2963 = vmatpush.bf16.msra.mxu0 %v2275
      %2964 = vmatpush.bf16.msra.mxu0 %v2271
      %2965 = vmatpush.bf16.msra.mxu0 %v2267
      %2966 = vmatpush.bf16.msra.mxu0 %v2263
      %2967 = vmatpush.bf16.msra.mxu0 %v2259
      %2968 = vmatmul.bf16.gmra.mxu0 %v2946
      %v2969 = vpop.f32.mrf.mxu0
      %v2970 = vadd.f32 0.0, %v2969
      %v2971 = vpop.f32.mrf.mxu0
      %2972 = vdwg.mxu0
      %2973 = vmatpush.bf16.msra.mxu0 %v2288
      %2974 = vmatpush.bf16.msra.mxu0 %v2284
      %2975 = vmatpush.bf16.msra.mxu0 %v2280
      %2976 = vmatpush.bf16.msra.mxu0 %v2276
      %2977 = vmatpush.bf16.msra.mxu0 %v2272
      %2978 = vmatpush.bf16.msra.mxu0 %v2268
      %2979 = vmatpush.bf16.msra.mxu0 %v2264
      %2980 = vmatpush.bf16.msra.mxu0 %v2260
      %2981 = vmatmul.bf16.gmra.mxu0 %v2946
      %v2982 = vpop.f32.mrf.mxu0
      %v2983 = vadd.f32 0.0, %v2982
      %v2984 = vpop.f32.mrf.mxu0
      %2985 = vdwg.mxu0
      %2986 = vmatpush.bf16.msra.mxu0 %v2289
      %2987 = vmatpush.bf16.msra.mxu0 %v2285
      %2988 = vmatpush.bf16.msra.mxu0 %v2281
      %2989 = vmatpush.bf16.msra.mxu0 %v2277
      %2990 = vmatpush.bf16.msra.mxu0 %v2273
      %2991 = vmatpush.bf16.msra.mxu0 %v2269
      %2992 = vmatpush.bf16.msra.mxu0 %v2265
      %2993 = vmatpush.bf16.msra.mxu0 %v2261
      %2994 = vmatmul.bf16.gmra.mxu0 %v2946
      %v2995 = vpop.f32.mrf.mxu0
      %v2996 = vadd.f32 0.0, %v2995
      %v2997 = vpop.f32.mrf.mxu0
      %2998 = vdwg.mxu0
      %v2999 = vadd.f32 %v2942, %v2957
      %v3000 = vadd.f32 %v2943, %v2970
      %v3001 = vadd.f32 %v2944, %v2983
      %v3002 = vadd.f32 %v2945, %v2996
      %v3003 = vxor.u32 %v2999, 2147483648
      %v3004 = vxor.u32 %v3000, 2147483648
      %v3005 = vxor.u32 %v3001, 2147483648
      %v3006 = vmul.f32 %v3003, 1.442695
      %v3007 = vpow.pop %v3006
      %v3008 = vmul.f32 %v3004, 1.442695
      %v3009 = vpow.pop %v3008
      %v3010 = vmul.f32 %v3005, 1.442695
      %v3011 = vpow.pop %v3010
      %v3012 = vadd.f32 %v3007, 1.0
      %v3013 = vadd.f32 %v3009, 1.0
      %v3014 = vadd.f32 %v3011, 1.0
      %v3015 = vrcp.pop %v3012
      %v3016 = vmul.f32 %v3012, %v3015
      %v3017 = vsub.f32 1.0, %v3016
      %v3018 = vmul.f32 %v3015, %v3017
      %v3019 = vadd.f32 %v3015, %v3018
      %vm3020 = vweird.f32 %v3012
      %vm3021 = vweird.f32 %v3015
      %vm3022 = vmor %vm3020, %vm3021
      %v3023 = vsel %vm3022, %v3015, %v3019
      %v3024 = vand.u32 2147483647, %v3012
      %vm3025 = vcmp.eq.f32.partialorder %v3024, 8.507059e+37
      %v3026 = vand.u32 %v3012, 2147483648
      %v3027 = vor.u32 1.1754944e-38, %v3026
      %v3028 = vsel %vm3025, %v3027, %v3023
      %v3029 = vmul.f32 1.0, %v3028
      %v3030 = vrcp.pop %v3013
      %v3031 = vmul.f32 %v3013, %v3030
      %v3032 = vsub.f32 1.0, %v3031
      %v3033 = vmul.f32 %v3030, %v3032
      %v3034 = vadd.f32 %v3030, %v3033
      %vm3035 = vweird.f32 %v3013
      %vm3036 = vweird.f32 %v3030
      %vm3037 = vmor %vm3035, %vm3036
      %v3038 = vsel %vm3037, %v3030, %v3034
      %v3039 = vand.u32 2147483647, %v3013
      %vm3040 = vcmp.eq.f32.partialorder %v3039, 8.507059e+37
      %v3041 = vand.u32 %v3013, 2147483648
      %v3042 = vor.u32 1.1754944e-38, %v3041
      %v3043 = vsel %vm3040, %v3042, %v3038
      %v3044 = vmul.f32 1.0, %v3043
      %v3045 = vrcp.pop %v3014
      %v3046 = vmul.f32 %v3014, %v3045
      %v3047 = vsub.f32 1.0, %v3046
      %v3048 = vmul.f32 %v3045, %v3047
      %v3049 = vadd.f32 %v3045, %v3048
      %vm3050 = vweird.f32 %v3014
      %vm3051 = vweird.f32 %v3045
      %vm3052 = vmor %vm3050, %vm3051
      %v3053 = vsel %vm3052, %v3045, %v3049
      %v3054 = vand.u32 2147483647, %v3014
      %vm3055 = vcmp.eq.f32.partialorder %v3054, 8.507059e+37
      %v3056 = vand.u32 %v3014, 2147483648
      %v3057 = vor.u32 1.1754944e-38, %v3056
      %v3058 = vsel %vm3055, %v3057, %v3053
      %v3059 = vmul.f32 1.0, %v3058
      %v3060 = vtanh.pop %v3002
      %v3061 = vmul.f32 %v3044, %v2938
      %v3062 = vmul.f32 %v3029, %v3060
      %v3063 = vadd.f32 %v3061, %v3062
      %v3064 = vtanh.pop %v3063
      %v3065 = vmul.f32 %v3059, %v3064
      %3066 = vst [vmem:[%s1493] sm:$0xff] %v3065
      %v3067 = vld [vmem:[%s1495] sm:$0xff]
      %v3068 = vld [vmem:[%s1495 + $0x8] sm:$0xff]
      %v3069 = vld [vmem:[%s1495 + $0x10] sm:$0xff]
      %v3070 = vld [vmem:[%s1495 + $0x18] sm:$0xff]
      %v3071 = vpack.c.bf16 %v3065, %v3065
      %3072 = vmatpush.bf16.msra.mxu0 %v2286
      %3073 = vmatpush.bf16.msra.mxu0 %v2282
      %3074 = vmatpush.bf16.msra.mxu0 %v2278
      %3075 = vmatpush.bf16.msra.mxu0 %v2274
      %3076 = vmatpush.bf16.msra.mxu0 %v2270
      %3077 = vmatpush.bf16.msra.mxu0 %v2266
      %3078 = vmatpush.bf16.msra.mxu0 %v2262
      %3079 = vmatpush.bf16.msra.mxu0 %v2258
      %3080 = vmatmul.bf16.gmra.mxu0 %v3071
      %v3081 = vpop.f32.mrf.mxu0
      %v3082 = vadd.f32 0.0, %v3081
      %v3083 = vpop.f32.mrf.mxu0
      %3084 = vdwg.mxu0
      %3085 = vmatpush.bf16.msra.mxu0 %v2287
      %3086 = vmatpush.bf16.msra.mxu0 %v2283
      %3087 = vmatpush.bf16.msra.mxu0 %v2279
      %3088 = vmatpush.bf16.msra.mxu0 %v2275
      %3089 = vmatpush.bf16.msra.mxu0 %v2271
      %3090 = vmatpush.bf16.msra.mxu0 %v2267
      %3091 = vmatpush.bf16.msra.mxu0 %v2263
      %3092 = vmatpush.bf16.msra.mxu0 %v2259
      %3093 = vmatmul.bf16.gmra.mxu0 %v3071
      %v3094 = vpop.f32.mrf.mxu0
      %v3095 = vadd.f32 0.0, %v3094
      %v3096 = vpop.f32.mrf.mxu0
      %3097 = vdwg.mxu0
      %3098 = vmatpush.bf16.msra.mxu0 %v2288
      %3099 = vmatpush.bf16.msra.mxu0 %v2284
      %3100 = vmatpush.bf16.msra.mxu0 %v2280
      %3101 = vmatpush.bf16.msra.mxu0 %v2276
      %3102 = vmatpush.bf16.msra.mxu0 %v2272
      %3103 = vmatpush.bf16.msra.mxu0 %v2268
      %3104 = vmatpush.bf16.msra.mxu0 %v2264
      %3105 = vmatpush.bf16.msra.mxu0 %v2260
      %3106 = vmatmul.bf16.gmra.mxu0 %v3071
      %v3107 = vpop.f32.mrf.mxu0
      %v3108 = vadd.f32 0.0, %v3107
      %v3109 = vpop.f32.mrf.mxu0
      %3110 = vdwg.mxu0
      %3111 = vmatpush.bf16.msra.mxu0 %v2289
      %3112 = vmatpush.bf16.msra.mxu0 %v2285
      %3113 = vmatpush.bf16.msra.mxu0 %v2281
      %3114 = vmatpush.bf16.msra.mxu0 %v2277
      %3115 = vmatpush.bf16.msra.mxu0 %v2273
      %3116 = vmatpush.bf16.msra.mxu0 %v2269
      %3117 = vmatpush.bf16.msra.mxu0 %v2265
      %3118 = vmatpush.bf16.msra.mxu0 %v2261
      %3119 = vmatmul.bf16.gmra.mxu0 %v3071
      %v3120 = vpop.f32.mrf.mxu0
      %v3121 = vadd.f32 0.0, %v3120
      %v3122 = vpop.f32.mrf.mxu0
      %3123 = vdwg.mxu0
      %v3124 = vadd.f32 %v3067, %v3082
      %v3125 = vadd.f32 %v3068, %v3095
      %v3126 = vadd.f32 %v3069, %v3108
      %v3127 = vadd.f32 %v3070, %v3121
      %v3128 = vxor.u32 %v3124, 2147483648
      %v3129 = vxor.u32 %v3125, 2147483648
      %v3130 = vxor.u32 %v3126, 2147483648
      %v3131 = vmul.f32 %v3128, 1.442695
      %v3132 = vpow.pop %v3131
      %v3133 = vmul.f32 %v3129, 1.442695
      %v3134 = vpow.pop %v3133
      %v3135 = vmul.f32 %v3130, 1.442695
      %v3136 = vpow.pop %v3135
      %v3137 = vadd.f32 %v3132, 1.0
      %v3138 = vadd.f32 %v3134, 1.0
      %v3139 = vadd.f32 %v3136, 1.0
      %v3140 = vrcp.pop %v3137
      %v3141 = vmul.f32 %v3137, %v3140
      %v3142 = vsub.f32 1.0, %v3141
      %v3143 = vmul.f32 %v3140, %v3142
      %v3144 = vadd.f32 %v3140, %v3143
      %vm3145 = vweird.f32 %v3137
      %vm3146 = vweird.f32 %v3140
      %vm3147 = vmor %vm3145, %vm3146
      %v3148 = vsel %vm3147, %v3140, %v3144
      %v3149 = vand.u32 2147483647, %v3137
      %vm3150 = vcmp.eq.f32.partialorder %v3149, 8.507059e+37
      %v3151 = vand.u32 %v3137, 2147483648
      %v3152 = vor.u32 1.1754944e-38, %v3151
      %v3153 = vsel %vm3150, %v3152, %v3148
      %v3154 = vmul.f32 1.0, %v3153
      %v3155 = vrcp.pop %v3138
      %v3156 = vmul.f32 %v3138, %v3155
      %v3157 = vsub.f32 1.0, %v3156
      %v3158 = vmul.f32 %v3155, %v3157
      %v3159 = vadd.f32 %v3155, %v3158
      %vm3160 = vweird.f32 %v3138
      %vm3161 = vweird.f32 %v3155
      %vm3162 = vmor %vm3160, %vm3161
      %v3163 = vsel %vm3162, %v3155, %v3159
      %v3164 = vand.u32 2147483647, %v3138
      %vm3165 = vcmp.eq.f32.partialorder %v3164, 8.507059e+37
      %v3166 = vand.u32 %v3138, 2147483648
      %v3167 = vor.u32 1.1754944e-38, %v3166
      %v3168 = vsel %vm3165, %v3167, %v3163
      %v3169 = vmul.f32 1.0, %v3168
      %v3170 = vrcp.pop %v3139
      %v3171 = vmul.f32 %v3139, %v3170
      %v3172 = vsub.f32 1.0, %v3171
      %v3173 = vmul.f32 %v3170, %v3172
      %v3174 = vadd.f32 %v3170, %v3173
      %vm3175 = vweird.f32 %v3139
      %vm3176 = vweird.f32 %v3170
      %vm3177 = vmor %vm3175, %vm3176
      %v3178 = vsel %vm3177, %v3170, %v3174
      %v3179 = vand.u32 2147483647, %v3139
      %vm3180 = vcmp.eq.f32.partialorder %v3179, 8.507059e+37
      %v3181 = vand.u32 %v3139, 2147483648
      %v3182 = vor.u32 1.1754944e-38, %v3181
      %v3183 = vsel %vm3180, %v3182, %v3178
      %v3184 = vmul.f32 1.0, %v3183
      %v3185 = vtanh.pop %v3127
      %v3186 = vmul.f32 %v3169, %v3063
      %v3187 = vmul.f32 %v3154, %v3185
      %v3188 = vadd.f32 %v3186, %v3187
      %v3189 = vtanh.pop %v3188
      %v3190 = vmul.f32 %v3184, %v3189
      %3191 = vst [vmem:[%s1620] sm:$0xff] %v3190
      %v3192 = vld [vmem:[%s1622] sm:$0xff]
      %v3193 = vld [vmem:[%s1622 + $0x8] sm:$0xff]
      %v3194 = vld [vmem:[%s1622 + $0x10] sm:$0xff]
      %v3195 = vld [vmem:[%s1622 + $0x18] sm:$0xff]
      %v3196 = vpack.c.bf16 %v3190, %v3190
      %3197 = vmatpush.bf16.msra.mxu0 %v2286
      %3198 = vmatpush.bf16.msra.mxu0 %v2282
      %3199 = vmatpush.bf16.msra.mxu0 %v2278
      %3200 = vmatpush.bf16.msra.mxu0 %v2274
      %3201 = vmatpush.bf16.msra.mxu0 %v2270
      %3202 = vmatpush.bf16.msra.mxu0 %v2266
      %3203 = vmatpush.bf16.msra.mxu0 %v2262
      %3204 = vmatpush.bf16.msra.mxu0 %v2258
      %3205 = vmatmul.bf16.gmra.mxu0 %v3196
      %v3206 = vpop.f32.mrf.mxu0
      %v3207 = vadd.f32 0.0, %v3206
      %v3208 = vpop.f32.mrf.mxu0
      %3209 = vdwg.mxu0
      %3210 = vmatpush.bf16.msra.mxu0 %v2287
      %3211 = vmatpush.bf16.msra.mxu0 %v2283
      %3212 = vmatpush.bf16.msra.mxu0 %v2279
      %3213 = vmatpush.bf16.msra.mxu0 %v2275
      %3214 = vmatpush.bf16.msra.mxu0 %v2271
      %3215 = vmatpush.bf16.msra.mxu0 %v2267
      %3216 = vmatpush.bf16.msra.mxu0 %v2263
      %3217 = vmatpush.bf16.msra.mxu0 %v2259
      %3218 = vmatmul.bf16.gmra.mxu0 %v3196
      %v3219 = vpop.f32.mrf.mxu0
      %v3220 = vadd.f32 0.0, %v3219
      %v3221 = vpop.f32.mrf.mxu0
      %3222 = vdwg.mxu0
      %3223 = vmatpush.bf16.msra.mxu0 %v2288
      %3224 = vmatpush.bf16.msra.mxu0 %v2284
      %3225 = vmatpush.bf16.msra.mxu0 %v2280
      %3226 = vmatpush.bf16.msra.mxu0 %v2276
      %3227 = vmatpush.bf16.msra.mxu0 %v2272
      %3228 = vmatpush.bf16.msra.mxu0 %v2268
      %3229 = vmatpush.bf16.msra.mxu0 %v2264
      %3230 = vmatpush.bf16.msra.mxu0 %v2260
      %3231 = vmatmul.bf16.gmra.mxu0 %v3196
      %v3232 = vpop.f32.mrf.mxu0
      %v3233 = vadd.f32 0.0, %v3232
      %v3234 = vpop.f32.mrf.mxu0
      %3235 = vdwg.mxu0
      %3236 = vmatpush.bf16.msra.mxu0 %v2289
      %3237 = vmatpush.bf16.msra.mxu0 %v2285
      %3238 = vmatpush.bf16.msra.mxu0 %v2281
      %3239 = vmatpush.bf16.msra.mxu0 %v2277
      %3240 = vmatpush.bf16.msra.mxu0 %v2273
      %3241 = vmatpush.bf16.msra.mxu0 %v2269
      %3242 = vmatpush.bf16.msra.mxu0 %v2265
      %3243 = vmatpush.bf16.msra.mxu0 %v2261
      %3244 = vmatmul.bf16.gmra.mxu0 %v3196
      %v3245 = vpop.f32.mrf.mxu0
      %v3246 = vadd.f32 0.0, %v3245
      %v3247 = vpop.f32.mrf.mxu0
      %3248 = vdwg.mxu0
      %v3249 = vadd.f32 %v3192, %v3207
      %v3250 = vadd.f32 %v3193, %v3220
      %v3251 = vadd.f32 %v3194, %v3233
      %v3252 = vadd.f32 %v3195, %v3246
      %v3253 = vxor.u32 %v3249, 2147483648
      %v3254 = vxor.u32 %v3250, 2147483648
      %v3255 = vxor.u32 %v3251, 2147483648
      %v3256 = vmul.f32 %v3253, 1.442695
      %v3257 = vpow.pop %v3256
      %v3258 = vmul.f32 %v3254, 1.442695
      %v3259 = vpow.pop %v3258
      %v3260 = vmul.f32 %v3255, 1.442695
      %v3261 = vpow.pop %v3260
      %v3262 = vadd.f32 %v3257, 1.0
      %v3263 = vadd.f32 %v3259, 1.0
      %v3264 = vadd.f32 %v3261, 1.0
      %v3265 = vrcp.pop %v3262
      %v3266 = vmul.f32 %v3262, %v3265
      %v3267 = vsub.f32 1.0, %v3266
      %v3268 = vmul.f32 %v3265, %v3267
      %v3269 = vadd.f32 %v3265, %v3268
      %vm3270 = vweird.f32 %v3262
      %vm3271 = vweird.f32 %v3265
      %vm3272 = vmor %vm3270, %vm3271
      %v3273 = vsel %vm3272, %v3265, %v3269
      %v3274 = vand.u32 2147483647, %v3262
      %vm3275 = vcmp.eq.f32.partialorder %v3274, 8.507059e+37
      %v3276 = vand.u32 %v3262, 2147483648
      %v3277 = vor.u32 1.1754944e-38, %v3276
      %v3278 = vsel %vm3275, %v3277, %v3273
      %v3279 = vmul.f32 1.0, %v3278
      %v3280 = vrcp.pop %v3263
      %v3281 = vmul.f32 %v3263, %v3280
      %v3282 = vsub.f32 1.0, %v3281
      %v3283 = vmul.f32 %v3280, %v3282
      %v3284 = vadd.f32 %v3280, %v3283
      %vm3285 = vweird.f32 %v3263
      %vm3286 = vweird.f32 %v3280
      %vm3287 = vmor %vm3285, %vm3286
      %v3288 = vsel %vm3287, %v3280, %v3284
      %v3289 = vand.u32 2147483647, %v3263
      %vm3290 = vcmp.eq.f32.partialorder %v3289, 8.507059e+37
      %v3291 = vand.u32 %v3263, 2147483648
      %v3292 = vor.u32 1.1754944e-38, %v3291
      %v3293 = vsel %vm3290, %v3292, %v3288
      %v3294 = vmul.f32 1.0, %v3293
      %v3295 = vrcp.pop %v3264
      %v3296 = vmul.f32 %v3264, %v3295
      %v3297 = vsub.f32 1.0, %v3296
      %v3298 = vmul.f32 %v3295, %v3297
      %v3299 = vadd.f32 %v3295, %v3298
      %vm3300 = vweird.f32 %v3264
      %vm3301 = vweird.f32 %v3295
      %vm3302 = vmor %vm3300, %vm3301
      %v3303 = vsel %vm3302, %v3295, %v3299
      %v3304 = vand.u32 2147483647, %v3264
      %vm3305 = vcmp.eq.f32.partialorder %v3304, 8.507059e+37
      %v3306 = vand.u32 %v3264, 2147483648
      %v3307 = vor.u32 1.1754944e-38, %v3306
      %v3308 = vsel %vm3305, %v3307, %v3303
      %v3309 = vmul.f32 1.0, %v3308
      %v3310 = vtanh.pop %v3252
      %v3311 = vmul.f32 %v3294, %v3188
      %v3312 = vmul.f32 %v3279, %v3310
      %v3313 = vadd.f32 %v3311, %v3312
      %v3314 = vtanh.pop %v3313
      %v3315 = vmul.f32 %v3309, %v3314
      %3316 = vst [vmem:[%s1747] sm:$0xff] %v3315
    $region166: #{vae_forward.3} parent=1 // loop_footer
      %s1754 = sadd.s32 1, %s1750
    $region167: #{vae_forward.3} parent=1 // loop_footer_branch
      %1749 = sbr.rel target = $region163
    $region168: #{vae_forward.3} parent=1 // loop_exit
      _
    %v3317 = vld [vmem:[%s1747] sm:$0xff]
    %v3318 = vpack.c.bf16 %v3317, %v3317
    %v3319 = vld [vmem:[#allocation11] sm:$0xf]
    %v3320 = vld [vmem:[#allocation11 + $0x4] sm:$0xf]
    %v3321 = vld [vmem:[#allocation11 + $0x8] sm:$0xf]
    %v3322 = vld [vmem:[#allocation11 + $0xc] sm:$0xf]
    %v3323 = vld [vmem:[#allocation11 + $0x10] sm:$0xf]
    %v3324 = vld [vmem:[#allocation11 + $0x14] sm:$0xf]
    %v3325 = vld [vmem:[#allocation11 + $0x18] sm:$0xf]
    %v3326 = vld [vmem:[#allocation11 + $0x1c] sm:$0xf]
    %v3327 = vld [vmem:[#allocation11 + $0x20] sm:$0xf]
    %v3328 = vld [vmem:[#allocation11 + $0x24] sm:$0xf]
    %v3329 = vld [vmem:[#allocation11 + $0x28] sm:$0xf]
    %v3330 = vld [vmem:[#allocation11 + $0x2c] sm:$0xf]
    %v3331 = vld [vmem:[#allocation11 + $0x30] sm:$0xf]
    %v3332 = vld [vmem:[#allocation11 + $0x34] sm:$0xf]
    %v3333 = vld [vmem:[#allocation11 + $0x38] sm:$0xf]
    %v3334 = vld [vmem:[#allocation11 + $0x3c] sm:$0xf]
    %v3335 = vld [vmem:[#allocation12] sm:$0x1]
    %v3337 = vperm.slane %v3335, 0
    %v3355 = vunpack.c.l.b16 %v3319
    %v3356 = vunpack.c.l.b16 %v3320
    %v3357 = vunpack.c.l.b16 %v3321
    %v3358 = vunpack.c.l.b16 %v3322
    %v3359 = vunpack.c.l.b16 %v3323
    %v3360 = vunpack.c.l.b16 %v3324
    %v3361 = vunpack.c.l.b16 %v3325
    %v3362 = vunpack.c.l.b16 %v3326
    %v3363 = vunpack.c.l.b16 %v3327
    %v3364 = vunpack.c.l.b16 %v3328
    %v3365 = vunpack.c.l.b16 %v3329
    %v3366 = vunpack.c.l.b16 %v3330
    %v3367 = vunpack.c.l.b16 %v3331
    %v3368 = vunpack.c.l.b16 %v3332
    %v3369 = vunpack.c.l.b16 %v3333
    %v3370 = vunpack.c.l.b16 %v3334
    %v3371 = vpack.c.b16 %v3356, %v3355
    %v3372 = vpack.c.b16 %v3358, %v3357
    %v3373 = vpack.c.b16 %v3360, %v3359
    %v3374 = vpack.c.b16 %v3362, %v3361
    %v3375 = vpack.c.b16 %v3364, %v3363
    %v3376 = vpack.c.b16 %v3366, %v3365
    %v3377 = vpack.c.b16 %v3368, %v3367
    %v3378 = vpack.c.b16 %v3370, %v3369
    %3387 = vmatpush.bf16.msra.mxu0 %v3378
    %3388 = vmatpush.bf16.msra.mxu0 %v3377
    %3389 = vmatpush.bf16.msra.mxu0 %v3376
    %3390 = vmatpush.bf16.msra.mxu0 %v3375
    %3391 = vmatpush.bf16.msra.mxu0 %v3374
    %3392 = vmatpush.bf16.msra.mxu0 %v3373
    %3393 = vmatpush.bf16.msra.mxu0 %v3372
    %3394 = vmatpush.bf16.msra.mxu0 %v3371
    %3395 = vmatmul.bf16.gmra.mxu0 %v3318
    %v3396 = vpop.f32.mrf.mxu0
    %v3397 = vadd.f32 %v3337, %v3396
    %v3398 = vpop.f32.mrf.mxu0
    %3399 = vdwg.mxu0
    %v3400 = vmax.f32 %v3397, 0.0
    %v3401 = vpack.c.bf16 %v3400, %v3400
    %v3402 = vld [vmem:[#allocation14] sm:$0xf]
    %v3403 = vld [vmem:[#allocation14 + $0x4] sm:$0xf]
    %v3404 = vld [vmem:[#allocation14 + $0x8] sm:$0xf]
    %v3405 = vld [vmem:[#allocation14 + $0xc] sm:$0xf]
    %v3406 = vld [vmem:[#allocation14 + $0x10] sm:$0xf]
    %v3407 = vld [vmem:[#allocation14 + $0x14] sm:$0xf]
    %v3408 = vld [vmem:[#allocation14 + $0x18] sm:$0xf]
    %v3409 = vld [vmem:[#allocation14 + $0x1c] sm:$0xf]
    %v3410 = vld [vmem:[#allocation14 + $0x20] sm:$0xf]
    %v3411 = vld [vmem:[#allocation14 + $0x24] sm:$0xf]
    %v3412 = vld [vmem:[#allocation14 + $0x28] sm:$0xf]
    %v3413 = vld [vmem:[#allocation14 + $0x2c] sm:$0xf]
    %v3414 = vld [vmem:[#allocation14 + $0x30] sm:$0xf]
    %v3415 = vld [vmem:[#allocation14 + $0x34] sm:$0xf]
    %v3416 = vld [vmem:[#allocation14 + $0x38] sm:$0xf]
    %v3417 = vld [vmem:[#allocation14 + $0x3c] sm:$0xf]
    %v3418 = vld [vmem:[#allocation15] sm:$0x1]
    %v3420 = vperm.slane %v3418, 0
    %v3438 = vunpack.c.l.b16 %v3402
    %v3439 = vunpack.c.l.b16 %v3403
    %v3440 = vunpack.c.l.b16 %v3404
    %v3441 = vunpack.c.l.b16 %v3405
    %v3442 = vunpack.c.l.b16 %v3406
    %v3443 = vunpack.c.l.b16 %v3407
    %v3444 = vunpack.c.l.b16 %v3408
    %v3445 = vunpack.c.l.b16 %v3409
    %v3446 = vunpack.c.l.b16 %v3410
    %v3447 = vunpack.c.l.b16 %v3411
    %v3448 = vunpack.c.l.b16 %v3412
    %v3449 = vunpack.c.l.b16 %v3413
    %v3450 = vunpack.c.l.b16 %v3414
    %v3451 = vunpack.c.l.b16 %v3415
    %v3452 = vunpack.c.l.b16 %v3416
    %v3453 = vunpack.c.l.b16 %v3417
    %v3454 = vpack.c.b16 %v3439, %v3438
    %v3455 = vpack.c.b16 %v3441, %v3440
    %v3456 = vpack.c.b16 %v3443, %v3442
    %v3457 = vpack.c.b16 %v3445, %v3444
    %v3458 = vpack.c.b16 %v3447, %v3446
    %v3459 = vpack.c.b16 %v3449, %v3448
    %v3460 = vpack.c.b16 %v3451, %v3450
    %v3461 = vpack.c.b16 %v3453, %v3452
    %3470 = vmatpush.bf16.msra.mxu0 %v3461
    %3471 = vmatpush.bf16.msra.mxu0 %v3460
    %3472 = vmatpush.bf16.msra.mxu0 %v3459
    %3473 = vmatpush.bf16.msra.mxu0 %v3458
    %3474 = vmatpush.bf16.msra.mxu0 %v3457
    %3475 = vmatpush.bf16.msra.mxu0 %v3456
    %3476 = vmatpush.bf16.msra.mxu0 %v3455
    %3477 = vmatpush.bf16.msra.mxu0 %v3454
    %3478 = vmatmul.bf16.gmra.mxu0 %v3401
    %v3479 = vpop.f32.mrf.mxu0
    %v3480 = vadd.f32 %v3420, %v3479
    %v3481 = vpop.f32.mrf.mxu0
    %3482 = vdwg.mxu0
    %v3483 = vmax.f32 %v3480, 0.0
    %v3484 = vpack.c.bf16 %v3483, %v3483
    %v3485 = vld [vmem:[#allocation17] sm:$0xf]
    %v3486 = vld [vmem:[#allocation17 + $0x4] sm:$0xf]
    %v3487 = vld [vmem:[#allocation17 + $0x8] sm:$0xf]
    %v3488 = vld [vmem:[#allocation17 + $0xc] sm:$0xf]
    %v3489 = vld [vmem:[#allocation17 + $0x10] sm:$0xf]
    %v3490 = vld [vmem:[#allocation17 + $0x14] sm:$0xf]
    %v3491 = vld [vmem:[#allocation17 + $0x18] sm:$0xf]
    %v3492 = vld [vmem:[#allocation17 + $0x1c] sm:$0xf]
    %v3493 = vld [vmem:[#allocation18] sm:$0x1]
    %v3495 = vperm.slane %v3493, 0
    %v3505 = vunpack.c.l.b16 %v3485
    %v3506 = vunpack.c.l.b16 %v3486
    %v3507 = vunpack.c.l.b16 %v3487
    %v3508 = vunpack.c.l.b16 %v3488
    %v3509 = vunpack.c.l.b16 %v3489
    %v3510 = vunpack.c.l.b16 %v3490
    %v3511 = vunpack.c.l.b16 %v3491
    %v3512 = vunpack.c.l.b16 %v3492
    %v3513 = vpack.c.b16 %v3506, %v3505
    %v3514 = vpack.c.b16 %v3508, %v3507
    %v3515 = vpack.c.b16 %v3510, %v3509
    %v3516 = vpack.c.b16 %v3512, %v3511
    %vm3521 = vcmask 523264
    %v3523 = vsel %vm3521, %v3484, 0
    %3525 = vmatpush.bf16.msra.mxu0 0
    %3526 = vmatpush.bf16.msra.mxu0 0
    %3527 = vmatpush.bf16.msra.mxu0 0
    %3528 = vmatpush.bf16.msra.mxu0 0
    %3529 = vmatpush.bf16.msra.mxu0 %v3516
    %3530 = vmatpush.bf16.msra.mxu0 %v3515
    %3531 = vmatpush.bf16.msra.mxu0 %v3514
    %3532 = vmatpush.bf16.msra.mxu0 %v3513
    %3533 = vmatmul.bf16.gmra.mxu0 %v3523
    %v3534 = vpop.f32.mrf.mxu0
    %v3535 = vadd.f32 %v3495, %v3534
    %v3536 = vpop.f32.mrf.mxu0
    %3537 = vdwg.mxu0
    %v3538 = vlaneseq
    %v3539 = vand.u32 %v3538, 127
    %vm3540 = vcmp.ge.s32.totalorder %v3539, 32
    %vm3541 = vcmp.lt.s32.totalorder %v3539, 48
    %vm3542 = vmand %vm3540, %vm3541
    %v3543 = vmul.f32 %v3535, 1.442695
    %v3544 = vpow.pop %v3543
    %v3545 = vsel %vm3542, %v3544, %v3535
    %3546 = vst.msk [vmem:[%s23] sm:$0xff] %vm3521, %v3545
    %v3547 = vld [vmem:[%s19] sm:$0xff]
    %v3548 = vmul.f32 %v3545, 0.5
    %v3549 = vmul.f32 %v3548, 1.442695
    %v3550 = vpow.pop %v3549
    %3552 = vrot.lane.b32.xlu0 %v3550, 112
    %v3553 = vpop.permute.xlu0 %3552
    %v3555 = vmul.f32 %v3547, %v3553
    %v3556 = vadd.f32 %v3545, %v3555
    %3558 = vrot.lane.b32.xlu0 %v3545, 112
    %v3559 = vpop.permute.xlu0 %3558
    %v3561 = vrcp.pop %v3559
    %v3562 = vmul.f32 %v3559, %v3561
    %v3563 = vsub.f32 1.0, %v3562
    %v3564 = vmul.f32 %v3561, %v3563
    %v3565 = vadd.f32 %v3561, %v3564
    %vm3566 = vweird.f32 %v3559
    %vm3567 = vweird.f32 %v3561
    %vm3568 = vmor %vm3566, %vm3567
    %v3569 = vsel %vm3568, %v3561, %v3565
    %v3570 = vand.u32 2147483647, %v3559
    %vm3571 = vcmp.eq.f32.partialorder %v3570, 8.507059e+37
    %v3572 = vand.u32 %v3559, 2147483648
    %v3573 = vor.u32 1.1754944e-38, %v3572
    %v3574 = vsel %vm3571, %v3573, %v3569
    %v3575 = vmul.f32 %v3545, %v3574
    %v3576 = vsub.f32 0.0, %v3545
    %v3577 = vld [vmem:[%s20] sm:$0xff]
    %v3578 = vsub.f32 1.0, %v3577
    %v3579 = vlog2.pop %v3578
    %v3580 = vmul.f32 %v3579, 0.6931472
    %3582 = vrot.lane.b32.xlu0 %v3580, 48
    %v3583 = vpop.permute.xlu0 %3582
    %v3585 = vmul.f32 %v3576, %v3583
    %v3586 = vmul.f32 %v3585, 1.442695
    %v3587 = vpow.pop %v3586
    %v3588 = vsub.f32 %v3587, 1.0
    %3590 = vrot.lane.b32.xlu0 %v3588, 112
    %v3591 = vpop.permute.xlu0 %3590
    %v3593 = vmul.f32 %v3575, %v3591
    %v3594 = vld [vmem:[%s21] sm:$0xff]
    %vm3595 = vcmp.gt.f32.partialorder %v3594, 0.5
    %3597 = vrot.lane.b32.xlu0 %v3593, 96
    %v3598 = vpop.permute.xlu0 %3597
    %v3600 = vsel %vm3595, %v3556, %v3598
    %v3601 = vpack.c.bf16 %v3600, %v3600
    %v3602 = vld [vmem:[#allocation20] sm:$0xf]
    %v3603 = vld [vmem:[#allocation20 + $0x4] sm:$0xf]
    %v3604 = vld [vmem:[#allocation21] sm:$0x1]
    %v3606 = vperm.slane %v3604, 0
    %v3610 = vunpack.c.l.b16 %v3602
    %v3611 = vunpack.c.l.b16 %v3603
    %v3612 = vpack.c.b16 %v3611, %v3610
    %vm3614 = vcmask 130048
    %v3616 = vsel %vm3614, %v3601, 0
    %3618 = vmatpush.bf16.msra.mxu0 0
    %3619 = vmatpush.bf16.msra.mxu0 0
    %3620 = vmatpush.bf16.msra.mxu0 0
    %3621 = vmatpush.bf16.msra.mxu0 0
    %3622 = vmatpush.bf16.msra.mxu0 0
    %3623 = vmatpush.bf16.msra.mxu0 0
    %3624 = vmatpush.bf16.msra.mxu0 0
    %3625 = vmatpush.bf16.msra.mxu0 %v3612
    %3626 = vmatmul.bf16.gmra.mxu0 %v3616
    %v3627 = vpop.f32.mrf.mxu0
    %v3628 = vadd.f32 %v3606, %v3627
    %v3629 = vpop.f32.mrf.mxu0
    %3630 = vdwg.mxu0
    %v3631 = vmax.f32 %v3628, 0.0
    %v3632 = vpack.c.bf16 %v3631, %v3631
    %v3633 = vld [vmem:[#allocation23] sm:$0xff]
    %v3634 = vld [vmem:[#allocation23 + $0x8] sm:$0xff]
    %v3635 = vld [vmem:[#allocation23 + $0x10] sm:$0xff]
    %v3636 = vld [vmem:[#allocation23 + $0x18] sm:$0xff]
    %v3637 = vld [vmem:[#allocation23 + $0x20] sm:$0xff]
    %v3638 = vld [vmem:[#allocation23 + $0x28] sm:$0xff]
    %v3639 = vld [vmem:[#allocation23 + $0x30] sm:$0xff]
    %v3640 = vld [vmem:[#allocation23 + $0x38] sm:$0xff]
    %v3641 = vld [vmem:[#allocation23 + $0x40] sm:$0xff]
    %v3642 = vld [vmem:[#allocation23 + $0x48] sm:$0xff]
    %v3643 = vld [vmem:[#allocation23 + $0x50] sm:$0xff]
    %v3644 = vld [vmem:[#allocation23 + $0x58] sm:$0xff]
    %v3645 = vld [vmem:[#allocation23 + $0x60] sm:$0xff]
    %v3646 = vld [vmem:[#allocation23 + $0x68] sm:$0xff]
    %v3647 = vld [vmem:[#allocation23 + $0x70] sm:$0xff]
    %v3648 = vld [vmem:[#allocation23 + $0x78] sm:$0xff]
    %v3649 = vld [vmem:[#allocation23 + $0x80] sm:$0xff]
    %v3650 = vld [vmem:[#allocation23 + $0x88] sm:$0xff]
    %v3651 = vld [vmem:[#allocation23 + $0x90] sm:$0xff]
    %v3652 = vld [vmem:[#allocation23 + $0x98] sm:$0xff]
    %v3653 = vld [vmem:[#allocation23 + $0xa0] sm:$0xff]
    %v3654 = vld [vmem:[#allocation23 + $0xa8] sm:$0xff]
    %v3655 = vld [vmem:[#allocation23 + $0xb0] sm:$0xff]
    %v3656 = vld [vmem:[#allocation23 + $0xb8] sm:$0xff]
    %v3657 = vld [vmem:[#allocation23 + $0xc0] sm:$0xff]
    %v3658 = vld [vmem:[#allocation23 + $0xc8] sm:$0xff]
    %v3659 = vld [vmem:[#allocation23 + $0xd0] sm:$0xff]
    %v3660 = vld [vmem:[#allocation23 + $0xd8] sm:$0xff]
    %v3661 = vld [vmem:[#allocation23 + $0xe0] sm:$0xff]
    %v3662 = vld [vmem:[#allocation23 + $0xe8] sm:$0xff]
    %v3663 = vld [vmem:[#allocation23 + $0xf0] sm:$0xff]
    %v3664 = vld [vmem:[#allocation23 + $0xf8] sm:$0xff]
    %v3665 = vld [vmem:[#allocation24] sm:$0xf]
    %v3667 = vperm.slane %v3665, 0
    %v3668 = vperm.slane %v3665, 1
    %v3669 = vperm.slane %v3665, 2
    %v3670 = vperm.slane %v3665, 3
    %v3707 = vunpack.c.l.b16 %v3633
    %v3708 = vunpack.c.h.b16 %v3633
    %v3709 = vunpack.c.l.b16 %v3634
    %v3710 = vunpack.c.h.b16 %v3634
    %v3711 = vunpack.c.l.b16 %v3635
    %v3712 = vunpack.c.h.b16 %v3635
    %v3713 = vunpack.c.l.b16 %v3636
    %v3714 = vunpack.c.h.b16 %v3636
    %v3715 = vunpack.c.l.b16 %v3637
    %v3716 = vunpack.c.h.b16 %v3637
    %v3717 = vunpack.c.l.b16 %v3638
    %v3718 = vunpack.c.h.b16 %v3638
    %v3719 = vunpack.c.l.b16 %v3639
    %v3720 = vunpack.c.h.b16 %v3639
    %v3721 = vunpack.c.l.b16 %v3640
    %v3722 = vunpack.c.h.b16 %v3640
    %v3723 = vunpack.c.l.b16 %v3641
    %v3724 = vunpack.c.h.b16 %v3641
    %v3725 = vunpack.c.l.b16 %v3642
    %v3726 = vunpack.c.h.b16 %v3642
    %v3727 = vunpack.c.l.b16 %v3643
    %v3728 = vunpack.c.h.b16 %v3643
    %v3729 = vunpack.c.l.b16 %v3644
    %v3730 = vunpack.c.h.b16 %v3644
    %v3731 = vunpack.c.l.b16 %v3645
    %v3732 = vunpack.c.h.b16 %v3645
    %v3733 = vunpack.c.l.b16 %v3646
    %v3734 = vunpack.c.h.b16 %v3646
    %v3735 = vunpack.c.l.b16 %v3647
    %v3736 = vunpack.c.h.b16 %v3647
    %v3737 = vunpack.c.l.b16 %v3648
    %v3738 = vunpack.c.h.b16 %v3648
    %v3739 = vunpack.c.l.b16 %v3649
    %v3740 = vunpack.c.h.b16 %v3649
    %v3741 = vunpack.c.l.b16 %v3650
    %v3742 = vunpack.c.h.b16 %v3650
    %v3743 = vunpack.c.l.b16 %v3651
    %v3744 = vunpack.c.h.b16 %v3651
    %v3745 = vunpack.c.l.b16 %v3652
    %v3746 = vunpack.c.h.b16 %v3652
    %v3747 = vunpack.c.l.b16 %v3653
    %v3748 = vunpack.c.h.b16 %v3653
    %v3749 = vunpack.c.l.b16 %v3654
    %v3750 = vunpack.c.h.b16 %v3654
    %v3751 = vunpack.c.l.b16 %v3655
    %v3752 = vunpack.c.h.b16 %v3655
    %v3753 = vunpack.c.l.b16 %v3656
    %v3754 = vunpack.c.h.b16 %v3656
    %v3755 = vunpack.c.l.b16 %v3657
    %v3756 = vunpack.c.h.b16 %v3657
    %v3757 = vunpack.c.l.b16 %v3658
    %v3758 = vunpack.c.h.b16 %v3658
    %v3759 = vunpack.c.l.b16 %v3659
    %v3760 = vunpack.c.h.b16 %v3659
    %v3761 = vunpack.c.l.b16 %v3660
    %v3762 = vunpack.c.h.b16 %v3660
    %v3763 = vunpack.c.l.b16 %v3661
    %v3764 = vunpack.c.h.b16 %v3661
    %v3765 = vunpack.c.l.b16 %v3662
    %v3766 = vunpack.c.h.b16 %v3662
    %v3767 = vunpack.c.l.b16 %v3663
    %v3768 = vunpack.c.h.b16 %v3663
    %v3769 = vunpack.c.l.b16 %v3664
    %v3770 = vunpack.c.h.b16 %v3664
    %v3771 = vpack.c.b16 %v3711, %v3707
    %v3772 = vpack.c.b16 %v3712, %v3708
    %v3773 = vpack.c.b16 %v3713, %v3709
    %v3774 = vpack.c.b16 %v3714, %v3710
    %v3775 = vpack.c.b16 %v3719, %v3715
    %v3776 = vpack.c.b16 %v3720, %v3716
    %v3777 = vpack.c.b16 %v3721, %v3717
    %v3778 = vpack.c.b16 %v3722, %v3718
    %v3779 = vpack.c.b16 %v3727, %v3723
    %v3780 = vpack.c.b16 %v3728, %v3724
    %v3781 = vpack.c.b16 %v3729, %v3725
    %v3782 = vpack.c.b16 %v3730, %v3726
    %v3783 = vpack.c.b16 %v3735, %v3731
    %v3784 = vpack.c.b16 %v3736, %v3732
    %v3785 = vpack.c.b16 %v3737, %v3733
    %v3786 = vpack.c.b16 %v3738, %v3734
    %v3787 = vpack.c.b16 %v3743, %v3739
    %v3788 = vpack.c.b16 %v3744, %v3740
    %v3789 = vpack.c.b16 %v3745, %v3741
    %v3790 = vpack.c.b16 %v3746, %v3742
    %v3791 = vpack.c.b16 %v3751, %v3747
    %v3792 = vpack.c.b16 %v3752, %v3748
    %v3793 = vpack.c.b16 %v3753, %v3749
    %v3794 = vpack.c.b16 %v3754, %v3750
    %v3795 = vpack.c.b16 %v3759, %v3755
    %v3796 = vpack.c.b16 %v3760, %v3756
    %v3797 = vpack.c.b16 %v3761, %v3757
    %v3798 = vpack.c.b16 %v3762, %v3758
    %v3799 = vpack.c.b16 %v3767, %v3763
    %v3800 = vpack.c.b16 %v3768, %v3764
    %v3801 = vpack.c.b16 %v3769, %v3765
    %v3802 = vpack.c.b16 %v3770, %v3766
    %3835 = vmatpush.bf16.msra.mxu0 %v3799
    %3836 = vmatpush.bf16.msra.mxu0 %v3795
    %3837 = vmatpush.bf16.msra.mxu0 %v3791
    %3838 = vmatpush.bf16.msra.mxu0 %v3787
    %3839 = vmatpush.bf16.msra.mxu0 %v3783
    %3840 = vmatpush.bf16.msra.mxu0 %v3779
    %3841 = vmatpush.bf16.msra.mxu0 %v3775
    %3842 = vmatpush.bf16.msra.mxu0 %v3771
    %3843 = vmatmul.bf16.gmra.mxu0 %v3632
    %v3844 = vpop.f32.mrf.mxu0
    %v3845 = vadd.f32 %v3667, %v3844
    %v3846 = vpop.f32.mrf.mxu0
    %3847 = vdwg.mxu0
    %3848 = vmatpush.bf16.msra.mxu0 %v3800
    %3849 = vmatpush.bf16.msra.mxu0 %v3796
    %3850 = vmatpush.bf16.msra.mxu0 %v3792
    %3851 = vmatpush.bf16.msra.mxu0 %v3788
    %3852 = vmatpush.bf16.msra.mxu0 %v3784
    %3853 = vmatpush.bf16.msra.mxu0 %v3780
    %3854 = vmatpush.bf16.msra.mxu0 %v3776
    %3855 = vmatpush.bf16.msra.mxu0 %v3772
    %3856 = vmatmul.bf16.gmra.mxu0 %v3632
    %v3857 = vpop.f32.mrf.mxu0
    %v3858 = vadd.f32 %v3668, %v3857
    %v3859 = vpop.f32.mrf.mxu0
    %3860 = vdwg.mxu0
    %3861 = vmatpush.bf16.msra.mxu0 %v3801
    %3862 = vmatpush.bf16.msra.mxu0 %v3797
    %3863 = vmatpush.bf16.msra.mxu0 %v3793
    %3864 = vmatpush.bf16.msra.mxu0 %v3789
    %3865 = vmatpush.bf16.msra.mxu0 %v3785
    %3866 = vmatpush.bf16.msra.mxu0 %v3781
    %3867 = vmatpush.bf16.msra.mxu0 %v3777
    %3868 = vmatpush.bf16.msra.mxu0 %v3773
    %3869 = vmatmul.bf16.gmra.mxu0 %v3632
    %v3870 = vpop.f32.mrf.mxu0
    %v3871 = vadd.f32 %v3669, %v3870
    %v3872 = vpop.f32.mrf.mxu0
    %3873 = vdwg.mxu0
    %3874 = vmatpush.bf16.msra.mxu0 %v3802
    %3875 = vmatpush.bf16.msra.mxu0 %v3798
    %3876 = vmatpush.bf16.msra.mxu0 %v3794
    %3877 = vmatpush.bf16.msra.mxu0 %v3790
    %3878 = vmatpush.bf16.msra.mxu0 %v3786
    %3879 = vmatpush.bf16.msra.mxu0 %v3782
    %3880 = vmatpush.bf16.msra.mxu0 %v3778
    %3881 = vmatpush.bf16.msra.mxu0 %v3774
    %3882 = vmatmul.bf16.gmra.mxu0 %v3632
    %v3883 = vpop.f32.mrf.mxu0
    %v3884 = vadd.f32 %v3670, %v3883
    %v3885 = vpop.f32.mrf.mxu0
    %3886 = vdwg.mxu0
    %v3887 = vmax.f32 %v3845, 0.0
    %v3888 = vmax.f32 %v3858, 0.0
    %v3889 = vmax.f32 %v3871, 0.0
    %v3890 = vmax.f32 %v3884, 0.0
    %v3891 = vpack.c.bf16 %v3887, %v3887
    %v3892 = vpack.c.bf16 %v3888, %v3888
    %v3893 = vpack.c.bf16 %v3889, %v3889
    %v3894 = vpack.c.bf16 %v3890, %v3890
    %v3895 = vld [vmem:[#allocation26] sm:$0xf]
    %v3896 = vld [vmem:[#allocation26 + $0x4] sm:$0xf]
    %v3897 = vld [vmem:[#allocation26 + $0x8] sm:$0xf]
    %v3898 = vld [vmem:[#allocation26 + $0xc] sm:$0xf]
    %v3899 = vld [vmem:[#allocation26 + $0x10] sm:$0xf]
    %v3900 = vld [vmem:[#allocation26 + $0x14] sm:$0xf]
    %v3901 = vld [vmem:[#allocation26 + $0x18] sm:$0xf]
    %v3902 = vld [vmem:[#allocation26 + $0x1c] sm:$0xf]
    %v3903 = vld [vmem:[#allocation26 + $0x20] sm:$0xf]
    %v3904 = vld [vmem:[#allocation26 + $0x24] sm:$0xf]
    %v3905 = vld [vmem:[#allocation26 + $0x28] sm:$0xf]
    %v3906 = vld [vmem:[#allocation26 + $0x2c] sm:$0xf]
    %v3907 = vld [vmem:[#allocation26 + $0x30] sm:$0xf]
    %v3908 = vld [vmem:[#allocation26 + $0x34] sm:$0xf]
    %v3909 = vld [vmem:[#allocation26 + $0x38] sm:$0xf]
    %v3910 = vld [vmem:[#allocation26 + $0x3c] sm:$0xf]
    %v3911 = vld [vmem:[#allocation26 + $0x40] sm:$0xf]
    %v3912 = vld [vmem:[#allocation26 + $0x44] sm:$0xf]
    %v3913 = vld [vmem:[#allocation26 + $0x48] sm:$0xf]
    %v3914 = vld [vmem:[#allocation26 + $0x4c] sm:$0xf]
    %v3915 = vld [vmem:[#allocation26 + $0x50] sm:$0xf]
    %v3916 = vld [vmem:[#allocation26 + $0x54] sm:$0xf]
    %v3917 = vld [vmem:[#allocation26 + $0x58] sm:$0xf]
    %v3918 = vld [vmem:[#allocation26 + $0x5c] sm:$0xf]
    %v3919 = vld [vmem:[#allocation26 + $0x60] sm:$0xf]
    %v3920 = vld [vmem:[#allocation26 + $0x64] sm:$0xf]
    %v3921 = vld [vmem:[#allocation26 + $0x68] sm:$0xf]
    %v3922 = vld [vmem:[#allocation26 + $0x6c] sm:$0xf]
    %v3923 = vld [vmem:[#allocation26 + $0x70] sm:$0xf]
    %v3924 = vld [vmem:[#allocation26 + $0x74] sm:$0xf]
    %v3925 = vld [vmem:[#allocation26 + $0x78] sm:$0xf]
    %v3926 = vld [vmem:[#allocation26 + $0x7c] sm:$0xf]
    %v3927 = vld [vmem:[#allocation26 + $0x80] sm:$0xf]
    %v3928 = vld [vmem:[#allocation26 + $0x84] sm:$0xf]
    %v3929 = vld [vmem:[#allocation26 + $0x88] sm:$0xf]
    %v3930 = vld [vmem:[#allocation26 + $0x8c] sm:$0xf]
    %v3931 = vld [vmem:[#allocation26 + $0x90] sm:$0xf]
    %v3932 = vld [vmem:[#allocation26 + $0x94] sm:$0xf]
    %v3933 = vld [vmem:[#allocation26 + $0x98] sm:$0xf]
    %v3934 = vld [vmem:[#allocation26 + $0x9c] sm:$0xf]
    %v3935 = vld [vmem:[#allocation26 + $0xa0] sm:$0xf]
    %v3936 = vld [vmem:[#allocation26 + $0xa4] sm:$0xf]
    %v3937 = vld [vmem:[#allocation26 + $0xa8] sm:$0xf]
    %v3938 = vld [vmem:[#allocation26 + $0xac] sm:$0xf]
    %v3939 = vld [vmem:[#allocation26 + $0xb0] sm:$0xf]
    %v3940 = vld [vmem:[#allocation26 + $0xb4] sm:$0xf]
    %v3941 = vld [vmem:[#allocation26 + $0xb8] sm:$0xf]
    %v3942 = vld [vmem:[#allocation26 + $0xbc] sm:$0xf]
    %v3943 = vld [vmem:[#allocation26 + $0xc0] sm:$0xf]
    %v3944 = vld [vmem:[#allocation26 + $0xc4] sm:$0xf]
    %v3945 = vld [vmem:[#allocation26 + $0xc8] sm:$0xf]
    %v3946 = vld [vmem:[#allocation26 + $0xcc] sm:$0xf]
    %v3947 = vld [vmem:[#allocation26 + $0xd0] sm:$0xf]
    %v3948 = vld [vmem:[#allocation26 + $0xd4] sm:$0xf]
    %v3949 = vld [vmem:[#allocation26 + $0xd8] sm:$0xf]
    %v3950 = vld [vmem:[#allocation26 + $0xdc] sm:$0xf]
    %v3951 = vld [vmem:[#allocation26 + $0xe0] sm:$0xf]
    %v3952 = vld [vmem:[#allocation26 + $0xe4] sm:$0xf]
    %v3953 = vld [vmem:[#allocation26 + $0xe8] sm:$0xf]
    %v3954 = vld [vmem:[#allocation26 + $0xec] sm:$0xf]
    %v3955 = vld [vmem:[#allocation26 + $0xf0] sm:$0xf]
    %v3956 = vld [vmem:[#allocation26 + $0xf4] sm:$0xf]
    %v3957 = vld [vmem:[#allocation26 + $0xf8] sm:$0xf]
    %v3958 = vld [vmem:[#allocation26 + $0xfc] sm:$0xf]
    %v3959 = vld [vmem:[#allocation27] sm:$0x1]
    %v3961 = vperm.slane %v3959, 0
    %v4027 = vunpack.c.l.b16 %v3895
    %v4028 = vunpack.c.l.b16 %v3896
    %v4029 = vunpack.c.l.b16 %v3897
    %v4030 = vunpack.c.l.b16 %v3898
    %v4031 = vunpack.c.l.b16 %v3899
    %v4032 = vunpack.c.l.b16 %v3900
    %v4033 = vunpack.c.l.b16 %v3901
    %v4034 = vunpack.c.l.b16 %v3902
    %v4035 = vunpack.c.l.b16 %v3903
    %v4036 = vunpack.c.l.b16 %v3904
    %v4037 = vunpack.c.l.b16 %v3905
    %v4038 = vunpack.c.l.b16 %v3906
    %v4039 = vunpack.c.l.b16 %v3907
    %v4040 = vunpack.c.l.b16 %v3908
    %v4041 = vunpack.c.l.b16 %v3909
    %v4042 = vunpack.c.l.b16 %v3910
    %v4043 = vunpack.c.l.b16 %v3911
    %v4044 = vunpack.c.l.b16 %v3912
    %v4045 = vunpack.c.l.b16 %v3913
    %v4046 = vunpack.c.l.b16 %v3914
    %v4047 = vunpack.c.l.b16 %v3915
    %v4048 = vunpack.c.l.b16 %v3916
    %v4049 = vunpack.c.l.b16 %v3917
    %v4050 = vunpack.c.l.b16 %v3918
    %v4051 = vunpack.c.l.b16 %v3919
    %v4052 = vunpack.c.l.b16 %v3920
    %v4053 = vunpack.c.l.b16 %v3921
    %v4054 = vunpack.c.l.b16 %v3922
    %v4055 = vunpack.c.l.b16 %v3923
    %v4056 = vunpack.c.l.b16 %v3924
    %v4057 = vunpack.c.l.b16 %v3925
    %v4058 = vunpack.c.l.b16 %v3926
    %v4059 = vunpack.c.l.b16 %v3927
    %v4060 = vunpack.c.l.b16 %v3928
    %v4061 = vunpack.c.l.b16 %v3929
    %v4062 = vunpack.c.l.b16 %v3930
    %v4063 = vunpack.c.l.b16 %v3931
    %v4064 = vunpack.c.l.b16 %v3932
    %v4065 = vunpack.c.l.b16 %v3933
    %v4066 = vunpack.c.l.b16 %v3934
    %v4067 = vunpack.c.l.b16 %v3935
    %v4068 = vunpack.c.l.b16 %v3936
    %v4069 = vunpack.c.l.b16 %v3937
    %v4070 = vunpack.c.l.b16 %v3938
    %v4071 = vunpack.c.l.b16 %v3939
    %v4072 = vunpack.c.l.b16 %v3940
    %v4073 = vunpack.c.l.b16 %v3941
    %v4074 = vunpack.c.l.b16 %v3942
    %v4075 = vunpack.c.l.b16 %v3943
    %v4076 = vunpack.c.l.b16 %v3944
    %v4077 = vunpack.c.l.b16 %v3945
    %v4078 = vunpack.c.l.b16 %v3946
    %v4079 = vunpack.c.l.b16 %v3947
    %v4080 = vunpack.c.l.b16 %v3948
    %v4081 = vunpack.c.l.b16 %v3949
    %v4082 = vunpack.c.l.b16 %v3950
    %v4083 = vunpack.c.l.b16 %v3951
    %v4084 = vunpack.c.l.b16 %v3952
    %v4085 = vunpack.c.l.b16 %v3953
    %v4086 = vunpack.c.l.b16 %v3954
    %v4087 = vunpack.c.l.b16 %v3955
    %v4088 = vunpack.c.l.b16 %v3956
    %v4089 = vunpack.c.l.b16 %v3957
    %v4090 = vunpack.c.l.b16 %v3958
    %v4091 = vpack.c.b16 %v4028, %v4027
    %v4092 = vpack.c.b16 %v4030, %v4029
    %v4093 = vpack.c.b16 %v4032, %v4031
    %v4094 = vpack.c.b16 %v4034, %v4033
    %v4095 = vpack.c.b16 %v4036, %v4035
    %v4096 = vpack.c.b16 %v4038, %v4037
    %v4097 = vpack.c.b16 %v4040, %v4039
    %v4098 = vpack.c.b16 %v4042, %v4041
    %v4099 = vpack.c.b16 %v4044, %v4043
    %v4100 = vpack.c.b16 %v4046, %v4045
    %v4101 = vpack.c.b16 %v4048, %v4047
    %v4102 = vpack.c.b16 %v4050, %v4049
    %v4103 = vpack.c.b16 %v4052, %v4051
    %v4104 = vpack.c.b16 %v4054, %v4053
    %v4105 = vpack.c.b16 %v4056, %v4055
    %v4106 = vpack.c.b16 %v4058, %v4057
    %v4107 = vpack.c.b16 %v4060, %v4059
    %v4108 = vpack.c.b16 %v4062, %v4061
    %v4109 = vpack.c.b16 %v4064, %v4063
    %v4110 = vpack.c.b16 %v4066, %v4065
    %v4111 = vpack.c.b16 %v4068, %v4067
    %v4112 = vpack.c.b16 %v4070, %v4069
    %v4113 = vpack.c.b16 %v4072, %v4071
    %v4114 = vpack.c.b16 %v4074, %v4073
    %v4115 = vpack.c.b16 %v4076, %v4075
    %v4116 = vpack.c.b16 %v4078, %v4077
    %v4117 = vpack.c.b16 %v4080, %v4079
    %v4118 = vpack.c.b16 %v4082, %v4081
    %v4119 = vpack.c.b16 %v4084, %v4083
    %v4120 = vpack.c.b16 %v4086, %v4085
    %v4121 = vpack.c.b16 %v4088, %v4087
    %v4122 = vpack.c.b16 %v4090, %v4089
    %4155 = vmatpush.bf16.msra.mxu0 %v4098
    %4156 = vmatpush.bf16.msra.mxu0 %v4097
    %4157 = vmatpush.bf16.msra.mxu0 %v4096
    %4158 = vmatpush.bf16.msra.mxu0 %v4095
    %4159 = vmatpush.bf16.msra.mxu0 %v4094
    %4160 = vmatpush.bf16.msra.mxu0 %v4093
    %4161 = vmatpush.bf16.msra.mxu0 %v4092
    %4162 = vmatpush.bf16.msra.mxu0 %v4091
    %4163 = vmatmul.bf16.gmra.mxu0 %v3891
    %v4164 = vpop.f32.mrf.mxu0
    %v4165 = vadd.f32 %v3961, %v4164
    %v4166 = vpop.f32.mrf.mxu0
    %4167 = vdwg.mxu0
    %4168 = vmatpush.bf16.msra.mxu0 %v4106
    %4169 = vmatpush.bf16.msra.mxu0 %v4105
    %4170 = vmatpush.bf16.msra.mxu0 %v4104
    %4171 = vmatpush.bf16.msra.mxu0 %v4103
    %4172 = vmatpush.bf16.msra.mxu0 %v4102
    %4173 = vmatpush.bf16.msra.mxu0 %v4101
    %4174 = vmatpush.bf16.msra.mxu0 %v4100
    %4175 = vmatpush.bf16.msra.mxu0 %v4099
    %4176 = vmatmul.bf16.gmra.mxu0 %v3892
    %v4177 = vpop.f32.mrf.mxu0
    %v4178 = vadd.f32 %v4165, %v4177
    %v4179 = vpop.f32.mrf.mxu0
    %4180 = vdwg.mxu0
    %4181 = vmatpush.bf16.msra.mxu0 %v4114
    %4182 = vmatpush.bf16.msra.mxu0 %v4113
    %4183 = vmatpush.bf16.msra.mxu0 %v4112
    %4184 = vmatpush.bf16.msra.mxu0 %v4111
    %4185 = vmatpush.bf16.msra.mxu0 %v4110
    %4186 = vmatpush.bf16.msra.mxu0 %v4109
    %4187 = vmatpush.bf16.msra.mxu0 %v4108
    %4188 = vmatpush.bf16.msra.mxu0 %v4107
    %4189 = vmatmul.bf16.gmra.mxu0 %v3893
    %v4190 = vpop.f32.mrf.mxu0
    %v4191 = vadd.f32 %v4178, %v4190
    %v4192 = vpop.f32.mrf.mxu0
    %4193 = vdwg.mxu0
    %4194 = vmatpush.bf16.msra.mxu0 %v4122
    %4195 = vmatpush.bf16.msra.mxu0 %v4121
    %4196 = vmatpush.bf16.msra.mxu0 %v4120
    %4197 = vmatpush.bf16.msra.mxu0 %v4119
    %4198 = vmatpush.bf16.msra.mxu0 %v4118
    %4199 = vmatpush.bf16.msra.mxu0 %v4117
    %4200 = vmatpush.bf16.msra.mxu0 %v4116
    %4201 = vmatpush.bf16.msra.mxu0 %v4115
    %4202 = vmatmul.bf16.gmra.mxu0 %v3894
    %v4203 = vpop.f32.mrf.mxu0
    %v4204 = vadd.f32 %v4191, %v4203
    %v4205 = vpop.f32.mrf.mxu0
    %4206 = vdwg.mxu0
    %v4207 = vpack.c.bf16 %v4204, %v4204
    %v4208 = vld [vmem:[#allocation29] sm:$0xf]
    %v4209 = vld [vmem:[#allocation30] sm:$0x1]
    %v4211 = vperm.slane %v4209, 0
    %v4214 = vsel %vm402, %v4207, 0
    %v4217 = vsel %vm415, %v4208, 0
    %4219 = vmatpush.bf16.msra.mxu0 0
    %4220 = vmatpush.bf16.msra.mxu0 0
    %4221 = vmatpush.bf16.msra.mxu0 0
    %4222 = vmatpush.bf16.msra.mxu0 0
    %4223 = vmatpush.bf16.msra.mxu0 0
    %4224 = vmatpush.bf16.msra.mxu0 0
    %4225 = vmatpush.bf16.msra.mxu0 0
    %4226 = vmatpush.bf16.msra.mxu0 %v4217
    %4227 = vmatmul.bf16.gmra.mxu0 %v4214
    %v4228 = vpop.f32.mrf.mxu0
    %v4229 = vadd.f32 %v4211, %v4228
    %v4230 = vpop.f32.mrf.mxu0
    %4231 = vdwg.mxu0
    %4232 = vst.msk [vmem:[%s22] sm:$0xff] %vm402, %v4229
    // Predicated region
    $region169: #{vae_forward.3} parent=1 // pred_check
      _
    $region170: #{vae_forward.3} parent=1 // pred_check_branch
      %4234 = sbr.rel (0) target = $region172
    $region171: #{vae_forward.3} parent=1 // pred_region
      _
    $region172: #{vae_forward.3} parent=1 // pred_fallthru
      _
    // Predicated region
    $region173: #{vae_forward.3} parent=1 // pred_check
      _
    $region174: #{vae_forward.3} parent=1 // pred_check_branch
      %4236 = sbr.rel (0) target = $region176
    $region175: #{vae_forward.3} parent=1 // pred_region
      _
    $region176: #{vae_forward.3} parent=1 // pred_fallthru
      _
    // Predicated region
    $region177: #{vae_forward.3} parent=1 // pred_check
      _
    $region178: #{vae_forward.3} parent=1 // pred_check_branch
      %4238 = sbr.rel (0) target = $region180
    $region179: #{vae_forward.3} parent=1 // pred_region
      _
    $region180: #{vae_forward.3} parent=1 // pred_fallthru
      _
    // Predicated region
    $region181: #{vae_forward.3} parent=1 // pred_check
      _
    $region182: #{vae_forward.3} parent=1 // pred_check_branch
      %4240 = sbr.rel (0) target = $region184
    $region183: #{vae_forward.3} parent=1 // pred_region
      _
    $region184: #{vae_forward.3} parent=1 // pred_fallthru
      _
    %4241 = vsyncpa [#allocation5], 1
    %4242 = vsyncpa [#allocation7], 1
    %4243 = vsyncpa [#allocation10], 1
    %4244 = vsyncpa [#allocation13], 1
    %4245 = vsyncpa [#allocation16], 1
    %4246 = vsyncpa [#allocation19], 1
    %4247 = vsyncpa [#allocation22], 1
    %4248 = vsyncpa [#allocation25], 1
    %4249 = vsyncpa [#allocation28], 1
    %4250 = vsyncpa [#allocation31], 1

</llo_original>
